<compile_context>
chip_gen: v7x
topology: tpu7x:2x2x1
jax: 0.10.0
libtpu: 0.0.40
codegen_flags: <defaults>
</compile_context>

<pallas_src>
import numpy as np
import jax
import jax.numpy as jnp
from jax.experimental import pallas as pl
from jax.experimental.pallas import tpu as pltpu


# ----------------------------------------------------------------------------
# parameter-side setup: relative-position tables (identical to the PyTorch code)
# ----------------------------------------------------------------------------
def gen_window_bias_inputs(wh, ww):
    N = wh * ww
    ys, xs = np.meshgrid(np.arange(wh), np.arange(ww), indexing="ij")
    positions = np.stack([ys, xs], axis=2).reshape(N, 2)
    delta = np.concatenate([positions[i:i + 1] - positions for i in range(N)], axis=0)
    delta_t = [tuple(int(v) for v in p) for p in delta.tolist()]
    unique_delta = sorted(set(delta_t))
    index = np.array([unique_delta.index(d) for d in delta_t], dtype=np.int32)
    unique_delta = np.array(unique_delta, dtype=np.float32)
    unique_delta = unique_delta / np.abs(unique_delta).max()
    return index, unique_delta


# ----------------------------------------------------------------------------
# exact-GELU helpers (erf form, built only from ops with guaranteed TPU lowering)
# ----------------------------------------------------------------------------
_SQRT1_2 = 0.7071067811865476


def _erf_f32(x):
    # Abramowitz & Stegun 7.1.26 — max abs error ~1.5e-7 (float32-exact here).
    a1, a2, a3, a4, a5 = (0.254829592, -0.284496736, 1.421413741,
                          -1.453152027, 1.061405429)
    p = 0.3275911
    ax = jnp.abs(x)
    t = 1.0 / (1.0 + p * ax)
    poly = ((((a5 * t + a4) * t + a3) * t + a2) * t + a1) * t
    r = 1.0 - poly * jnp.exp(-(ax * ax))
    return jnp.where(x >= 0.0, r, -r)


def _gelu_exact(x):
    # nn.GELU() (erf form): 0.5 * x * (1 + erf(x / sqrt(2)))
    return 0.5 * x * (1.0 + _erf_f32(x * _SQRT1_2))


def _plane_layout(nn_total):
    # Wide lane-dense 2-D layout: cols = multiple of 128 (capped at 2048),
    # rows = multiple of 8.  Default 8x8 window -> (8, 512), zero padding.
    cols = 128 * max(1, min(16, -(-nn_total // (8 * 128))))
    rows = -(-nn_total // cols)
    rows = -(-rows // 8) * 8
    return rows, cols


# ----------------------------------------------------------------------------
# Pallas kernel: fused WindowBias forward
#   out[rows, cols] such that out.flatten()[:N*N].reshape(N, N) == bias
# ----------------------------------------------------------------------------
def window_bias_forward(params, window_size):
    wh, ww = window_size
    N = wh * ww
    NN = N * N
    dy_plane = params["dy_plane"]          # (rows, cols) f32, lane-dense
    dx_plane = params["dx_plane"]          # (rows, cols) f32
    w_packed = params["w_packed"]          # (4*hidden + 1,) f32, lives in SMEM
    hidden = params["hidden"]              # static python int (e.g. 16)
    rows, cols = dy_plane.shape

    # Row-block tiling: one step for small windows; for big tables, tile and let
    # the compiler shard the parallel axis across TensorCores.
    tr = rows if rows <= 256 else 256
    if rows % tr != 0:
        tr = rows
    grid = (rows // tr,)

    def kernel(dy_ref, dx_ref, w_ref, o_ref):
        dy = dy_ref[...]                   # (tr, cols)
        dx = dx_ref[...]
        acc = jnp.zeros_like(dy)
        # tiny 2 -> hidden -> 1 MLP, statically unrolled over hidden units;
        # scalar weights come from SMEM and broadcast onto full vregs (VPU+EUP).
        for k in range(hidden):
            pre = dy * w_ref[k] + dx * w_ref[hidden + k] + w_ref[2 * hidden + k]
            acc = acc + _gelu_exact(pre) * w_ref[3 * hidden + k]
        o_ref[...] = acc + w_ref[4 * hidden]   # + output bias

    out = pl.pallas_call(
        kernel,
        out_shape=jax.ShapeDtypeStruct((rows, cols), jnp.float32),
        grid=grid,
        in_specs=[
            pl.BlockSpec((tr, cols), lambda i: (i, 0)),
            pl.BlockSpec((tr, cols), lambda i: (i, 0)),
            pl.BlockSpec(memory_space=pltpu.MemorySpace.SMEM),
        ],
        out_specs=pl.BlockSpec((tr, cols), lambda i: (i, 0)),
        compiler_params=pltpu.CompilerParams(
            dimension_semantics=("parallel",),
            vmem_limit_bytes=32 * 1024 * 1024,
        ),
    )(dy_plane, dx_plane, w_packed)

    # pure metadata reshape back to the module's (N, N) output
    return out.reshape(-1)[:NN].reshape(N, N)


# ----------------------------------------------------------------------------
# pure-JAX reference (mirrors the PyTorch module exactly) for a runtime check
# ----------------------------------------------------------------------------
def window_bias_reference(params, window_size):
    wh, ww = window_size
    N = wh * ww
    h = jax.nn.gelu(params["delta"] @ params["w1"] + params["b1"], approximate=False)
    bias_u = h @ params["w2"] + params["b2"]          # (U, 1)
    return bias_u[params["index"], 0].reshape(N, N)


# ----------------------------------------------------------------------------
# deterministic synthetic parameters (PyTorch init: trunc_normal(0, 0.02) weights,
# zero biases)
# ----------------------------------------------------------------------------
def init_params(key, window_size):
    wh, ww = window_size
    N = wh * ww
    NN = N * N
    hidden = int(N ** 0.5) * 2
    index, unique_delta = gen_window_bias_inputs(wh, ww)

    k1, k2 = jax.random.split(key)
    w1 = jax.random.normal(k1, (2, hidden), jnp.float32) * 0.02
    b1 = jnp.zeros((hidden,), jnp.float32)
    w2 = jax.random.normal(k2, (hidden, 1), jnp.float32) * 0.02
    b2 = jnp.zeros((1,), jnp.float32)

    # Constant buffers: gather delta by index once at init (constant composed
    # with constant) and lay it out lane-dense as (rows, cols) planes.
    gathered = unique_delta[index]                    # (NN, 2) numpy f32
    rows, cols = _plane_layout(NN)
    total = rows * cols
    dy = np.zeros((total,), np.float32)
    dx = np.zeros((total,), np.float32)
    dy[:NN] = gathered[:, 0]
    dx[:NN] = gathered[:, 1]

    # single packed weight vector for SMEM: [w1[0,:], w1[1,:], b1, w2[:,0], b2]
    w_packed = jnp.concatenate([w1[0], w1[1], b1, w2[:, 0], b2]).astype(jnp.float32)

    return {
        "w1": w1, "b1": b1, "w2": w2, "b2": b2,
        "index": jnp.asarray(index, jnp.int32),
        "delta": jnp.asarray(unique_delta, jnp.float32),
        "hidden": hidden,
        "dy_plane": jnp.asarray(dy.reshape(rows, cols)),
        "dx_plane": jnp.asarray(dx.reshape(rows, cols)),
        "w_packed": w_packed,
    }


if __name__ == "__main__":
    window_size = (8, 8)                  # N = 64 tokens/window, bias is (64, 64)
    key = jax.random.PRNGKey(0)
    params = init_params(key, window_size)

    bias = window_bias_forward(params, window_size)
    bias = jax.block_until_ready(bias)

    N = window_size[0] * window_size[1]
    assert bias.shape == (N, N), bias.shape
    assert bool(jnp.all(jnp.isfinite(bias)))

    ref = window_bias_reference(params, window_size)
    assert np.allclose(np.asarray(bias), np.asarray(ref), rtol=1e-4, atol=1e-5), (
        float(np.max(np.abs(np.asarray(bias) - np.asarray(ref)))))

    print("KERNEL_OK")
</pallas_src>

<mosaic_0001>
module attributes {stable_mosaic.version = 11 : i64} {
  func.func @kernel(%arg0: i32, %arg1: memref<8x512xf32, #tpu.memory_space<vmem>>, %arg2: memref<8x512xf32, #tpu.memory_space<vmem>>, %arg3: memref<65xf32, #tpu.memory_space<smem>>, %arg4: memref<8x512xf32, #tpu.memory_space<vmem>>) attributes {dimension_semantics = [#tpu.dimension_semantics<parallel>], iteration_bounds = array<i64: 1>, scalar_prefetch = 0 : i64, scratch_operands = 0 : i64, tpu.core_type = #tpu.core_type<tc>, window_params = [{transform_indices = @transform_0, window_bounds = array<i64: 8, 512>}, {transform_indices = @transform_1, window_bounds = array<i64: 8, 512>}, {transform_indices = @transform_2, window_bounds = array<i64: 65>}, {transform_indices = @transform_3, window_bounds = array<i64: 8, 512>}]} {
    %c0 = arith.constant 0 : index
    %c0_0 = arith.constant 0 : index
    %0 = vector.load %arg1[%c0, %c0_0] : memref<8x512xf32, #tpu.memory_space<vmem>>, vector<8x512xf32>
    %c0_1 = arith.constant 0 : index
    %c0_2 = arith.constant 0 : index
    %1 = vector.load %arg2[%c0_1, %c0_2] : memref<8x512xf32, #tpu.memory_space<vmem>>, vector<8x512xf32>
    %cst = arith.constant 0.000000e+00 : f32
    %2 = vector.broadcast %cst : f32 to vector<8x512xf32>
    %c0_3 = arith.constant 0 : index
    %3 = memref.load %arg3[%c0_3] : memref<65xf32, #tpu.memory_space<smem>>
    %4 = vector.broadcast %3 : f32 to vector<8x512xf32>
    %5 = arith.mulf %0, %4 : vector<8x512xf32>
    %c16 = arith.constant 16 : index
    %6 = memref.load %arg3[%c16] : memref<65xf32, #tpu.memory_space<smem>>
    %7 = vector.broadcast %6 : f32 to vector<8x512xf32>
    %8 = arith.mulf %1, %7 : vector<8x512xf32>
    %9 = arith.addf %5, %8 : vector<8x512xf32>
    %c32 = arith.constant 32 : index
    %10 = memref.load %arg3[%c32] : memref<65xf32, #tpu.memory_space<smem>>
    %11 = vector.broadcast %10 : f32 to vector<8x512xf32>
    %12 = arith.addf %9, %11 : vector<8x512xf32>
    %cst_4 = arith.constant 5.000000e-01 : f32
    %13 = vector.broadcast %cst_4 : f32 to vector<8x512xf32>
    %14 = arith.mulf %13, %12 : vector<8x512xf32>
    %cst_5 = arith.constant 0.707106769 : f32
    %15 = vector.broadcast %cst_5 : f32 to vector<8x512xf32>
    %16 = arith.mulf %12, %15 : vector<8x512xf32>
    %17 = math.absf %16 : vector<8x512xf32>
    %cst_6 = arith.constant 0.327591091 : f32
    %18 = vector.broadcast %cst_6 : f32 to vector<8x512xf32>
    %19 = arith.mulf %18, %17 : vector<8x512xf32>
    %cst_7 = arith.constant 1.000000e+00 : f32
    %20 = vector.broadcast %cst_7 : f32 to vector<8x512xf32>
    %21 = arith.addf %20, %19 : vector<8x512xf32>
    %cst_8 = arith.constant 1.000000e+00 : f32
    %22 = vector.broadcast %cst_8 : f32 to vector<8x512xf32>
    %23 = arith.divf %22, %21 : vector<8x512xf32>
    %cst_9 = arith.constant 1.06140542 : f32
    %24 = vector.broadcast %cst_9 : f32 to vector<8x512xf32>
    %25 = arith.mulf %24, %23 : vector<8x512xf32>
    %cst_10 = arith.constant -1.45315206 : f32
    %26 = vector.broadcast %cst_10 : f32 to vector<8x512xf32>
    %27 = arith.addf %25, %26 : vector<8x512xf32>
    %28 = arith.mulf %27, %23 : vector<8x512xf32>
    %cst_11 = arith.constant 1.42141378 : f32
    %29 = vector.broadcast %cst_11 : f32 to vector<8x512xf32>
    %30 = arith.addf %28, %29 : vector<8x512xf32>
    %31 = arith.mulf %30, %23 : vector<8x512xf32>
    %cst_12 = arith.constant -0.284496725 : f32
    %32 = vector.broadcast %cst_12 : f32 to vector<8x512xf32>
    %33 = arith.addf %31, %32 : vector<8x512xf32>
    %34 = arith.mulf %33, %23 : vector<8x512xf32>
    %cst_13 = arith.constant 0.254829586 : f32
    %35 = vector.broadcast %cst_13 : f32 to vector<8x512xf32>
    %36 = arith.addf %34, %35 : vector<8x512xf32>
    %37 = arith.mulf %36, %23 : vector<8x512xf32>
    %38 = arith.mulf %17, %17 : vector<8x512xf32>
    %cst_14 = arith.constant 0.000000e+00 : f32
    %39 = vector.broadcast %cst_14 : f32 to vector<8x512xf32>
    %40 = arith.subf %39, %38 : vector<8x512xf32>
    %41 = math.exp %40 : vector<8x512xf32>
    %42 = arith.mulf %37, %41 : vector<8x512xf32>
    %cst_15 = arith.constant 1.000000e+00 : f32
    %43 = vector.broadcast %cst_15 : f32 to vector<8x512xf32>
    %44 = arith.subf %43, %42 : vector<8x512xf32>
    %cst_16 = arith.constant 0.000000e+00 : f32
    %45 = vector.broadcast %cst_16 : f32 to vector<8x512xf32>
    %46 = arith.cmpf oge, %16, %45 : vector<8x512xf32>
    %cst_17 = arith.constant 0.000000e+00 : f32
    %47 = vector.broadcast %cst_17 : f32 to vector<8x512xf32>
    %48 = arith.subf %47, %44 : vector<8x512xf32>
    %49 = arith.select %46, %44, %48 : vector<8x512xi1>, vector<8x512xf32>
    %cst_18 = arith.constant 1.000000e+00 : f32
    %50 = vector.broadcast %cst_18 : f32 to vector<8x512xf32>
    %51 = arith.addf %50, %49 : vector<8x512xf32>
    %52 = arith.mulf %14, %51 : vector<8x512xf32>
    %c48 = arith.constant 48 : index
    %53 = memref.load %arg3[%c48] : memref<65xf32, #tpu.memory_space<smem>>
    %54 = vector.broadcast %53 : f32 to vector<8x512xf32>
    %55 = arith.mulf %52, %54 : vector<8x512xf32>
    %56 = arith.addf %2, %55 : vector<8x512xf32>
    %c1 = arith.constant 1 : index
    %57 = memref.load %arg3[%c1] : memref<65xf32, #tpu.memory_space<smem>>
    %58 = vector.broadcast %57 : f32 to vector<8x512xf32>
    %59 = arith.mulf %0, %58 : vector<8x512xf32>
    %c17 = arith.constant 17 : index
    %60 = memref.load %arg3[%c17] : memref<65xf32, #tpu.memory_space<smem>>
    %61 = vector.broadcast %60 : f32 to vector<8x512xf32>
    %62 = arith.mulf %1, %61 : vector<8x512xf32>
    %63 = arith.addf %59, %62 : vector<8x512xf32>
    %c33 = arith.constant 33 : index
    %64 = memref.load %arg3[%c33] : memref<65xf32, #tpu.memory_space<smem>>
    %65 = vector.broadcast %64 : f32 to vector<8x512xf32>
    %66 = arith.addf %63, %65 : vector<8x512xf32>
    %cst_19 = arith.constant 5.000000e-01 : f32
    %67 = vector.broadcast %cst_19 : f32 to vector<8x512xf32>
    %68 = arith.mulf %67, %66 : vector<8x512xf32>
    %cst_20 = arith.constant 0.707106769 : f32
    %69 = vector.broadcast %cst_20 : f32 to vector<8x512xf32>
    %70 = arith.mulf %66, %69 : vector<8x512xf32>
    %71 = math.absf %70 : vector<8x512xf32>
    %cst_21 = arith.constant 0.327591091 : f32
    %72 = vector.broadcast %cst_21 : f32 to vector<8x512xf32>
    %73 = arith.mulf %72, %71 : vector<8x512xf32>
    %cst_22 = arith.constant 1.000000e+00 : f32
    %74 = vector.broadcast %cst_22 : f32 to vector<8x512xf32>
    %75 = arith.addf %74, %73 : vector<8x512xf32>
    %cst_23 = arith.constant 1.000000e+00 : f32
    %76 = vector.broadcast %cst_23 : f32 to vector<8x512xf32>
    %77 = arith.divf %76, %75 : vector<8x512xf32>
    %cst_24 = arith.constant 1.06140542 : f32
    %78 = vector.broadcast %cst_24 : f32 to vector<8x512xf32>
    %79 = arith.mulf %78, %77 : vector<8x512xf32>
    %cst_25 = arith.constant -1.45315206 : f32
    %80 = vector.broadcast %cst_25 : f32 to vector<8x512xf32>
    %81 = arith.addf %79, %80 : vector<8x512xf32>
    %82 = arith.mulf %81, %77 : vector<8x512xf32>
    %cst_26 = arith.constant 1.42141378 : f32
    %83 = vector.broadcast %cst_26 : f32 to vector<8x512xf32>
    %84 = arith.addf %82, %83 : vector<8x512xf32>
    %85 = arith.mulf %84, %77 : vector<8x512xf32>
    %cst_27 = arith.constant -0.284496725 : f32
    %86 = vector.broadcast %cst_27 : f32 to vector<8x512xf32>
    %87 = arith.addf %85, %86 : vector<8x512xf32>
    %88 = arith.mulf %87, %77 : vector<8x512xf32>
    %cst_28 = arith.constant 0.254829586 : f32
    %89 = vector.broadcast %cst_28 : f32 to vector<8x512xf32>
    %90 = arith.addf %88, %89 : vector<8x512xf32>
    %91 = arith.mulf %90, %77 : vector<8x512xf32>
    %92 = arith.mulf %71, %71 : vector<8x512xf32>
    %cst_29 = arith.constant 0.000000e+00 : f32
    %93 = vector.broadcast %cst_29 : f32 to vector<8x512xf32>
    %94 = arith.subf %93, %92 : vector<8x512xf32>
    %95 = math.exp %94 : vector<8x512xf32>
    %96 = arith.mulf %91, %95 : vector<8x512xf32>
    %cst_30 = arith.constant 1.000000e+00 : f32
    %97 = vector.broadcast %cst_30 : f32 to vector<8x512xf32>
    %98 = arith.subf %97, %96 : vector<8x512xf32>
    %cst_31 = arith.constant 0.000000e+00 : f32
    %99 = vector.broadcast %cst_31 : f32 to vector<8x512xf32>
    %100 = arith.cmpf oge, %70, %99 : vector<8x512xf32>
    %cst_32 = arith.constant 0.000000e+00 : f32
    %101 = vector.broadcast %cst_32 : f32 to vector<8x512xf32>
    %102 = arith.subf %101, %98 : vector<8x512xf32>
    %103 = arith.select %100, %98, %102 : vector<8x512xi1>, vector<8x512xf32>
    %cst_33 = arith.constant 1.000000e+00 : f32
    %104 = vector.broadcast %cst_33 : f32 to vector<8x512xf32>
    %105 = arith.addf %104, %103 : vector<8x512xf32>
    %106 = arith.mulf %68, %105 : vector<8x512xf32>
    %c49 = arith.constant 49 : index
    %107 = memref.load %arg3[%c49] : memref<65xf32, #tpu.memory_space<smem>>
    %108 = vector.broadcast %107 : f32 to vector<8x512xf32>
    %109 = arith.mulf %106, %108 : vector<8x512xf32>
    %110 = arith.addf %56, %109 : vector<8x512xf32>
    %c2 = arith.constant 2 : index
    %111 = memref.load %arg3[%c2] : memref<65xf32, #tpu.memory_space<smem>>
    %112 = vector.broadcast %111 : f32 to vector<8x512xf32>
    %113 = arith.mulf %0, %112 : vector<8x512xf32>
    %c18 = arith.constant 18 : index
    %114 = memref.load %arg3[%c18] : memref<65xf32, #tpu.memory_space<smem>>
    %115 = vector.broadcast %114 : f32 to vector<8x512xf32>
    %116 = arith.mulf %1, %115 : vector<8x512xf32>
    %117 = arith.addf %113, %116 : vector<8x512xf32>
    %c34 = arith.constant 34 : index
    %118 = memref.load %arg3[%c34] : memref<65xf32, #tpu.memory_space<smem>>
    %119 = vector.broadcast %118 : f32 to vector<8x512xf32>
    %120 = arith.addf %117, %119 : vector<8x512xf32>
    %cst_34 = arith.constant 5.000000e-01 : f32
    %121 = vector.broadcast %cst_34 : f32 to vector<8x512xf32>
    %122 = arith.mulf %121, %120 : vector<8x512xf32>
    %cst_35 = arith.constant 0.707106769 : f32
    %123 = vector.broadcast %cst_35 : f32 to vector<8x512xf32>
    %124 = arith.mulf %120, %123 : vector<8x512xf32>
    %125 = math.absf %124 : vector<8x512xf32>
    %cst_36 = arith.constant 0.327591091 : f32
    %126 = vector.broadcast %cst_36 : f32 to vector<8x512xf32>
    %127 = arith.mulf %126, %125 : vector<8x512xf32>
    %cst_37 = arith.constant 1.000000e+00 : f32
    %128 = vector.broadcast %cst_37 : f32 to vector<8x512xf32>
    %129 = arith.addf %128, %127 : vector<8x512xf32>
    %cst_38 = arith.constant 1.000000e+00 : f32
    %130 = vector.broadcast %cst_38 : f32 to vector<8x512xf32>
    %131 = arith.divf %130, %129 : vector<8x512xf32>
    %cst_39 = arith.constant 1.06140542 : f32
    %132 = vector.broadcast %cst_39 : f32 to vector<8x512xf32>
    %133 = arith.mulf %132, %131 : vector<8x512xf32>
    %cst_40 = arith.constant -1.45315206 : f32
    %134 = vector.broadcast %cst_40 : f32 to vector<8x512xf32>
    %135 = arith.addf %133, %134 : vector<8x512xf32>
    %136 = arith.mulf %135, %131 : vector<8x512xf32>
    %cst_41 = arith.constant 1.42141378 : f32
    %137 = vector.broadcast %cst_41 : f32 to vector<8x512xf32>
    %138 = arith.addf %136, %137 : vector<8x512xf32>
    %139 = arith.mulf %138, %131 : vector<8x512xf32>
    %cst_42 = arith.constant -0.284496725 : f32
    %140 = vector.broadcast %cst_42 : f32 to vector<8x512xf32>
    %141 = arith.addf %139, %140 : vector<8x512xf32>
    %142 = arith.mulf %141, %131 : vector<8x512xf32>
    %cst_43 = arith.constant 0.254829586 : f32
    %143 = vector.broadcast %cst_43 : f32 to vector<8x512xf32>
    %144 = arith.addf %142, %143 : vector<8x512xf32>
    %145 = arith.mulf %144, %131 : vector<8x512xf32>
    %146 = arith.mulf %125, %125 : vector<8x512xf32>
    %cst_44 = arith.constant 0.000000e+00 : f32
    %147 = vector.broadcast %cst_44 : f32 to vector<8x512xf32>
    %148 = arith.subf %147, %146 : vector<8x512xf32>
    %149 = math.exp %148 : vector<8x512xf32>
    %150 = arith.mulf %145, %149 : vector<8x512xf32>
    %cst_45 = arith.constant 1.000000e+00 : f32
    %151 = vector.broadcast %cst_45 : f32 to vector<8x512xf32>
    %152 = arith.subf %151, %150 : vector<8x512xf32>
    %cst_46 = arith.constant 0.000000e+00 : f32
    %153 = vector.broadcast %cst_46 : f32 to vector<8x512xf32>
    %154 = arith.cmpf oge, %124, %153 : vector<8x512xf32>
    %cst_47 = arith.constant 0.000000e+00 : f32
    %155 = vector.broadcast %cst_47 : f32 to vector<8x512xf32>
    %156 = arith.subf %155, %152 : vector<8x512xf32>
    %157 = arith.select %154, %152, %156 : vector<8x512xi1>, vector<8x512xf32>
    %cst_48 = arith.constant 1.000000e+00 : f32
    %158 = vector.broadcast %cst_48 : f32 to vector<8x512xf32>
    %159 = arith.addf %158, %157 : vector<8x512xf32>
    %160 = arith.mulf %122, %159 : vector<8x512xf32>
    %c50 = arith.constant 50 : index
    %161 = memref.load %arg3[%c50] : memref<65xf32, #tpu.memory_space<smem>>
    %162 = vector.broadcast %161 : f32 to vector<8x512xf32>
    %163 = arith.mulf %160, %162 : vector<8x512xf32>
    %164 = arith.addf %110, %163 : vector<8x512xf32>
    %c3 = arith.constant 3 : index
    %165 = memref.load %arg3[%c3] : memref<65xf32, #tpu.memory_space<smem>>
    %166 = vector.broadcast %165 : f32 to vector<8x512xf32>
    %167 = arith.mulf %0, %166 : vector<8x512xf32>
    %c19 = arith.constant 19 : index
    %168 = memref.load %arg3[%c19] : memref<65xf32, #tpu.memory_space<smem>>
    %169 = vector.broadcast %168 : f32 to vector<8x512xf32>
    %170 = arith.mulf %1, %169 : vector<8x512xf32>
    %171 = arith.addf %167, %170 : vector<8x512xf32>
    %c35 = arith.constant 35 : index
    %172 = memref.load %arg3[%c35] : memref<65xf32, #tpu.memory_space<smem>>
    %173 = vector.broadcast %172 : f32 to vector<8x512xf32>
    %174 = arith.addf %171, %173 : vector<8x512xf32>
    %cst_49 = arith.constant 5.000000e-01 : f32
    %175 = vector.broadcast %cst_49 : f32 to vector<8x512xf32>
    %176 = arith.mulf %175, %174 : vector<8x512xf32>
    %cst_50 = arith.constant 0.707106769 : f32
    %177 = vector.broadcast %cst_50 : f32 to vector<8x512xf32>
    %178 = arith.mulf %174, %177 : vector<8x512xf32>
    %179 = math.absf %178 : vector<8x512xf32>
    %cst_51 = arith.constant 0.327591091 : f32
    %180 = vector.broadcast %cst_51 : f32 to vector<8x512xf32>
    %181 = arith.mulf %180, %179 : vector<8x512xf32>
    %cst_52 = arith.constant 1.000000e+00 : f32
    %182 = vector.broadcast %cst_52 : f32 to vector<8x512xf32>
    %183 = arith.addf %182, %181 : vector<8x512xf32>
    %cst_53 = arith.constant 1.000000e+00 : f32
    %184 = vector.broadcast %cst_53 : f32 to vector<8x512xf32>
    %185 = arith.divf %184, %183 : vector<8x512xf32>
    %cst_54 = arith.constant 1.06140542 : f32
    %186 = vector.broadcast %cst_54 : f32 to vector<8x512xf32>
    %187 = arith.mulf %186, %185 : vector<8x512xf32>
    %cst_55 = arith.constant -1.45315206 : f32
    %188 = vector.broadcast %cst_55 : f32 to vector<8x512xf32>
    %189 = arith.addf %187, %188 : vector<8x512xf32>
    %190 = arith.mulf %189, %185 : vector<8x512xf32>
    %cst_56 = arith.constant 1.42141378 : f32
    %191 = vector.broadcast %cst_56 : f32 to vector<8x512xf32>
    %192 = arith.addf %190, %191 : vector<8x512xf32>
    %193 = arith.mulf %192, %185 : vector<8x512xf32>
    %cst_57 = arith.constant -0.284496725 : f32
    %194 = vector.broadcast %cst_57 : f32 to vector<8x512xf32>
    %195 = arith.addf %193, %194 : vector<8x512xf32>
    %196 = arith.mulf %195, %185 : vector<8x512xf32>
    %cst_58 = arith.constant 0.254829586 : f32
    %197 = vector.broadcast %cst_58 : f32 to vector<8x512xf32>
    %198 = arith.addf %196, %197 : vector<8x512xf32>
    %199 = arith.mulf %198, %185 : vector<8x512xf32>
    %200 = arith.mulf %179, %179 : vector<8x512xf32>
    %cst_59 = arith.constant 0.000000e+00 : f32
    %201 = vector.broadcast %cst_59 : f32 to vector<8x512xf32>
    %202 = arith.subf %201, %200 : vector<8x512xf32>
    %203 = math.exp %202 : vector<8x512xf32>
    %204 = arith.mulf %199, %203 : vector<8x512xf32>
    %cst_60 = arith.constant 1.000000e+00 : f32
    %205 = vector.broadcast %cst_60 : f32 to vector<8x512xf32>
    %206 = arith.subf %205, %204 : vector<8x512xf32>
    %cst_61 = arith.constant 0.000000e+00 : f32
    %207 = vector.broadcast %cst_61 : f32 to vector<8x512xf32>
    %208 = arith.cmpf oge, %178, %207 : vector<8x512xf32>
    %cst_62 = arith.constant 0.000000e+00 : f32
    %209 = vector.broadcast %cst_62 : f32 to vector<8x512xf32>
    %210 = arith.subf %209, %206 : vector<8x512xf32>
    %211 = arith.select %208, %206, %210 : vector<8x512xi1>, vector<8x512xf32>
    %cst_63 = arith.constant 1.000000e+00 : f32
    %212 = vector.broadcast %cst_63 : f32 to vector<8x512xf32>
    %213 = arith.addf %212, %211 : vector<8x512xf32>
    %214 = arith.mulf %176, %213 : vector<8x512xf32>
    %c51 = arith.constant 51 : index
    %215 = memref.load %arg3[%c51] : memref<65xf32, #tpu.memory_space<smem>>
    %216 = vector.broadcast %215 : f32 to vector<8x512xf32>
    %217 = arith.mulf %214, %216 : vector<8x512xf32>
    %218 = arith.addf %164, %217 : vector<8x512xf32>
    %c4 = arith.constant 4 : index
    %219 = memref.load %arg3[%c4] : memref<65xf32, #tpu.memory_space<smem>>
    %220 = vector.broadcast %219 : f32 to vector<8x512xf32>
    %221 = arith.mulf %0, %220 : vector<8x512xf32>
    %c20 = arith.constant 20 : index
    %222 = memref.load %arg3[%c20] : memref<65xf32, #tpu.memory_space<smem>>
    %223 = vector.broadcast %222 : f32 to vector<8x512xf32>
    %224 = arith.mulf %1, %223 : vector<8x512xf32>
    %225 = arith.addf %221, %224 : vector<8x512xf32>
    %c36 = arith.constant 36 : index
    %226 = memref.load %arg3[%c36] : memref<65xf32, #tpu.memory_space<smem>>
    %227 = vector.broadcast %226 : f32 to vector<8x512xf32>
    %228 = arith.addf %225, %227 : vector<8x512xf32>
    %cst_64 = arith.constant 5.000000e-01 : f32
    %229 = vector.broadcast %cst_64 : f32 to vector<8x512xf32>
    %230 = arith.mulf %229, %228 : vector<8x512xf32>
    %cst_65 = arith.constant 0.707106769 : f32
    %231 = vector.broadcast %cst_65 : f32 to vector<8x512xf32>
    %232 = arith.mulf %228, %231 : vector<8x512xf32>
    %233 = math.absf %232 : vector<8x512xf32>
    %cst_66 = arith.constant 0.327591091 : f32
    %234 = vector.broadcast %cst_66 : f32 to vector<8x512xf32>
    %235 = arith.mulf %234, %233 : vector<8x512xf32>
    %cst_67 = arith.constant 1.000000e+00 : f32
    %236 = vector.broadcast %cst_67 : f32 to vector<8x512xf32>
    %237 = arith.addf %236, %235 : vector<8x512xf32>
    %cst_68 = arith.constant 1.000000e+00 : f32
    %238 = vector.broadcast %cst_68 : f32 to vector<8x512xf32>
    %239 = arith.divf %238, %237 : vector<8x512xf32>
    %cst_69 = arith.constant 1.06140542 : f32
    %240 = vector.broadcast %cst_69 : f32 to vector<8x512xf32>
    %241 = arith.mulf %240, %239 : vector<8x512xf32>
    %cst_70 = arith.constant -1.45315206 : f32
    %242 = vector.broadcast %cst_70 : f32 to vector<8x512xf32>
    %243 = arith.addf %241, %242 : vector<8x512xf32>
    %244 = arith.mulf %243, %239 : vector<8x512xf32>
    %cst_71 = arith.constant 1.42141378 : f32
    %245 = vector.broadcast %cst_71 : f32 to vector<8x512xf32>
    %246 = arith.addf %244, %245 : vector<8x512xf32>
    %247 = arith.mulf %246, %239 : vector<8x512xf32>
    %cst_72 = arith.constant -0.284496725 : f32
    %248 = vector.broadcast %cst_72 : f32 to vector<8x512xf32>
    %249 = arith.addf %247, %248 : vector<8x512xf32>
    %250 = arith.mulf %249, %239 : vector<8x512xf32>
    %cst_73 = arith.constant 0.254829586 : f32
    %251 = vector.broadcast %cst_73 : f32 to vector<8x512xf32>
    %252 = arith.addf %250, %251 : vector<8x512xf32>
    %253 = arith.mulf %252, %239 : vector<8x512xf32>
    %254 = arith.mulf %233, %233 : vector<8x512xf32>
    %cst_74 = arith.constant 0.000000e+00 : f32
    %255 = vector.broadcast %cst_74 : f32 to vector<8x512xf32>
    %256 = arith.subf %255, %254 : vector<8x512xf32>
    %257 = math.exp %256 : vector<8x512xf32>
    %258 = arith.mulf %253, %257 : vector<8x512xf32>
    %cst_75 = arith.constant 1.000000e+00 : f32
    %259 = vector.broadcast %cst_75 : f32 to vector<8x512xf32>
    %260 = arith.subf %259, %258 : vector<8x512xf32>
    %cst_76 = arith.constant 0.000000e+00 : f32
    %261 = vector.broadcast %cst_76 : f32 to vector<8x512xf32>
    %262 = arith.cmpf oge, %232, %261 : vector<8x512xf32>
    %cst_77 = arith.constant 0.000000e+00 : f32
    %263 = vector.broadcast %cst_77 : f32 to vector<8x512xf32>
    %264 = arith.subf %263, %260 : vector<8x512xf32>
    %265 = arith.select %262, %260, %264 : vector<8x512xi1>, vector<8x512xf32>
    %cst_78 = arith.constant 1.000000e+00 : f32
    %266 = vector.broadcast %cst_78 : f32 to vector<8x512xf32>
    %267 = arith.addf %266, %265 : vector<8x512xf32>
    %268 = arith.mulf %230, %267 : vector<8x512xf32>
    %c52 = arith.constant 52 : index
    %269 = memref.load %arg3[%c52] : memref<65xf32, #tpu.memory_space<smem>>
    %270 = vector.broadcast %269 : f32 to vector<8x512xf32>
    %271 = arith.mulf %268, %270 : vector<8x512xf32>
    %272 = arith.addf %218, %271 : vector<8x512xf32>
    %c5 = arith.constant 5 : index
    %273 = memref.load %arg3[%c5] : memref<65xf32, #tpu.memory_space<smem>>
    %274 = vector.broadcast %273 : f32 to vector<8x512xf32>
    %275 = arith.mulf %0, %274 : vector<8x512xf32>
    %c21 = arith.constant 21 : index
    %276 = memref.load %arg3[%c21] : memref<65xf32, #tpu.memory_space<smem>>
    %277 = vector.broadcast %276 : f32 to vector<8x512xf32>
    %278 = arith.mulf %1, %277 : vector<8x512xf32>
    %279 = arith.addf %275, %278 : vector<8x512xf32>
    %c37 = arith.constant 37 : index
    %280 = memref.load %arg3[%c37] : memref<65xf32, #tpu.memory_space<smem>>
    %281 = vector.broadcast %280 : f32 to vector<8x512xf32>
    %282 = arith.addf %279, %281 : vector<8x512xf32>
    %cst_79 = arith.constant 5.000000e-01 : f32
    %283 = vector.broadcast %cst_79 : f32 to vector<8x512xf32>
    %284 = arith.mulf %283, %282 : vector<8x512xf32>
    %cst_80 = arith.constant 0.707106769 : f32
    %285 = vector.broadcast %cst_80 : f32 to vector<8x512xf32>
    %286 = arith.mulf %282, %285 : vector<8x512xf32>
    %287 = math.absf %286 : vector<8x512xf32>
    %cst_81 = arith.constant 0.327591091 : f32
    %288 = vector.broadcast %cst_81 : f32 to vector<8x512xf32>
    %289 = arith.mulf %288, %287 : vector<8x512xf32>
    %cst_82 = arith.constant 1.000000e+00 : f32
    %290 = vector.broadcast %cst_82 : f32 to vector<8x512xf32>
    %291 = arith.addf %290, %289 : vector<8x512xf32>
    %cst_83 = arith.constant 1.000000e+00 : f32
    %292 = vector.broadcast %cst_83 : f32 to vector<8x512xf32>
    %293 = arith.divf %292, %291 : vector<8x512xf32>
    %cst_84 = arith.constant 1.06140542 : f32
    %294 = vector.broadcast %cst_84 : f32 to vector<8x512xf32>
    %295 = arith.mulf %294, %293 : vector<8x512xf32>
    %cst_85 = arith.constant -1.45315206 : f32
    %296 = vector.broadcast %cst_85 : f32 to vector<8x512xf32>
    %297 = arith.addf %295, %296 : vector<8x512xf32>
    %298 = arith.mulf %297, %293 : vector<8x512xf32>
    %cst_86 = arith.constant 1.42141378 : f32
    %299 = vector.broadcast %cst_86 : f32 to vector<8x512xf32>
    %300 = arith.addf %298, %299 : vector<8x512xf32>
    %301 = arith.mulf %300, %293 : vector<8x512xf32>
    %cst_87 = arith.constant -0.284496725 : f32
    %302 = vector.broadcast %cst_87 : f32 to vector<8x512xf32>
    %303 = arith.addf %301, %302 : vector<8x512xf32>
    %304 = arith.mulf %303, %293 : vector<8x512xf32>
    %cst_88 = arith.constant 0.254829586 : f32
    %305 = vector.broadcast %cst_88 : f32 to vector<8x512xf32>
    %306 = arith.addf %304, %305 : vector<8x512xf32>
    %307 = arith.mulf %306, %293 : vector<8x512xf32>
    %308 = arith.mulf %287, %287 : vector<8x512xf32>
    %cst_89 = arith.constant 0.000000e+00 : f32
    %309 = vector.broadcast %cst_89 : f32 to vector<8x512xf32>
    %310 = arith.subf %309, %308 : vector<8x512xf32>
    %311 = math.exp %310 : vector<8x512xf32>
    %312 = arith.mulf %307, %311 : vector<8x512xf32>
    %cst_90 = arith.constant 1.000000e+00 : f32
    %313 = vector.broadcast %cst_90 : f32 to vector<8x512xf32>
    %314 = arith.subf %313, %312 : vector<8x512xf32>
    %cst_91 = arith.constant 0.000000e+00 : f32
    %315 = vector.broadcast %cst_91 : f32 to vector<8x512xf32>
    %316 = arith.cmpf oge, %286, %315 : vector<8x512xf32>
    %cst_92 = arith.constant 0.000000e+00 : f32
    %317 = vector.broadcast %cst_92 : f32 to vector<8x512xf32>
    %318 = arith.subf %317, %314 : vector<8x512xf32>
    %319 = arith.select %316, %314, %318 : vector<8x512xi1>, vector<8x512xf32>
    %cst_93 = arith.constant 1.000000e+00 : f32
    %320 = vector.broadcast %cst_93 : f32 to vector<8x512xf32>
    %321 = arith.addf %320, %319 : vector<8x512xf32>
    %322 = arith.mulf %284, %321 : vector<8x512xf32>
    %c53 = arith.constant 53 : index
    %323 = memref.load %arg3[%c53] : memref<65xf32, #tpu.memory_space<smem>>
    %324 = vector.broadcast %323 : f32 to vector<8x512xf32>
    %325 = arith.mulf %322, %324 : vector<8x512xf32>
    %326 = arith.addf %272, %325 : vector<8x512xf32>
    %c6 = arith.constant 6 : index
    %327 = memref.load %arg3[%c6] : memref<65xf32, #tpu.memory_space<smem>>
    %328 = vector.broadcast %327 : f32 to vector<8x512xf32>
    %329 = arith.mulf %0, %328 : vector<8x512xf32>
    %c22 = arith.constant 22 : index
    %330 = memref.load %arg3[%c22] : memref<65xf32, #tpu.memory_space<smem>>
    %331 = vector.broadcast %330 : f32 to vector<8x512xf32>
    %332 = arith.mulf %1, %331 : vector<8x512xf32>
    %333 = arith.addf %329, %332 : vector<8x512xf32>
    %c38 = arith.constant 38 : index
    %334 = memref.load %arg3[%c38] : memref<65xf32, #tpu.memory_space<smem>>
    %335 = vector.broadcast %334 : f32 to vector<8x512xf32>
    %336 = arith.addf %333, %335 : vector<8x512xf32>
    %cst_94 = arith.constant 5.000000e-01 : f32
    %337 = vector.broadcast %cst_94 : f32 to vector<8x512xf32>
    %338 = arith.mulf %337, %336 : vector<8x512xf32>
    %cst_95 = arith.constant 0.707106769 : f32
    %339 = vector.broadcast %cst_95 : f32 to vector<8x512xf32>
    %340 = arith.mulf %336, %339 : vector<8x512xf32>
    %341 = math.absf %340 : vector<8x512xf32>
    %cst_96 = arith.constant 0.327591091 : f32
    %342 = vector.broadcast %cst_96 : f32 to vector<8x512xf32>
    %343 = arith.mulf %342, %341 : vector<8x512xf32>
    %cst_97 = arith.constant 1.000000e+00 : f32
    %344 = vector.broadcast %cst_97 : f32 to vector<8x512xf32>
    %345 = arith.addf %344, %343 : vector<8x512xf32>
    %cst_98 = arith.constant 1.000000e+00 : f32
    %346 = vector.broadcast %cst_98 : f32 to vector<8x512xf32>
    %347 = arith.divf %346, %345 : vector<8x512xf32>
    %cst_99 = arith.constant 1.06140542 : f32
    %348 = vector.broadcast %cst_99 : f32 to vector<8x512xf32>
    %349 = arith.mulf %348, %347 : vector<8x512xf32>
    %cst_100 = arith.constant -1.45315206 : f32
    %350 = vector.broadcast %cst_100 : f32 to vector<8x512xf32>
    %351 = arith.addf %349, %350 : vector<8x512xf32>
    %352 = arith.mulf %351, %347 : vector<8x512xf32>
    %cst_101 = arith.constant 1.42141378 : f32
    %353 = vector.broadcast %cst_101 : f32 to vector<8x512xf32>
    %354 = arith.addf %352, %353 : vector<8x512xf32>
    %355 = arith.mulf %354, %347 : vector<8x512xf32>
    %cst_102 = arith.constant -0.284496725 : f32
    %356 = vector.broadcast %cst_102 : f32 to vector<8x512xf32>
    %357 = arith.addf %355, %356 : vector<8x512xf32>
    %358 = arith.mulf %357, %347 : vector<8x512xf32>
    %cst_103 = arith.constant 0.254829586 : f32
    %359 = vector.broadcast %cst_103 : f32 to vector<8x512xf32>
    %360 = arith.addf %358, %359 : vector<8x512xf32>
    %361 = arith.mulf %360, %347 : vector<8x512xf32>
    %362 = arith.mulf %341, %341 : vector<8x512xf32>
    %cst_104 = arith.constant 0.000000e+00 : f32
    %363 = vector.broadcast %cst_104 : f32 to vector<8x512xf32>
    %364 = arith.subf %363, %362 : vector<8x512xf32>
    %365 = math.exp %364 : vector<8x512xf32>
    %366 = arith.mulf %361, %365 : vector<8x512xf32>
    %cst_105 = arith.constant 1.000000e+00 : f32
    %367 = vector.broadcast %cst_105 : f32 to vector<8x512xf32>
    %368 = arith.subf %367, %366 : vector<8x512xf32>
    %cst_106 = arith.constant 0.000000e+00 : f32
    %369 = vector.broadcast %cst_106 : f32 to vector<8x512xf32>
    %370 = arith.cmpf oge, %340, %369 : vector<8x512xf32>
    %cst_107 = arith.constant 0.000000e+00 : f32
    %371 = vector.broadcast %cst_107 : f32 to vector<8x512xf32>
    %372 = arith.subf %371, %368 : vector<8x512xf32>
    %373 = arith.select %370, %368, %372 : vector<8x512xi1>, vector<8x512xf32>
    %cst_108 = arith.constant 1.000000e+00 : f32
    %374 = vector.broadcast %cst_108 : f32 to vector<8x512xf32>
    %375 = arith.addf %374, %373 : vector<8x512xf32>
    %376 = arith.mulf %338, %375 : vector<8x512xf32>
    %c54 = arith.constant 54 : index
    %377 = memref.load %arg3[%c54] : memref<65xf32, #tpu.memory_space<smem>>
    %378 = vector.broadcast %377 : f32 to vector<8x512xf32>
    %379 = arith.mulf %376, %378 : vector<8x512xf32>
    %380 = arith.addf %326, %379 : vector<8x512xf32>
    %c7 = arith.constant 7 : index
    %381 = memref.load %arg3[%c7] : memref<65xf32, #tpu.memory_space<smem>>
    %382 = vector.broadcast %381 : f32 to vector<8x512xf32>
    %383 = arith.mulf %0, %382 : vector<8x512xf32>
    %c23 = arith.constant 23 : index
    %384 = memref.load %arg3[%c23] : memref<65xf32, #tpu.memory_space<smem>>
    %385 = vector.broadcast %384 : f32 to vector<8x512xf32>
    %386 = arith.mulf %1, %385 : vector<8x512xf32>
    %387 = arith.addf %383, %386 : vector<8x512xf32>
    %c39 = arith.constant 39 : index
    %388 = memref.load %arg3[%c39] : memref<65xf32, #tpu.memory_space<smem>>
    %389 = vector.broadcast %388 : f32 to vector<8x512xf32>
    %390 = arith.addf %387, %389 : vector<8x512xf32>
    %cst_109 = arith.constant 5.000000e-01 : f32
    %391 = vector.broadcast %cst_109 : f32 to vector<8x512xf32>
    %392 = arith.mulf %391, %390 : vector<8x512xf32>
    %cst_110 = arith.constant 0.707106769 : f32
    %393 = vector.broadcast %cst_110 : f32 to vector<8x512xf32>
    %394 = arith.mulf %390, %393 : vector<8x512xf32>
    %395 = math.absf %394 : vector<8x512xf32>
    %cst_111 = arith.constant 0.327591091 : f32
    %396 = vector.broadcast %cst_111 : f32 to vector<8x512xf32>
    %397 = arith.mulf %396, %395 : vector<8x512xf32>
    %cst_112 = arith.constant 1.000000e+00 : f32
    %398 = vector.broadcast %cst_112 : f32 to vector<8x512xf32>
    %399 = arith.addf %398, %397 : vector<8x512xf32>
    %cst_113 = arith.constant 1.000000e+00 : f32
    %400 = vector.broadcast %cst_113 : f32 to vector<8x512xf32>
    %401 = arith.divf %400, %399 : vector<8x512xf32>
    %cst_114 = arith.constant 1.06140542 : f32
    %402 = vector.broadcast %cst_114 : f32 to vector<8x512xf32>
    %403 = arith.mulf %402, %401 : vector<8x512xf32>
    %cst_115 = arith.constant -1.45315206 : f32
    %404 = vector.broadcast %cst_115 : f32 to vector<8x512xf32>
    %405 = arith.addf %403, %404 : vector<8x512xf32>
    %406 = arith.mulf %405, %401 : vector<8x512xf32>
    %cst_116 = arith.constant 1.42141378 : f32
    %407 = vector.broadcast %cst_116 : f32 to vector<8x512xf32>
    %408 = arith.addf %406, %407 : vector<8x512xf32>
    %409 = arith.mulf %408, %401 : vector<8x512xf32>
    %cst_117 = arith.constant -0.284496725 : f32
    %410 = vector.broadcast %cst_117 : f32 to vector<8x512xf32>
    %411 = arith.addf %409, %410 : vector<8x512xf32>
    %412 = arith.mulf %411, %401 : vector<8x512xf32>
    %cst_118 = arith.constant 0.254829586 : f32
    %413 = vector.broadcast %cst_118 : f32 to vector<8x512xf32>
    %414 = arith.addf %412, %413 : vector<8x512xf32>
    %415 = arith.mulf %414, %401 : vector<8x512xf32>
    %416 = arith.mulf %395, %395 : vector<8x512xf32>
    %cst_119 = arith.constant 0.000000e+00 : f32
    %417 = vector.broadcast %cst_119 : f32 to vector<8x512xf32>
    %418 = arith.subf %417, %416 : vector<8x512xf32>
    %419 = math.exp %418 : vector<8x512xf32>
    %420 = arith.mulf %415, %419 : vector<8x512xf32>
    %cst_120 = arith.constant 1.000000e+00 : f32
    %421 = vector.broadcast %cst_120 : f32 to vector<8x512xf32>
    %422 = arith.subf %421, %420 : vector<8x512xf32>
    %cst_121 = arith.constant 0.000000e+00 : f32
    %423 = vector.broadcast %cst_121 : f32 to vector<8x512xf32>
    %424 = arith.cmpf oge, %394, %423 : vector<8x512xf32>
    %cst_122 = arith.constant 0.000000e+00 : f32
    %425 = vector.broadcast %cst_122 : f32 to vector<8x512xf32>
    %426 = arith.subf %425, %422 : vector<8x512xf32>
    %427 = arith.select %424, %422, %426 : vector<8x512xi1>, vector<8x512xf32>
    %cst_123 = arith.constant 1.000000e+00 : f32
    %428 = vector.broadcast %cst_123 : f32 to vector<8x512xf32>
    %429 = arith.addf %428, %427 : vector<8x512xf32>
    %430 = arith.mulf %392, %429 : vector<8x512xf32>
    %c55 = arith.constant 55 : index
    %431 = memref.load %arg3[%c55] : memref<65xf32, #tpu.memory_space<smem>>
    %432 = vector.broadcast %431 : f32 to vector<8x512xf32>
    %433 = arith.mulf %430, %432 : vector<8x512xf32>
    %434 = arith.addf %380, %433 : vector<8x512xf32>
    %c8 = arith.constant 8 : index
    %435 = memref.load %arg3[%c8] : memref<65xf32, #tpu.memory_space<smem>>
    %436 = vector.broadcast %435 : f32 to vector<8x512xf32>
    %437 = arith.mulf %0, %436 : vector<8x512xf32>
    %c24 = arith.constant 24 : index
    %438 = memref.load %arg3[%c24] : memref<65xf32, #tpu.memory_space<smem>>
    %439 = vector.broadcast %438 : f32 to vector<8x512xf32>
    %440 = arith.mulf %1, %439 : vector<8x512xf32>
    %441 = arith.addf %437, %440 : vector<8x512xf32>
    %c40 = arith.constant 40 : index
    %442 = memref.load %arg3[%c40] : memref<65xf32, #tpu.memory_space<smem>>
    %443 = vector.broadcast %442 : f32 to vector<8x512xf32>
    %444 = arith.addf %441, %443 : vector<8x512xf32>
    %cst_124 = arith.constant 5.000000e-01 : f32
    %445 = vector.broadcast %cst_124 : f32 to vector<8x512xf32>
    %446 = arith.mulf %445, %444 : vector<8x512xf32>
    %cst_125 = arith.constant 0.707106769 : f32
    %447 = vector.broadcast %cst_125 : f32 to vector<8x512xf32>
    %448 = arith.mulf %444, %447 : vector<8x512xf32>
    %449 = math.absf %448 : vector<8x512xf32>
    %cst_126 = arith.constant 0.327591091 : f32
    %450 = vector.broadcast %cst_126 : f32 to vector<8x512xf32>
    %451 = arith.mulf %450, %449 : vector<8x512xf32>
    %cst_127 = arith.constant 1.000000e+00 : f32
    %452 = vector.broadcast %cst_127 : f32 to vector<8x512xf32>
    %453 = arith.addf %452, %451 : vector<8x512xf32>
    %cst_128 = arith.constant 1.000000e+00 : f32
    %454 = vector.broadcast %cst_128 : f32 to vector<8x512xf32>
    %455 = arith.divf %454, %453 : vector<8x512xf32>
    %cst_129 = arith.constant 1.06140542 : f32
    %456 = vector.broadcast %cst_129 : f32 to vector<8x512xf32>
    %457 = arith.mulf %456, %455 : vector<8x512xf32>
    %cst_130 = arith.constant -1.45315206 : f32
    %458 = vector.broadcast %cst_130 : f32 to vector<8x512xf32>
    %459 = arith.addf %457, %458 : vector<8x512xf32>
    %460 = arith.mulf %459, %455 : vector<8x512xf32>
    %cst_131 = arith.constant 1.42141378 : f32
    %461 = vector.broadcast %cst_131 : f32 to vector<8x512xf32>
    %462 = arith.addf %460, %461 : vector<8x512xf32>
    %463 = arith.mulf %462, %455 : vector<8x512xf32>
    %cst_132 = arith.constant -0.284496725 : f32
    %464 = vector.broadcast %cst_132 : f32 to vector<8x512xf32>
    %465 = arith.addf %463, %464 : vector<8x512xf32>
    %466 = arith.mulf %465, %455 : vector<8x512xf32>
    %cst_133 = arith.constant 0.254829586 : f32
    %467 = vector.broadcast %cst_133 : f32 to vector<8x512xf32>
    %468 = arith.addf %466, %467 : vector<8x512xf32>
    %469 = arith.mulf %468, %455 : vector<8x512xf32>
    %470 = arith.mulf %449, %449 : vector<8x512xf32>
    %cst_134 = arith.constant 0.000000e+00 : f32
    %471 = vector.broadcast %cst_134 : f32 to vector<8x512xf32>
    %472 = arith.subf %471, %470 : vector<8x512xf32>
    %473 = math.exp %472 : vector<8x512xf32>
    %474 = arith.mulf %469, %473 : vector<8x512xf32>
    %cst_135 = arith.constant 1.000000e+00 : f32
    %475 = vector.broadcast %cst_135 : f32 to vector<8x512xf32>
    %476 = arith.subf %475, %474 : vector<8x512xf32>
    %cst_136 = arith.constant 0.000000e+00 : f32
    %477 = vector.broadcast %cst_136 : f32 to vector<8x512xf32>
    %478 = arith.cmpf oge, %448, %477 : vector<8x512xf32>
    %cst_137 = arith.constant 0.000000e+00 : f32
    %479 = vector.broadcast %cst_137 : f32 to vector<8x512xf32>
    %480 = arith.subf %479, %476 : vector<8x512xf32>
    %481 = arith.select %478, %476, %480 : vector<8x512xi1>, vector<8x512xf32>
    %cst_138 = arith.constant 1.000000e+00 : f32
    %482 = vector.broadcast %cst_138 : f32 to vector<8x512xf32>
    %483 = arith.addf %482, %481 : vector<8x512xf32>
    %484 = arith.mulf %446, %483 : vector<8x512xf32>
    %c56 = arith.constant 56 : index
    %485 = memref.load %arg3[%c56] : memref<65xf32, #tpu.memory_space<smem>>
    %486 = vector.broadcast %485 : f32 to vector<8x512xf32>
    %487 = arith.mulf %484, %486 : vector<8x512xf32>
    %488 = arith.addf %434, %487 : vector<8x512xf32>
    %c9 = arith.constant 9 : index
    %489 = memref.load %arg3[%c9] : memref<65xf32, #tpu.memory_space<smem>>
    %490 = vector.broadcast %489 : f32 to vector<8x512xf32>
    %491 = arith.mulf %0, %490 : vector<8x512xf32>
    %c25 = arith.constant 25 : index
    %492 = memref.load %arg3[%c25] : memref<65xf32, #tpu.memory_space<smem>>
    %493 = vector.broadcast %492 : f32 to vector<8x512xf32>
    %494 = arith.mulf %1, %493 : vector<8x512xf32>
    %495 = arith.addf %491, %494 : vector<8x512xf32>
    %c41 = arith.constant 41 : index
    %496 = memref.load %arg3[%c41] : memref<65xf32, #tpu.memory_space<smem>>
    %497 = vector.broadcast %496 : f32 to vector<8x512xf32>
    %498 = arith.addf %495, %497 : vector<8x512xf32>
    %cst_139 = arith.constant 5.000000e-01 : f32
    %499 = vector.broadcast %cst_139 : f32 to vector<8x512xf32>
    %500 = arith.mulf %499, %498 : vector<8x512xf32>
    %cst_140 = arith.constant 0.707106769 : f32
    %501 = vector.broadcast %cst_140 : f32 to vector<8x512xf32>
    %502 = arith.mulf %498, %501 : vector<8x512xf32>
    %503 = math.absf %502 : vector<8x512xf32>
    %cst_141 = arith.constant 0.327591091 : f32
    %504 = vector.broadcast %cst_141 : f32 to vector<8x512xf32>
    %505 = arith.mulf %504, %503 : vector<8x512xf32>
    %cst_142 = arith.constant 1.000000e+00 : f32
    %506 = vector.broadcast %cst_142 : f32 to vector<8x512xf32>
    %507 = arith.addf %506, %505 : vector<8x512xf32>
    %cst_143 = arith.constant 1.000000e+00 : f32
    %508 = vector.broadcast %cst_143 : f32 to vector<8x512xf32>
    %509 = arith.divf %508, %507 : vector<8x512xf32>
    %cst_144 = arith.constant 1.06140542 : f32
    %510 = vector.broadcast %cst_144 : f32 to vector<8x512xf32>
    %511 = arith.mulf %510, %509 : vector<8x512xf32>
    %cst_145 = arith.constant -1.45315206 : f32
    %512 = vector.broadcast %cst_145 : f32 to vector<8x512xf32>
    %513 = arith.addf %511, %512 : vector<8x512xf32>
    %514 = arith.mulf %513, %509 : vector<8x512xf32>
    %cst_146 = arith.constant 1.42141378 : f32
    %515 = vector.broadcast %cst_146 : f32 to vector<8x512xf32>
    %516 = arith.addf %514, %515 : vector<8x512xf32>
    %517 = arith.mulf %516, %509 : vector<8x512xf32>
    %cst_147 = arith.constant -0.284496725 : f32
    %518 = vector.broadcast %cst_147 : f32 to vector<8x512xf32>
    %519 = arith.addf %517, %518 : vector<8x512xf32>
    %520 = arith.mulf %519, %509 : vector<8x512xf32>
    %cst_148 = arith.constant 0.254829586 : f32
    %521 = vector.broadcast %cst_148 : f32 to vector<8x512xf32>
    %522 = arith.addf %520, %521 : vector<8x512xf32>
    %523 = arith.mulf %522, %509 : vector<8x512xf32>
    %524 = arith.mulf %503, %503 : vector<8x512xf32>
    %cst_149 = arith.constant 0.000000e+00 : f32
    %525 = vector.broadcast %cst_149 : f32 to vector<8x512xf32>
    %526 = arith.subf %525, %524 : vector<8x512xf32>
    %527 = math.exp %526 : vector<8x512xf32>
    %528 = arith.mulf %523, %527 : vector<8x512xf32>
    %cst_150 = arith.constant 1.000000e+00 : f32
    %529 = vector.broadcast %cst_150 : f32 to vector<8x512xf32>
    %530 = arith.subf %529, %528 : vector<8x512xf32>
    %cst_151 = arith.constant 0.000000e+00 : f32
    %531 = vector.broadcast %cst_151 : f32 to vector<8x512xf32>
    %532 = arith.cmpf oge, %502, %531 : vector<8x512xf32>
    %cst_152 = arith.constant 0.000000e+00 : f32
    %533 = vector.broadcast %cst_152 : f32 to vector<8x512xf32>
    %534 = arith.subf %533, %530 : vector<8x512xf32>
    %535 = arith.select %532, %530, %534 : vector<8x512xi1>, vector<8x512xf32>
    %cst_153 = arith.constant 1.000000e+00 : f32
    %536 = vector.broadcast %cst_153 : f32 to vector<8x512xf32>
    %537 = arith.addf %536, %535 : vector<8x512xf32>
    %538 = arith.mulf %500, %537 : vector<8x512xf32>
    %c57 = arith.constant 57 : index
    %539 = memref.load %arg3[%c57] : memref<65xf32, #tpu.memory_space<smem>>
    %540 = vector.broadcast %539 : f32 to vector<8x512xf32>
    %541 = arith.mulf %538, %540 : vector<8x512xf32>
    %542 = arith.addf %488, %541 : vector<8x512xf32>
    %c10 = arith.constant 10 : index
    %543 = memref.load %arg3[%c10] : memref<65xf32, #tpu.memory_space<smem>>
    %544 = vector.broadcast %543 : f32 to vector<8x512xf32>
    %545 = arith.mulf %0, %544 : vector<8x512xf32>
    %c26 = arith.constant 26 : index
    %546 = memref.load %arg3[%c26] : memref<65xf32, #tpu.memory_space<smem>>
    %547 = vector.broadcast %546 : f32 to vector<8x512xf32>
    %548 = arith.mulf %1, %547 : vector<8x512xf32>
    %549 = arith.addf %545, %548 : vector<8x512xf32>
    %c42 = arith.constant 42 : index
    %550 = memref.load %arg3[%c42] : memref<65xf32, #tpu.memory_space<smem>>
    %551 = vector.broadcast %550 : f32 to vector<8x512xf32>
    %552 = arith.addf %549, %551 : vector<8x512xf32>
    %cst_154 = arith.constant 5.000000e-01 : f32
    %553 = vector.broadcast %cst_154 : f32 to vector<8x512xf32>
    %554 = arith.mulf %553, %552 : vector<8x512xf32>
    %cst_155 = arith.constant 0.707106769 : f32
    %555 = vector.broadcast %cst_155 : f32 to vector<8x512xf32>
    %556 = arith.mulf %552, %555 : vector<8x512xf32>
    %557 = math.absf %556 : vector<8x512xf32>
    %cst_156 = arith.constant 0.327591091 : f32
    %558 = vector.broadcast %cst_156 : f32 to vector<8x512xf32>
    %559 = arith.mulf %558, %557 : vector<8x512xf32>
    %cst_157 = arith.constant 1.000000e+00 : f32
    %560 = vector.broadcast %cst_157 : f32 to vector<8x512xf32>
    %561 = arith.addf %560, %559 : vector<8x512xf32>
    %cst_158 = arith.constant 1.000000e+00 : f32
    %562 = vector.broadcast %cst_158 : f32 to vector<8x512xf32>
    %563 = arith.divf %562, %561 : vector<8x512xf32>
    %cst_159 = arith.constant 1.06140542 : f32
    %564 = vector.broadcast %cst_159 : f32 to vector<8x512xf32>
    %565 = arith.mulf %564, %563 : vector<8x512xf32>
    %cst_160 = arith.constant -1.45315206 : f32
    %566 = vector.broadcast %cst_160 : f32 to vector<8x512xf32>
    %567 = arith.addf %565, %566 : vector<8x512xf32>
    %568 = arith.mulf %567, %563 : vector<8x512xf32>
    %cst_161 = arith.constant 1.42141378 : f32
    %569 = vector.broadcast %cst_161 : f32 to vector<8x512xf32>
    %570 = arith.addf %568, %569 : vector<8x512xf32>
    %571 = arith.mulf %570, %563 : vector<8x512xf32>
    %cst_162 = arith.constant -0.284496725 : f32
    %572 = vector.broadcast %cst_162 : f32 to vector<8x512xf32>
    %573 = arith.addf %571, %572 : vector<8x512xf32>
    %574 = arith.mulf %573, %563 : vector<8x512xf32>
    %cst_163 = arith.constant 0.254829586 : f32
    %575 = vector.broadcast %cst_163 : f32 to vector<8x512xf32>
    %576 = arith.addf %574, %575 : vector<8x512xf32>
    %577 = arith.mulf %576, %563 : vector<8x512xf32>
    %578 = arith.mulf %557, %557 : vector<8x512xf32>
    %cst_164 = arith.constant 0.000000e+00 : f32
    %579 = vector.broadcast %cst_164 : f32 to vector<8x512xf32>
    %580 = arith.subf %579, %578 : vector<8x512xf32>
    %581 = math.exp %580 : vector<8x512xf32>
    %582 = arith.mulf %577, %581 : vector<8x512xf32>
    %cst_165 = arith.constant 1.000000e+00 : f32
    %583 = vector.broadcast %cst_165 : f32 to vector<8x512xf32>
    %584 = arith.subf %583, %582 : vector<8x512xf32>
    %cst_166 = arith.constant 0.000000e+00 : f32
    %585 = vector.broadcast %cst_166 : f32 to vector<8x512xf32>
    %586 = arith.cmpf oge, %556, %585 : vector<8x512xf32>
    %cst_167 = arith.constant 0.000000e+00 : f32
    %587 = vector.broadcast %cst_167 : f32 to vector<8x512xf32>
    %588 = arith.subf %587, %584 : vector<8x512xf32>
    %589 = arith.select %586, %584, %588 : vector<8x512xi1>, vector<8x512xf32>
    %cst_168 = arith.constant 1.000000e+00 : f32
    %590 = vector.broadcast %cst_168 : f32 to vector<8x512xf32>
    %591 = arith.addf %590, %589 : vector<8x512xf32>
    %592 = arith.mulf %554, %591 : vector<8x512xf32>
    %c58 = arith.constant 58 : index
    %593 = memref.load %arg3[%c58] : memref<65xf32, #tpu.memory_space<smem>>
    %594 = vector.broadcast %593 : f32 to vector<8x512xf32>
    %595 = arith.mulf %592, %594 : vector<8x512xf32>
    %596 = arith.addf %542, %595 : vector<8x512xf32>
    %c11 = arith.constant 11 : index
    %597 = memref.load %arg3[%c11] : memref<65xf32, #tpu.memory_space<smem>>
    %598 = vector.broadcast %597 : f32 to vector<8x512xf32>
    %599 = arith.mulf %0, %598 : vector<8x512xf32>
    %c27 = arith.constant 27 : index
    %600 = memref.load %arg3[%c27] : memref<65xf32, #tpu.memory_space<smem>>
    %601 = vector.broadcast %600 : f32 to vector<8x512xf32>
    %602 = arith.mulf %1, %601 : vector<8x512xf32>
    %603 = arith.addf %599, %602 : vector<8x512xf32>
    %c43 = arith.constant 43 : index
    %604 = memref.load %arg3[%c43] : memref<65xf32, #tpu.memory_space<smem>>
    %605 = vector.broadcast %604 : f32 to vector<8x512xf32>
    %606 = arith.addf %603, %605 : vector<8x512xf32>
    %cst_169 = arith.constant 5.000000e-01 : f32
    %607 = vector.broadcast %cst_169 : f32 to vector<8x512xf32>
    %608 = arith.mulf %607, %606 : vector<8x512xf32>
    %cst_170 = arith.constant 0.707106769 : f32
    %609 = vector.broadcast %cst_170 : f32 to vector<8x512xf32>
    %610 = arith.mulf %606, %609 : vector<8x512xf32>
    %611 = math.absf %610 : vector<8x512xf32>
    %cst_171 = arith.constant 0.327591091 : f32
    %612 = vector.broadcast %cst_171 : f32 to vector<8x512xf32>
    %613 = arith.mulf %612, %611 : vector<8x512xf32>
    %cst_172 = arith.constant 1.000000e+00 : f32
    %614 = vector.broadcast %cst_172 : f32 to vector<8x512xf32>
    %615 = arith.addf %614, %613 : vector<8x512xf32>
    %cst_173 = arith.constant 1.000000e+00 : f32
    %616 = vector.broadcast %cst_173 : f32 to vector<8x512xf32>
    %617 = arith.divf %616, %615 : vector<8x512xf32>
    %cst_174 = arith.constant 1.06140542 : f32
    %618 = vector.broadcast %cst_174 : f32 to vector<8x512xf32>
    %619 = arith.mulf %618, %617 : vector<8x512xf32>
    %cst_175 = arith.constant -1.45315206 : f32
    %620 = vector.broadcast %cst_175 : f32 to vector<8x512xf32>
    %621 = arith.addf %619, %620 : vector<8x512xf32>
    %622 = arith.mulf %621, %617 : vector<8x512xf32>
    %cst_176 = arith.constant 1.42141378 : f32
    %623 = vector.broadcast %cst_176 : f32 to vector<8x512xf32>
    %624 = arith.addf %622, %623 : vector<8x512xf32>
    %625 = arith.mulf %624, %617 : vector<8x512xf32>
    %cst_177 = arith.constant -0.284496725 : f32
    %626 = vector.broadcast %cst_177 : f32 to vector<8x512xf32>
    %627 = arith.addf %625, %626 : vector<8x512xf32>
    %628 = arith.mulf %627, %617 : vector<8x512xf32>
    %cst_178 = arith.constant 0.254829586 : f32
    %629 = vector.broadcast %cst_178 : f32 to vector<8x512xf32>
    %630 = arith.addf %628, %629 : vector<8x512xf32>
    %631 = arith.mulf %630, %617 : vector<8x512xf32>
    %632 = arith.mulf %611, %611 : vector<8x512xf32>
    %cst_179 = arith.constant 0.000000e+00 : f32
    %633 = vector.broadcast %cst_179 : f32 to vector<8x512xf32>
    %634 = arith.subf %633, %632 : vector<8x512xf32>
    %635 = math.exp %634 : vector<8x512xf32>
    %636 = arith.mulf %631, %635 : vector<8x512xf32>
    %cst_180 = arith.constant 1.000000e+00 : f32
    %637 = vector.broadcast %cst_180 : f32 to vector<8x512xf32>
    %638 = arith.subf %637, %636 : vector<8x512xf32>
    %cst_181 = arith.constant 0.000000e+00 : f32
    %639 = vector.broadcast %cst_181 : f32 to vector<8x512xf32>
    %640 = arith.cmpf oge, %610, %639 : vector<8x512xf32>
    %cst_182 = arith.constant 0.000000e+00 : f32
    %641 = vector.broadcast %cst_182 : f32 to vector<8x512xf32>
    %642 = arith.subf %641, %638 : vector<8x512xf32>
    %643 = arith.select %640, %638, %642 : vector<8x512xi1>, vector<8x512xf32>
    %cst_183 = arith.constant 1.000000e+00 : f32
    %644 = vector.broadcast %cst_183 : f32 to vector<8x512xf32>
    %645 = arith.addf %644, %643 : vector<8x512xf32>
    %646 = arith.mulf %608, %645 : vector<8x512xf32>
    %c59 = arith.constant 59 : index
    %647 = memref.load %arg3[%c59] : memref<65xf32, #tpu.memory_space<smem>>
    %648 = vector.broadcast %647 : f32 to vector<8x512xf32>
    %649 = arith.mulf %646, %648 : vector<8x512xf32>
    %650 = arith.addf %596, %649 : vector<8x512xf32>
    %c12 = arith.constant 12 : index
    %651 = memref.load %arg3[%c12] : memref<65xf32, #tpu.memory_space<smem>>
    %652 = vector.broadcast %651 : f32 to vector<8x512xf32>
    %653 = arith.mulf %0, %652 : vector<8x512xf32>
    %c28 = arith.constant 28 : index
    %654 = memref.load %arg3[%c28] : memref<65xf32, #tpu.memory_space<smem>>
    %655 = vector.broadcast %654 : f32 to vector<8x512xf32>
    %656 = arith.mulf %1, %655 : vector<8x512xf32>
    %657 = arith.addf %653, %656 : vector<8x512xf32>
    %c44 = arith.constant 44 : index
    %658 = memref.load %arg3[%c44] : memref<65xf32, #tpu.memory_space<smem>>
    %659 = vector.broadcast %658 : f32 to vector<8x512xf32>
    %660 = arith.addf %657, %659 : vector<8x512xf32>
    %cst_184 = arith.constant 5.000000e-01 : f32
    %661 = vector.broadcast %cst_184 : f32 to vector<8x512xf32>
    %662 = arith.mulf %661, %660 : vector<8x512xf32>
    %cst_185 = arith.constant 0.707106769 : f32
    %663 = vector.broadcast %cst_185 : f32 to vector<8x512xf32>
    %664 = arith.mulf %660, %663 : vector<8x512xf32>
    %665 = math.absf %664 : vector<8x512xf32>
    %cst_186 = arith.constant 0.327591091 : f32
    %666 = vector.broadcast %cst_186 : f32 to vector<8x512xf32>
    %667 = arith.mulf %666, %665 : vector<8x512xf32>
    %cst_187 = arith.constant 1.000000e+00 : f32
    %668 = vector.broadcast %cst_187 : f32 to vector<8x512xf32>
    %669 = arith.addf %668, %667 : vector<8x512xf32>
    %cst_188 = arith.constant 1.000000e+00 : f32
    %670 = vector.broadcast %cst_188 : f32 to vector<8x512xf32>
    %671 = arith.divf %670, %669 : vector<8x512xf32>
    %cst_189 = arith.constant 1.06140542 : f32
    %672 = vector.broadcast %cst_189 : f32 to vector<8x512xf32>
    %673 = arith.mulf %672, %671 : vector<8x512xf32>
    %cst_190 = arith.constant -1.45315206 : f32
    %674 = vector.broadcast %cst_190 : f32 to vector<8x512xf32>
    %675 = arith.addf %673, %674 : vector<8x512xf32>
    %676 = arith.mulf %675, %671 : vector<8x512xf32>
    %cst_191 = arith.constant 1.42141378 : f32
    %677 = vector.broadcast %cst_191 : f32 to vector<8x512xf32>
    %678 = arith.addf %676, %677 : vector<8x512xf32>
    %679 = arith.mulf %678, %671 : vector<8x512xf32>
    %cst_192 = arith.constant -0.284496725 : f32
    %680 = vector.broadcast %cst_192 : f32 to vector<8x512xf32>
    %681 = arith.addf %679, %680 : vector<8x512xf32>
    %682 = arith.mulf %681, %671 : vector<8x512xf32>
    %cst_193 = arith.constant 0.254829586 : f32
    %683 = vector.broadcast %cst_193 : f32 to vector<8x512xf32>
    %684 = arith.addf %682, %683 : vector<8x512xf32>
    %685 = arith.mulf %684, %671 : vector<8x512xf32>
    %686 = arith.mulf %665, %665 : vector<8x512xf32>
    %cst_194 = arith.constant 0.000000e+00 : f32
    %687 = vector.broadcast %cst_194 : f32 to vector<8x512xf32>
    %688 = arith.subf %687, %686 : vector<8x512xf32>
    %689 = math.exp %688 : vector<8x512xf32>
    %690 = arith.mulf %685, %689 : vector<8x512xf32>
    %cst_195 = arith.constant 1.000000e+00 : f32
    %691 = vector.broadcast %cst_195 : f32 to vector<8x512xf32>
    %692 = arith.subf %691, %690 : vector<8x512xf32>
    %cst_196 = arith.constant 0.000000e+00 : f32
    %693 = vector.broadcast %cst_196 : f32 to vector<8x512xf32>
    %694 = arith.cmpf oge, %664, %693 : vector<8x512xf32>
    %cst_197 = arith.constant 0.000000e+00 : f32
    %695 = vector.broadcast %cst_197 : f32 to vector<8x512xf32>
    %696 = arith.subf %695, %692 : vector<8x512xf32>
    %697 = arith.select %694, %692, %696 : vector<8x512xi1>, vector<8x512xf32>
    %cst_198 = arith.constant 1.000000e+00 : f32
    %698 = vector.broadcast %cst_198 : f32 to vector<8x512xf32>
    %699 = arith.addf %698, %697 : vector<8x512xf32>
    %700 = arith.mulf %662, %699 : vector<8x512xf32>
    %c60 = arith.constant 60 : index
    %701 = memref.load %arg3[%c60] : memref<65xf32, #tpu.memory_space<smem>>
    %702 = vector.broadcast %701 : f32 to vector<8x512xf32>
    %703 = arith.mulf %700, %702 : vector<8x512xf32>
    %704 = arith.addf %650, %703 : vector<8x512xf32>
    %c13 = arith.constant 13 : index
    %705 = memref.load %arg3[%c13] : memref<65xf32, #tpu.memory_space<smem>>
    %706 = vector.broadcast %705 : f32 to vector<8x512xf32>
    %707 = arith.mulf %0, %706 : vector<8x512xf32>
    %c29 = arith.constant 29 : index
    %708 = memref.load %arg3[%c29] : memref<65xf32, #tpu.memory_space<smem>>
    %709 = vector.broadcast %708 : f32 to vector<8x512xf32>
    %710 = arith.mulf %1, %709 : vector<8x512xf32>
    %711 = arith.addf %707, %710 : vector<8x512xf32>
    %c45 = arith.constant 45 : index
    %712 = memref.load %arg3[%c45] : memref<65xf32, #tpu.memory_space<smem>>
    %713 = vector.broadcast %712 : f32 to vector<8x512xf32>
    %714 = arith.addf %711, %713 : vector<8x512xf32>
    %cst_199 = arith.constant 5.000000e-01 : f32
    %715 = vector.broadcast %cst_199 : f32 to vector<8x512xf32>
    %716 = arith.mulf %715, %714 : vector<8x512xf32>
    %cst_200 = arith.constant 0.707106769 : f32
    %717 = vector.broadcast %cst_200 : f32 to vector<8x512xf32>
    %718 = arith.mulf %714, %717 : vector<8x512xf32>
    %719 = math.absf %718 : vector<8x512xf32>
    %cst_201 = arith.constant 0.327591091 : f32
    %720 = vector.broadcast %cst_201 : f32 to vector<8x512xf32>
    %721 = arith.mulf %720, %719 : vector<8x512xf32>
    %cst_202 = arith.constant 1.000000e+00 : f32
    %722 = vector.broadcast %cst_202 : f32 to vector<8x512xf32>
    %723 = arith.addf %722, %721 : vector<8x512xf32>
    %cst_203 = arith.constant 1.000000e+00 : f32
    %724 = vector.broadcast %cst_203 : f32 to vector<8x512xf32>
    %725 = arith.divf %724, %723 : vector<8x512xf32>
    %cst_204 = arith.constant 1.06140542 : f32
    %726 = vector.broadcast %cst_204 : f32 to vector<8x512xf32>
    %727 = arith.mulf %726, %725 : vector<8x512xf32>
    %cst_205 = arith.constant -1.45315206 : f32
    %728 = vector.broadcast %cst_205 : f32 to vector<8x512xf32>
    %729 = arith.addf %727, %728 : vector<8x512xf32>
    %730 = arith.mulf %729, %725 : vector<8x512xf32>
    %cst_206 = arith.constant 1.42141378 : f32
    %731 = vector.broadcast %cst_206 : f32 to vector<8x512xf32>
    %732 = arith.addf %730, %731 : vector<8x512xf32>
    %733 = arith.mulf %732, %725 : vector<8x512xf32>
    %cst_207 = arith.constant -0.284496725 : f32
    %734 = vector.broadcast %cst_207 : f32 to vector<8x512xf32>
    %735 = arith.addf %733, %734 : vector<8x512xf32>
    %736 = arith.mulf %735, %725 : vector<8x512xf32>
    %cst_208 = arith.constant 0.254829586 : f32
    %737 = vector.broadcast %cst_208 : f32 to vector<8x512xf32>
    %738 = arith.addf %736, %737 : vector<8x512xf32>
    %739 = arith.mulf %738, %725 : vector<8x512xf32>
    %740 = arith.mulf %719, %719 : vector<8x512xf32>
    %cst_209 = arith.constant 0.000000e+00 : f32
    %741 = vector.broadcast %cst_209 : f32 to vector<8x512xf32>
    %742 = arith.subf %741, %740 : vector<8x512xf32>
    %743 = math.exp %742 : vector<8x512xf32>
    %744 = arith.mulf %739, %743 : vector<8x512xf32>
    %cst_210 = arith.constant 1.000000e+00 : f32
    %745 = vector.broadcast %cst_210 : f32 to vector<8x512xf32>
    %746 = arith.subf %745, %744 : vector<8x512xf32>
    %cst_211 = arith.constant 0.000000e+00 : f32
    %747 = vector.broadcast %cst_211 : f32 to vector<8x512xf32>
    %748 = arith.cmpf oge, %718, %747 : vector<8x512xf32>
    %cst_212 = arith.constant 0.000000e+00 : f32
    %749 = vector.broadcast %cst_212 : f32 to vector<8x512xf32>
    %750 = arith.subf %749, %746 : vector<8x512xf32>
    %751 = arith.select %748, %746, %750 : vector<8x512xi1>, vector<8x512xf32>
    %cst_213 = arith.constant 1.000000e+00 : f32
    %752 = vector.broadcast %cst_213 : f32 to vector<8x512xf32>
    %753 = arith.addf %752, %751 : vector<8x512xf32>
    %754 = arith.mulf %716, %753 : vector<8x512xf32>
    %c61 = arith.constant 61 : index
    %755 = memref.load %arg3[%c61] : memref<65xf32, #tpu.memory_space<smem>>
    %756 = vector.broadcast %755 : f32 to vector<8x512xf32>
    %757 = arith.mulf %754, %756 : vector<8x512xf32>
    %758 = arith.addf %704, %757 : vector<8x512xf32>
    %c14 = arith.constant 14 : index
    %759 = memref.load %arg3[%c14] : memref<65xf32, #tpu.memory_space<smem>>
    %760 = vector.broadcast %759 : f32 to vector<8x512xf32>
    %761 = arith.mulf %0, %760 : vector<8x512xf32>
    %c30 = arith.constant 30 : index
    %762 = memref.load %arg3[%c30] : memref<65xf32, #tpu.memory_space<smem>>
    %763 = vector.broadcast %762 : f32 to vector<8x512xf32>
    %764 = arith.mulf %1, %763 : vector<8x512xf32>
    %765 = arith.addf %761, %764 : vector<8x512xf32>
    %c46 = arith.constant 46 : index
    %766 = memref.load %arg3[%c46] : memref<65xf32, #tpu.memory_space<smem>>
    %767 = vector.broadcast %766 : f32 to vector<8x512xf32>
    %768 = arith.addf %765, %767 : vector<8x512xf32>
    %cst_214 = arith.constant 5.000000e-01 : f32
    %769 = vector.broadcast %cst_214 : f32 to vector<8x512xf32>
    %770 = arith.mulf %769, %768 : vector<8x512xf32>
    %cst_215 = arith.constant 0.707106769 : f32
    %771 = vector.broadcast %cst_215 : f32 to vector<8x512xf32>
    %772 = arith.mulf %768, %771 : vector<8x512xf32>
    %773 = math.absf %772 : vector<8x512xf32>
    %cst_216 = arith.constant 0.327591091 : f32
    %774 = vector.broadcast %cst_216 : f32 to vector<8x512xf32>
    %775 = arith.mulf %774, %773 : vector<8x512xf32>
    %cst_217 = arith.constant 1.000000e+00 : f32
    %776 = vector.broadcast %cst_217 : f32 to vector<8x512xf32>
    %777 = arith.addf %776, %775 : vector<8x512xf32>
    %cst_218 = arith.constant 1.000000e+00 : f32
    %778 = vector.broadcast %cst_218 : f32 to vector<8x512xf32>
    %779 = arith.divf %778, %777 : vector<8x512xf32>
    %cst_219 = arith.constant 1.06140542 : f32
    %780 = vector.broadcast %cst_219 : f32 to vector<8x512xf32>
    %781 = arith.mulf %780, %779 : vector<8x512xf32>
    %cst_220 = arith.constant -1.45315206 : f32
    %782 = vector.broadcast %cst_220 : f32 to vector<8x512xf32>
    %783 = arith.addf %781, %782 : vector<8x512xf32>
    %784 = arith.mulf %783, %779 : vector<8x512xf32>
    %cst_221 = arith.constant 1.42141378 : f32
    %785 = vector.broadcast %cst_221 : f32 to vector<8x512xf32>
    %786 = arith.addf %784, %785 : vector<8x512xf32>
    %787 = arith.mulf %786, %779 : vector<8x512xf32>
    %cst_222 = arith.constant -0.284496725 : f32
    %788 = vector.broadcast %cst_222 : f32 to vector<8x512xf32>
    %789 = arith.addf %787, %788 : vector<8x512xf32>
    %790 = arith.mulf %789, %779 : vector<8x512xf32>
    %cst_223 = arith.constant 0.254829586 : f32
    %791 = vector.broadcast %cst_223 : f32 to vector<8x512xf32>
    %792 = arith.addf %790, %791 : vector<8x512xf32>
    %793 = arith.mulf %792, %779 : vector<8x512xf32>
    %794 = arith.mulf %773, %773 : vector<8x512xf32>
    %cst_224 = arith.constant 0.000000e+00 : f32
    %795 = vector.broadcast %cst_224 : f32 to vector<8x512xf32>
    %796 = arith.subf %795, %794 : vector<8x512xf32>
    %797 = math.exp %796 : vector<8x512xf32>
    %798 = arith.mulf %793, %797 : vector<8x512xf32>
    %cst_225 = arith.constant 1.000000e+00 : f32
    %799 = vector.broadcast %cst_225 : f32 to vector<8x512xf32>
    %800 = arith.subf %799, %798 : vector<8x512xf32>
    %cst_226 = arith.constant 0.000000e+00 : f32
    %801 = vector.broadcast %cst_226 : f32 to vector<8x512xf32>
    %802 = arith.cmpf oge, %772, %801 : vector<8x512xf32>
    %cst_227 = arith.constant 0.000000e+00 : f32
    %803 = vector.broadcast %cst_227 : f32 to vector<8x512xf32>
    %804 = arith.subf %803, %800 : vector<8x512xf32>
    %805 = arith.select %802, %800, %804 : vector<8x512xi1>, vector<8x512xf32>
    %cst_228 = arith.constant 1.000000e+00 : f32
    %806 = vector.broadcast %cst_228 : f32 to vector<8x512xf32>
    %807 = arith.addf %806, %805 : vector<8x512xf32>
    %808 = arith.mulf %770, %807 : vector<8x512xf32>
    %c62 = arith.constant 62 : index
    %809 = memref.load %arg3[%c62] : memref<65xf32, #tpu.memory_space<smem>>
    %810 = vector.broadcast %809 : f32 to vector<8x512xf32>
    %811 = arith.mulf %808, %810 : vector<8x512xf32>
    %812 = arith.addf %758, %811 : vector<8x512xf32>
    %c15 = arith.constant 15 : index
    %813 = memref.load %arg3[%c15] : memref<65xf32, #tpu.memory_space<smem>>
    %814 = vector.broadcast %813 : f32 to vector<8x512xf32>
    %815 = arith.mulf %0, %814 : vector<8x512xf32>
    %c31 = arith.constant 31 : index
    %816 = memref.load %arg3[%c31] : memref<65xf32, #tpu.memory_space<smem>>
    %817 = vector.broadcast %816 : f32 to vector<8x512xf32>
    %818 = arith.mulf %1, %817 : vector<8x512xf32>
    %819 = arith.addf %815, %818 : vector<8x512xf32>
    %c47 = arith.constant 47 : index
    %820 = memref.load %arg3[%c47] : memref<65xf32, #tpu.memory_space<smem>>
    %821 = vector.broadcast %820 : f32 to vector<8x512xf32>
    %822 = arith.addf %819, %821 : vector<8x512xf32>
    %cst_229 = arith.constant 5.000000e-01 : f32
    %823 = vector.broadcast %cst_229 : f32 to vector<8x512xf32>
    %824 = arith.mulf %823, %822 : vector<8x512xf32>
    %cst_230 = arith.constant 0.707106769 : f32
    %825 = vector.broadcast %cst_230 : f32 to vector<8x512xf32>
    %826 = arith.mulf %822, %825 : vector<8x512xf32>
    %827 = math.absf %826 : vector<8x512xf32>
    %cst_231 = arith.constant 0.327591091 : f32
    %828 = vector.broadcast %cst_231 : f32 to vector<8x512xf32>
    %829 = arith.mulf %828, %827 : vector<8x512xf32>
    %cst_232 = arith.constant 1.000000e+00 : f32
    %830 = vector.broadcast %cst_232 : f32 to vector<8x512xf32>
    %831 = arith.addf %830, %829 : vector<8x512xf32>
    %cst_233 = arith.constant 1.000000e+00 : f32
    %832 = vector.broadcast %cst_233 : f32 to vector<8x512xf32>
    %833 = arith.divf %832, %831 : vector<8x512xf32>
    %cst_234 = arith.constant 1.06140542 : f32
    %834 = vector.broadcast %cst_234 : f32 to vector<8x512xf32>
    %835 = arith.mulf %834, %833 : vector<8x512xf32>
    %cst_235 = arith.constant -1.45315206 : f32
    %836 = vector.broadcast %cst_235 : f32 to vector<8x512xf32>
    %837 = arith.addf %835, %836 : vector<8x512xf32>
    %838 = arith.mulf %837, %833 : vector<8x512xf32>
    %cst_236 = arith.constant 1.42141378 : f32
    %839 = vector.broadcast %cst_236 : f32 to vector<8x512xf32>
    %840 = arith.addf %838, %839 : vector<8x512xf32>
    %841 = arith.mulf %840, %833 : vector<8x512xf32>
    %cst_237 = arith.constant -0.284496725 : f32
    %842 = vector.broadcast %cst_237 : f32 to vector<8x512xf32>
    %843 = arith.addf %841, %842 : vector<8x512xf32>
    %844 = arith.mulf %843, %833 : vector<8x512xf32>
    %cst_238 = arith.constant 0.254829586 : f32
    %845 = vector.broadcast %cst_238 : f32 to vector<8x512xf32>
    %846 = arith.addf %844, %845 : vector<8x512xf32>
    %847 = arith.mulf %846, %833 : vector<8x512xf32>
    %848 = arith.mulf %827, %827 : vector<8x512xf32>
    %cst_239 = arith.constant 0.000000e+00 : f32
    %849 = vector.broadcast %cst_239 : f32 to vector<8x512xf32>
    %850 = arith.subf %849, %848 : vector<8x512xf32>
    %851 = math.exp %850 : vector<8x512xf32>
    %852 = arith.mulf %847, %851 : vector<8x512xf32>
    %cst_240 = arith.constant 1.000000e+00 : f32
    %853 = vector.broadcast %cst_240 : f32 to vector<8x512xf32>
    %854 = arith.subf %853, %852 : vector<8x512xf32>
    %cst_241 = arith.constant 0.000000e+00 : f32
    %855 = vector.broadcast %cst_241 : f32 to vector<8x512xf32>
    %856 = arith.cmpf oge, %826, %855 : vector<8x512xf32>
    %cst_242 = arith.constant 0.000000e+00 : f32
    %857 = vector.broadcast %cst_242 : f32 to vector<8x512xf32>
    %858 = arith.subf %857, %854 : vector<8x512xf32>
    %859 = arith.select %856, %854, %858 : vector<8x512xi1>, vector<8x512xf32>
    %cst_243 = arith.constant 1.000000e+00 : f32
    %860 = vector.broadcast %cst_243 : f32 to vector<8x512xf32>
    %861 = arith.addf %860, %859 : vector<8x512xf32>
    %862 = arith.mulf %824, %861 : vector<8x512xf32>
    %c63 = arith.constant 63 : index
    %863 = memref.load %arg3[%c63] : memref<65xf32, #tpu.memory_space<smem>>
    %864 = vector.broadcast %863 : f32 to vector<8x512xf32>
    %865 = arith.mulf %862, %864 : vector<8x512xf32>
    %866 = arith.addf %812, %865 : vector<8x512xf32>
    %c64 = arith.constant 64 : index
    %867 = memref.load %arg3[%c64] : memref<65xf32, #tpu.memory_space<smem>>
    %868 = vector.broadcast %867 : f32 to vector<8x512xf32>
    %869 = arith.addf %866, %868 : vector<8x512xf32>
    %c0_244 = arith.constant 0 : index
    %c0_245 = arith.constant 0 : index
    %870 = vector.load %arg4[%c0_244, %c0_245] : memref<8x512xf32, #tpu.memory_space<vmem>>, vector<8x512xf32>
    tpu.vector_store %arg4[%c0_244, %c0_245], %869 {strides = array<i32>} : memref<8x512xf32, #tpu.memory_space<vmem>>, vector<8x512xf32>,
    return
  }
  func.func @transform_0(%arg0: i32) -> (i32, i32) {
    %c0_i32 = arith.constant 0 : i32
    %c0_i32_0 = arith.constant 0 : i32
    return %arg0, %c0_i32 : i32, i32
  }
  func.func @transform_1(%arg0: i32) -> (i32, i32) {
    %c0_i32 = arith.constant 0 : i32
    %c0_i32_0 = arith.constant 0 : i32
    return %arg0, %c0_i32 : i32, i32
  }
  func.func @transform_2(%arg0: i32) -> i32 {
    %c0_i32 = arith.constant 0 : i32
    %c0_i32_0 = arith.constant 0 : i32
    return %c0_i32 : i32
  }
  func.func @transform_3(%arg0: i32) -> (i32, i32) {
    %c0_i32 = arith.constant 0 : i32
    %c0_i32_0 = arith.constant 0 : i32
    return %arg0, %c0_i32 : i32, i32
  }
}

</mosaic_0001>

<llo_original>
// kernel: tpu_custom_call.1
$region0: #{tpu_custom_call.1}
  #allocation0 [shape = 'u32[]', space=smem, size = 0x4, offset = 0x4, fixed_abs, tag = 'smem constant byte address 0x4 - core index']
  #allocation1 [shape = 'u32[144,128]{1,0:T(1,128)}', space=vmem, size = 0x12000, scoped, tag = 'internal scratch']
  %s0 = inlined_call_operand.hbm [shape: f32[8,512], index: 0, kind: input, shape index: {}]
  %s1 = inlined_call_operand.hbm [shape: f32[8,512], index: 1, kind: input, shape index: {}]
  %s2 = inlined_call_operand.vmem [shape: f32[65], index: 2, kind: input, shape index: {}]
  %s3 = inlined_call_operand.hbm [shape: f32[8,512], index: 3, kind: output, shape index: {}]
  %s4 = sld [smem:[#allocation0]]
  $region34: #{tpu_custom_call.1} parent=0
    _
  %s6 = ssub.s32 1, %s4
  %s7 = scalar_select 0, %s6, %s4
  $region1: #{tpu_custom_call.1} parent=0
    #allocation2 [shape = 'u8[16384]{0}', space=vmem, size = 0x4000, scoped, tag = 'input window, operand 0, single buffered']
    #allocation3 [shape = 's32[1]{0}', space=sflag, size = 0x4, scoped, tag = 'scoped memory for tpu_custom_call.1']
    #allocation4 [shape = 's32[1]{0}', space=sflag, size = 0x4, scoped, tag = 'scoped memory for tpu_custom_call.1']
    #allocation5 [shape = 's32[1]{0}', space=sflag, size = 0x4, scoped, tag = 'scoped memory for tpu_custom_call.1']
    #allocation6 [shape = 'u8[16384]{0}', space=vmem, size = 0x4000, scoped, tag = 'input window, operand 1, single buffered']
    #allocation7 [shape = 's32[1]{0}', space=sflag, size = 0x4, scoped, tag = 'scoped memory for tpu_custom_call.1']
    #allocation8 [shape = 'u8[512]{0}', space=smem, size = 0x200, scoped, tag = 'input window, operand 2, single buffered']
    #allocation9 [shape = 'u8[16384]{0}', space=vmem, size = 0x4000, scoped, tag = 'output window, operand 0, single buffered']
    %8 = vsyncpa [#allocation3], 0
    %9 = vsyncpa [#allocation7], 0
    %10 = vsyncpa [#allocation5], 0
    %11 = vsyncpa [#allocation4], 0
    // Predicated region
    $region2: #{tpu_custom_call.1} parent=1 // pred_check
      _
    $region3: #{tpu_custom_call.1} parent=1 // pred_check_branch
      %13 = sbr.rel (0) target = $region5
    $region4: #{tpu_custom_call.1} parent=1 // pred_region
      %s15 = ssub.s32 512, 512
      %16 = vsyncadd [#allocation3], %s15
      %s18 = sshll.u32 [#allocation2], 4
      %s19 = int_to_ptr.vmem [resolvable:$true] %s18
      %21 = dma.hbm_to_vmem [thread:$0]  %s0, 512, %s19, [#allocation3]
    $region5: #{tpu_custom_call.1} parent=1 // pred_fallthru
      _
    // Predicated region
    $region6: #{tpu_custom_call.1} parent=1 // pred_check
      _
    $region7: #{tpu_custom_call.1} parent=1 // pred_check_branch
      %23 = sbr.rel (0) target = $region9
    $region8: #{tpu_custom_call.1} parent=1 // pred_region
      %s25 = ssub.s32 512, 512
      %26 = vsyncadd [#allocation7], %s25
      %s28 = sshll.u32 [#allocation6], 4
      %s29 = int_to_ptr.vmem [resolvable:$true] %s28
      %31 = dma.hbm_to_vmem [thread:$0]  %s1, 512, %s29, [#allocation7]
    $region9: #{tpu_custom_call.1} parent=1 // pred_fallthru
      _
    // Predicated region
    $region10: #{tpu_custom_call.1} parent=1 // pred_check
      _
    $region11: #{tpu_custom_call.1} parent=1 // pred_check_branch
      %33 = sbr.rel (0) target = $region13
    $region12: #{tpu_custom_call.1} parent=1 // pred_region
      %s35 = ssub.s32 16, 16
      %36 = vsyncadd [#allocation5], %s35
      %s38 = sshll.u32 %s2, 4
      %s39 = int_to_ptr.vmem [resolvable:$true] %s38
      %41 = dma.vmem_to_smem %s39, 16, [#allocation8], [#allocation5]
    $region13: #{tpu_custom_call.1} parent=1 // pred_fallthru
      _
    // Predicated region
    $region14: #{tpu_custom_call.1} parent=1 // pred_check
      _
    $region15: #{tpu_custom_call.1} parent=1 // pred_check_branch
      %43 = sbr.rel (0) target = $region17
    $region16: #{tpu_custom_call.1} parent=1 // pred_region
      %44 = dma.done [#allocation3], 512
    $region17: #{tpu_custom_call.1} parent=1 // pred_fallthru
      _
    // Predicated region
    $region18: #{tpu_custom_call.1} parent=1 // pred_check
      _
    $region19: #{tpu_custom_call.1} parent=1 // pred_check_branch
      %46 = sbr.rel (0) target = $region21
    $region20: #{tpu_custom_call.1} parent=1 // pred_region
      %47 = dma.done [#allocation7], 512
    $region21: #{tpu_custom_call.1} parent=1 // pred_fallthru
      _
    // Predicated region
    $region22: #{tpu_custom_call.1} parent=1 // pred_check
      _
    $region23: #{tpu_custom_call.1} parent=1 // pred_check_branch
      %49 = sbr.rel (0) target = $region25
    $region24: #{tpu_custom_call.1} parent=1 // pred_region
      %50 = dma.done [#allocation5], 16
    $region25: #{tpu_custom_call.1} parent=1 // pred_fallthru
      _
    %51 = sfence
    %v52 = vld [vmem:[#allocation2] sm:$0xff]
    %v53 = vld [vmem:[#allocation2 + $0x8] sm:$0xff]
    %v54 = vld [vmem:[#allocation2 + $0x10] sm:$0xff]
    %v55 = vld [vmem:[#allocation2 + $0x18] sm:$0xff]
    %v56 = vld [vmem:[#allocation6] sm:$0xff]
    %v57 = vld [vmem:[#allocation6 + $0x8] sm:$0xff]
    %v58 = vld [vmem:[#allocation6 + $0x10] sm:$0xff]
    %v59 = vld [vmem:[#allocation6 + $0x18] sm:$0xff]
    %s60 = sld [smem:[#allocation8]]
    %v61 = vstv %s60
    %v62 = vmul.f32 %v52, %v61
    %v63 = vmul.f32 %v53, %v61
    %v64 = vmul.f32 %v54, %v61
    %v65 = vmul.f32 %v55, %v61
    %s66 = sld [smem:[#allocation8 + $0x10]]
    %v67 = vstv %s66
    %v68 = vmul.f32 %v56, %v67
    %v69 = vmul.f32 %v57, %v67
    %v70 = vmul.f32 %v58, %v67
    %v71 = vmul.f32 %v59, %v67
    %v72 = vadd.f32 %v62, %v68
    %v73 = vadd.f32 %v63, %v69
    %v74 = vadd.f32 %v64, %v70
    %v75 = vadd.f32 %v65, %v71
    %s76 = sld [smem:[#allocation8 + $0x20]]
    %v77 = vstv %s76
    %v78 = vadd.f32 %v72, %v77
    %v79 = vadd.f32 %v73, %v77
    %v80 = vadd.f32 %v74, %v77
    %v81 = vadd.f32 %v75, %v77
    %v82 = vmul.f32 %v78, 0.5
    %v83 = vmul.f32 %v79, 0.5
    %v84 = vmul.f32 %v80, 0.5
    %v85 = vmul.f32 %v81, 0.5
    %v86 = vmul.f32 %v78, 0.70710677
    %v87 = vmul.f32 %v79, 0.70710677
    %v88 = vmul.f32 %v80, 0.70710677
    %v89 = vmul.f32 %v81, 0.70710677
    %v90 = vand.u32 2147483647, %v86
    %v91 = vand.u32 2147483647, %v87
    %v92 = vand.u32 2147483647, %v88
    %v93 = vand.u32 2147483647, %v89
    %v94 = vmul.f32 %v90, 0.3275911
    %v95 = vmul.f32 %v91, 0.3275911
    %v96 = vmul.f32 %v92, 0.3275911
    %v97 = vmul.f32 %v93, 0.3275911
    %v98 = vadd.f32 %v94, 1.0
    %v99 = vadd.f32 %v95, 1.0
    %v100 = vadd.f32 %v96, 1.0
    %v101 = vadd.f32 %v97, 1.0
    %v102 = vrcp.pop %v98
    %v103 = vmul.f32 1.0, %v102
    %v104 = vrcp.pop %v99
    %v105 = vmul.f32 1.0, %v104
    %v106 = vrcp.pop %v100
    %v107 = vmul.f32 1.0, %v106
    %v108 = vrcp.pop %v101
    %v109 = vmul.f32 1.0, %v108
    %v110 = vmul.f32 %v103, 1.0614054
    %v111 = vmul.f32 %v105, 1.0614054
    %v112 = vmul.f32 %v107, 1.0614054
    %v113 = vmul.f32 %v109, 1.0614054
    %v114 = vadd.f32 %v110, -1.4531521
    %v115 = vadd.f32 %v111, -1.4531521
    %v116 = vadd.f32 %v112, -1.4531521
    %v117 = vadd.f32 %v113, -1.4531521
    %v118 = vmul.f32 %v114, %v103
    %v119 = vmul.f32 %v115, %v105
    %v120 = vmul.f32 %v116, %v107
    %v121 = vmul.f32 %v117, %v109
    %v122 = vadd.f32 %v118, 1.4214138
    %v123 = vadd.f32 %v119, 1.4214138
    %v124 = vadd.f32 %v120, 1.4214138
    %v125 = vadd.f32 %v121, 1.4214138
    %v126 = vmul.f32 %v122, %v103
    %v127 = vmul.f32 %v123, %v105
    %v128 = vmul.f32 %v124, %v107
    %v129 = vmul.f32 %v125, %v109
    %v130 = vadd.f32 %v126, -0.28449672
    %v131 = vadd.f32 %v127, -0.28449672
    %v132 = vadd.f32 %v128, -0.28449672
    %v133 = vadd.f32 %v129, -0.28449672
    %v134 = vmul.f32 %v130, %v103
    %v135 = vmul.f32 %v131, %v105
    %v136 = vmul.f32 %v132, %v107
    %v137 = vmul.f32 %v133, %v109
    %v138 = vadd.f32 %v134, 0.2548296
    %v139 = vadd.f32 %v135, 0.2548296
    %v140 = vadd.f32 %v136, 0.2548296
    %v141 = vadd.f32 %v137, 0.2548296
    %v142 = vmul.f32 %v138, %v103
    %v143 = vmul.f32 %v139, %v105
    %v144 = vmul.f32 %v140, %v107
    %v145 = vmul.f32 %v141, %v109
    %v146 = vmul.f32 %v90, %v90
    %v147 = vmul.f32 %v91, %v91
    %v148 = vmul.f32 %v92, %v92
    %v149 = vmul.f32 %v93, %v93
    %v150 = vsub.f32 0.0, %v146
    %v151 = vsub.f32 0.0, %v147
    %v152 = vsub.f32 0.0, %v148
    %v153 = vsub.f32 0.0, %v149
    %v154 = vmul.f32 %v150, 1.442695
    %v155 = vpow.pop %v154
    %v156 = vmul.f32 %v151, 1.442695
    %v157 = vpow.pop %v156
    %v158 = vmul.f32 %v152, 1.442695
    %v159 = vpow.pop %v158
    %v160 = vmul.f32 %v153, 1.442695
    %v161 = vpow.pop %v160
    %v162 = vmul.f32 %v142, %v155
    %v163 = vmul.f32 %v143, %v157
    %v164 = vmul.f32 %v144, %v159
    %v165 = vmul.f32 %v145, %v161
    %v166 = vsub.f32 1.0, %v162
    %v167 = vsub.f32 1.0, %v163
    %v168 = vsub.f32 1.0, %v164
    %v169 = vsub.f32 1.0, %v165
    %vm170 = vcmp.ge.f32.partialorder %v86, 0.0
    %vm171 = vcmp.ge.f32.partialorder %v87, 0.0
    %vm172 = vcmp.ge.f32.partialorder %v88, 0.0
    %vm173 = vcmp.ge.f32.partialorder %v89, 0.0
    %v174 = vsub.f32 0.0, %v166
    %v175 = vsub.f32 0.0, %v167
    %v176 = vsub.f32 0.0, %v168
    %v177 = vsub.f32 0.0, %v169
    %v178 = vsel %vm170, %v166, %v174
    %v179 = vsel %vm171, %v167, %v175
    %v180 = vsel %vm172, %v168, %v176
    %v181 = vsel %vm173, %v169, %v177
    %v182 = vadd.f32 %v178, 1.0
    %v183 = vadd.f32 %v179, 1.0
    %v184 = vadd.f32 %v180, 1.0
    %v185 = vadd.f32 %v181, 1.0
    %v186 = vmul.f32 %v82, %v182
    %v187 = vmul.f32 %v83, %v183
    %v188 = vmul.f32 %v84, %v184
    %v189 = vmul.f32 %v85, %v185
    %s190 = sld [smem:[#allocation8 + $0x30]]
    %v191 = vstv %s190
    %v192 = vmul.f32 %v186, %v191
    %v193 = vmul.f32 %v187, %v191
    %v194 = vmul.f32 %v188, %v191
    %v195 = vmul.f32 %v189, %v191
    %v196 = vadd.f32 %v192, 0.0
    %v197 = vadd.f32 %v193, 0.0
    %v198 = vadd.f32 %v194, 0.0
    %v199 = vadd.f32 %v195, 0.0
    %s200 = sld [smem:[#allocation8 + $0x1]]
    %v201 = vstv %s200
    %v202 = vmul.f32 %v52, %v201
    %v203 = vmul.f32 %v53, %v201
    %v204 = vmul.f32 %v54, %v201
    %v205 = vmul.f32 %v55, %v201
    %s206 = sld [smem:[#allocation8 + $0x11]]
    %v207 = vstv %s206
    %v208 = vmul.f32 %v56, %v207
    %v209 = vmul.f32 %v57, %v207
    %v210 = vmul.f32 %v58, %v207
    %v211 = vmul.f32 %v59, %v207
    %v212 = vadd.f32 %v202, %v208
    %v213 = vadd.f32 %v203, %v209
    %v214 = vadd.f32 %v204, %v210
    %v215 = vadd.f32 %v205, %v211
    %s216 = sld [smem:[#allocation8 + $0x21]]
    %v217 = vstv %s216
    %v218 = vadd.f32 %v212, %v217
    %v219 = vadd.f32 %v213, %v217
    %v220 = vadd.f32 %v214, %v217
    %v221 = vadd.f32 %v215, %v217
    %v222 = vmul.f32 %v218, 0.5
    %v223 = vmul.f32 %v219, 0.5
    %v224 = vmul.f32 %v220, 0.5
    %v225 = vmul.f32 %v221, 0.5
    %v226 = vmul.f32 %v218, 0.70710677
    %v227 = vmul.f32 %v219, 0.70710677
    %v228 = vmul.f32 %v220, 0.70710677
    %v229 = vmul.f32 %v221, 0.70710677
    %v230 = vand.u32 2147483647, %v226
    %v231 = vand.u32 2147483647, %v227
    %v232 = vand.u32 2147483647, %v228
    %v233 = vand.u32 2147483647, %v229
    %v234 = vmul.f32 %v230, 0.3275911
    %v235 = vmul.f32 %v231, 0.3275911
    %v236 = vmul.f32 %v232, 0.3275911
    %v237 = vmul.f32 %v233, 0.3275911
    %v238 = vadd.f32 %v234, 1.0
    %v239 = vadd.f32 %v235, 1.0
    %v240 = vadd.f32 %v236, 1.0
    %v241 = vadd.f32 %v237, 1.0
    %v242 = vrcp.pop %v238
    %v243 = vmul.f32 1.0, %v242
    %v244 = vrcp.pop %v239
    %v245 = vmul.f32 1.0, %v244
    %v246 = vrcp.pop %v240
    %v247 = vmul.f32 1.0, %v246
    %v248 = vrcp.pop %v241
    %v249 = vmul.f32 1.0, %v248
    %v250 = vmul.f32 %v243, 1.0614054
    %v251 = vmul.f32 %v245, 1.0614054
    %v252 = vmul.f32 %v247, 1.0614054
    %v253 = vmul.f32 %v249, 1.0614054
    %v254 = vadd.f32 %v250, -1.4531521
    %v255 = vadd.f32 %v251, -1.4531521
    %v256 = vadd.f32 %v252, -1.4531521
    %v257 = vadd.f32 %v253, -1.4531521
    %v258 = vmul.f32 %v254, %v243
    %v259 = vmul.f32 %v255, %v245
    %v260 = vmul.f32 %v256, %v247
    %v261 = vmul.f32 %v257, %v249
    %v262 = vadd.f32 %v258, 1.4214138
    %v263 = vadd.f32 %v259, 1.4214138
    %v264 = vadd.f32 %v260, 1.4214138
    %v265 = vadd.f32 %v261, 1.4214138
    %v266 = vmul.f32 %v262, %v243
    %v267 = vmul.f32 %v263, %v245
    %v268 = vmul.f32 %v264, %v247
    %v269 = vmul.f32 %v265, %v249
    %v270 = vadd.f32 %v266, -0.28449672
    %v271 = vadd.f32 %v267, -0.28449672
    %v272 = vadd.f32 %v268, -0.28449672
    %v273 = vadd.f32 %v269, -0.28449672
    %v274 = vmul.f32 %v270, %v243
    %v275 = vmul.f32 %v271, %v245
    %v276 = vmul.f32 %v272, %v247
    %v277 = vmul.f32 %v273, %v249
    %v278 = vadd.f32 %v274, 0.2548296
    %v279 = vadd.f32 %v275, 0.2548296
    %v280 = vadd.f32 %v276, 0.2548296
    %v281 = vadd.f32 %v277, 0.2548296
    %v282 = vmul.f32 %v278, %v243
    %v283 = vmul.f32 %v279, %v245
    %v284 = vmul.f32 %v280, %v247
    %v285 = vmul.f32 %v281, %v249
    %v286 = vmul.f32 %v230, %v230
    %v287 = vmul.f32 %v231, %v231
    %v288 = vmul.f32 %v232, %v232
    %v289 = vmul.f32 %v233, %v233
    %v290 = vsub.f32 0.0, %v286
    %v291 = vsub.f32 0.0, %v287
    %v292 = vsub.f32 0.0, %v288
    %v293 = vsub.f32 0.0, %v289
    %v294 = vmul.f32 %v290, 1.442695
    %v295 = vpow.pop %v294
    %v296 = vmul.f32 %v291, 1.442695
    %v297 = vpow.pop %v296
    %v298 = vmul.f32 %v292, 1.442695
    %v299 = vpow.pop %v298
    %v300 = vmul.f32 %v293, 1.442695
    %v301 = vpow.pop %v300
    %v302 = vmul.f32 %v282, %v295
    %v303 = vmul.f32 %v283, %v297
    %v304 = vmul.f32 %v284, %v299
    %v305 = vmul.f32 %v285, %v301
    %v306 = vsub.f32 1.0, %v302
    %v307 = vsub.f32 1.0, %v303
    %v308 = vsub.f32 1.0, %v304
    %v309 = vsub.f32 1.0, %v305
    %vm310 = vcmp.ge.f32.partialorder %v226, 0.0
    %vm311 = vcmp.ge.f32.partialorder %v227, 0.0
    %vm312 = vcmp.ge.f32.partialorder %v228, 0.0
    %vm313 = vcmp.ge.f32.partialorder %v229, 0.0
    %v314 = vsub.f32 0.0, %v306
    %v315 = vsub.f32 0.0, %v307
    %v316 = vsub.f32 0.0, %v308
    %v317 = vsub.f32 0.0, %v309
    %v318 = vsel %vm310, %v306, %v314
    %v319 = vsel %vm311, %v307, %v315
    %v320 = vsel %vm312, %v308, %v316
    %v321 = vsel %vm313, %v309, %v317
    %v322 = vadd.f32 %v318, 1.0
    %v323 = vadd.f32 %v319, 1.0
    %v324 = vadd.f32 %v320, 1.0
    %v325 = vadd.f32 %v321, 1.0
    %v326 = vmul.f32 %v222, %v322
    %v327 = vmul.f32 %v223, %v323
    %v328 = vmul.f32 %v224, %v324
    %v329 = vmul.f32 %v225, %v325
    %s330 = sld [smem:[#allocation8 + $0x31]]
    %v331 = vstv %s330
    %v332 = vmul.f32 %v326, %v331
    %v333 = vmul.f32 %v327, %v331
    %v334 = vmul.f32 %v328, %v331
    %v335 = vmul.f32 %v329, %v331
    %v336 = vadd.f32 %v196, %v332
    %v337 = vadd.f32 %v197, %v333
    %v338 = vadd.f32 %v198, %v334
    %v339 = vadd.f32 %v199, %v335
    %s340 = sld [smem:[#allocation8 + $0x2]]
    %v341 = vstv %s340
    %v342 = vmul.f32 %v52, %v341
    %v343 = vmul.f32 %v53, %v341
    %v344 = vmul.f32 %v54, %v341
    %v345 = vmul.f32 %v55, %v341
    %s346 = sld [smem:[#allocation8 + $0x12]]
    %v347 = vstv %s346
    %v348 = vmul.f32 %v56, %v347
    %v349 = vmul.f32 %v57, %v347
    %v350 = vmul.f32 %v58, %v347
    %v351 = vmul.f32 %v59, %v347
    %v352 = vadd.f32 %v342, %v348
    %v353 = vadd.f32 %v343, %v349
    %v354 = vadd.f32 %v344, %v350
    %v355 = vadd.f32 %v345, %v351
    %s356 = sld [smem:[#allocation8 + $0x22]]
    %v357 = vstv %s356
    %v358 = vadd.f32 %v352, %v357
    %v359 = vadd.f32 %v353, %v357
    %v360 = vadd.f32 %v354, %v357
    %v361 = vadd.f32 %v355, %v357
    %v362 = vmul.f32 %v358, 0.5
    %v363 = vmul.f32 %v359, 0.5
    %v364 = vmul.f32 %v360, 0.5
    %v365 = vmul.f32 %v361, 0.5
    %v366 = vmul.f32 %v358, 0.70710677
    %v367 = vmul.f32 %v359, 0.70710677
    %v368 = vmul.f32 %v360, 0.70710677
    %v369 = vmul.f32 %v361, 0.70710677
    %v370 = vand.u32 2147483647, %v366
    %v371 = vand.u32 2147483647, %v367
    %v372 = vand.u32 2147483647, %v368
    %v373 = vand.u32 2147483647, %v369
    %v374 = vmul.f32 %v370, 0.3275911
    %v375 = vmul.f32 %v371, 0.3275911
    %v376 = vmul.f32 %v372, 0.3275911
    %v377 = vmul.f32 %v373, 0.3275911
    %v378 = vadd.f32 %v374, 1.0
    %v379 = vadd.f32 %v375, 1.0
    %v380 = vadd.f32 %v376, 1.0
    %v381 = vadd.f32 %v377, 1.0
    %v382 = vrcp.pop %v378
    %v383 = vmul.f32 1.0, %v382
    %v384 = vrcp.pop %v379
    %v385 = vmul.f32 1.0, %v384
    %v386 = vrcp.pop %v380
    %v387 = vmul.f32 1.0, %v386
    %v388 = vrcp.pop %v381
    %v389 = vmul.f32 1.0, %v388
    %v390 = vmul.f32 %v383, 1.0614054
    %v391 = vmul.f32 %v385, 1.0614054
    %v392 = vmul.f32 %v387, 1.0614054
    %v393 = vmul.f32 %v389, 1.0614054
    %v394 = vadd.f32 %v390, -1.4531521
    %v395 = vadd.f32 %v391, -1.4531521
    %v396 = vadd.f32 %v392, -1.4531521
    %v397 = vadd.f32 %v393, -1.4531521
    %v398 = vmul.f32 %v394, %v383
    %v399 = vmul.f32 %v395, %v385
    %v400 = vmul.f32 %v396, %v387
    %v401 = vmul.f32 %v397, %v389
    %v402 = vadd.f32 %v398, 1.4214138
    %v403 = vadd.f32 %v399, 1.4214138
    %v404 = vadd.f32 %v400, 1.4214138
    %v405 = vadd.f32 %v401, 1.4214138
    %v406 = vmul.f32 %v402, %v383
    %v407 = vmul.f32 %v403, %v385
    %v408 = vmul.f32 %v404, %v387
    %v409 = vmul.f32 %v405, %v389
    %v410 = vadd.f32 %v406, -0.28449672
    %v411 = vadd.f32 %v407, -0.28449672
    %v412 = vadd.f32 %v408, -0.28449672
    %v413 = vadd.f32 %v409, -0.28449672
    %v414 = vmul.f32 %v410, %v383
    %v415 = vmul.f32 %v411, %v385
    %v416 = vmul.f32 %v412, %v387
    %v417 = vmul.f32 %v413, %v389
    %v418 = vadd.f32 %v414, 0.2548296
    %v419 = vadd.f32 %v415, 0.2548296
    %v420 = vadd.f32 %v416, 0.2548296
    %v421 = vadd.f32 %v417, 0.2548296
    %v422 = vmul.f32 %v418, %v383
    %v423 = vmul.f32 %v419, %v385
    %v424 = vmul.f32 %v420, %v387
    %v425 = vmul.f32 %v421, %v389
    %v426 = vmul.f32 %v370, %v370
    %v427 = vmul.f32 %v371, %v371
    %v428 = vmul.f32 %v372, %v372
    %v429 = vmul.f32 %v373, %v373
    %v430 = vsub.f32 0.0, %v426
    %v431 = vsub.f32 0.0, %v427
    %v432 = vsub.f32 0.0, %v428
    %v433 = vsub.f32 0.0, %v429
    %v434 = vmul.f32 %v430, 1.442695
    %v435 = vpow.pop %v434
    %v436 = vmul.f32 %v431, 1.442695
    %v437 = vpow.pop %v436
    %v438 = vmul.f32 %v432, 1.442695
    %v439 = vpow.pop %v438
    %v440 = vmul.f32 %v433, 1.442695
    %v441 = vpow.pop %v440
    %v442 = vmul.f32 %v422, %v435
    %v443 = vmul.f32 %v423, %v437
    %v444 = vmul.f32 %v424, %v439
    %v445 = vmul.f32 %v425, %v441
    %v446 = vsub.f32 1.0, %v442
    %v447 = vsub.f32 1.0, %v443
    %v448 = vsub.f32 1.0, %v444
    %v449 = vsub.f32 1.0, %v445
    %vm450 = vcmp.ge.f32.partialorder %v366, 0.0
    %vm451 = vcmp.ge.f32.partialorder %v367, 0.0
    %vm452 = vcmp.ge.f32.partialorder %v368, 0.0
    %vm453 = vcmp.ge.f32.partialorder %v369, 0.0
    %v454 = vsub.f32 0.0, %v446
    %v455 = vsub.f32 0.0, %v447
    %v456 = vsub.f32 0.0, %v448
    %v457 = vsub.f32 0.0, %v449
    %v458 = vsel %vm450, %v446, %v454
    %v459 = vsel %vm451, %v447, %v455
    %v460 = vsel %vm452, %v448, %v456
    %v461 = vsel %vm453, %v449, %v457
    %v462 = vadd.f32 %v458, 1.0
    %v463 = vadd.f32 %v459, 1.0
    %v464 = vadd.f32 %v460, 1.0
    %v465 = vadd.f32 %v461, 1.0
    %v466 = vmul.f32 %v362, %v462
    %v467 = vmul.f32 %v363, %v463
    %v468 = vmul.f32 %v364, %v464
    %v469 = vmul.f32 %v365, %v465
    %s470 = sld [smem:[#allocation8 + $0x32]]
    %v471 = vstv %s470
    %v472 = vmul.f32 %v466, %v471
    %v473 = vmul.f32 %v467, %v471
    %v474 = vmul.f32 %v468, %v471
    %v475 = vmul.f32 %v469, %v471
    %v476 = vadd.f32 %v336, %v472
    %v477 = vadd.f32 %v337, %v473
    %v478 = vadd.f32 %v338, %v474
    %v479 = vadd.f32 %v339, %v475
    %s480 = sld [smem:[#allocation8 + $0x3]]
    %v481 = vstv %s480
    %v482 = vmul.f32 %v52, %v481
    %v483 = vmul.f32 %v53, %v481
    %v484 = vmul.f32 %v54, %v481
    %v485 = vmul.f32 %v55, %v481
    %s486 = sld [smem:[#allocation8 + $0x13]]
    %v487 = vstv %s486
    %v488 = vmul.f32 %v56, %v487
    %v489 = vmul.f32 %v57, %v487
    %v490 = vmul.f32 %v58, %v487
    %v491 = vmul.f32 %v59, %v487
    %v492 = vadd.f32 %v482, %v488
    %v493 = vadd.f32 %v483, %v489
    %v494 = vadd.f32 %v484, %v490
    %v495 = vadd.f32 %v485, %v491
    %s496 = sld [smem:[#allocation8 + $0x23]]
    %v497 = vstv %s496
    %v498 = vadd.f32 %v492, %v497
    %v499 = vadd.f32 %v493, %v497
    %v500 = vadd.f32 %v494, %v497
    %v501 = vadd.f32 %v495, %v497
    %v502 = vmul.f32 %v498, 0.5
    %v503 = vmul.f32 %v499, 0.5
    %v504 = vmul.f32 %v500, 0.5
    %v505 = vmul.f32 %v501, 0.5
    %v506 = vmul.f32 %v498, 0.70710677
    %v507 = vmul.f32 %v499, 0.70710677
    %v508 = vmul.f32 %v500, 0.70710677
    %v509 = vmul.f32 %v501, 0.70710677
    %v510 = vand.u32 2147483647, %v506
    %v511 = vand.u32 2147483647, %v507
    %v512 = vand.u32 2147483647, %v508
    %v513 = vand.u32 2147483647, %v509
    %v514 = vmul.f32 %v510, 0.3275911
    %v515 = vmul.f32 %v511, 0.3275911
    %v516 = vmul.f32 %v512, 0.3275911
    %v517 = vmul.f32 %v513, 0.3275911
    %v518 = vadd.f32 %v514, 1.0
    %v519 = vadd.f32 %v515, 1.0
    %v520 = vadd.f32 %v516, 1.0
    %v521 = vadd.f32 %v517, 1.0
    %v522 = vrcp.pop %v518
    %v523 = vmul.f32 1.0, %v522
    %v524 = vrcp.pop %v519
    %v525 = vmul.f32 1.0, %v524
    %v526 = vrcp.pop %v520
    %v527 = vmul.f32 1.0, %v526
    %v528 = vrcp.pop %v521
    %v529 = vmul.f32 1.0, %v528
    %v530 = vmul.f32 %v523, 1.0614054
    %v531 = vmul.f32 %v525, 1.0614054
    %v532 = vmul.f32 %v527, 1.0614054
    %v533 = vmul.f32 %v529, 1.0614054
    %v534 = vadd.f32 %v530, -1.4531521
    %v535 = vadd.f32 %v531, -1.4531521
    %v536 = vadd.f32 %v532, -1.4531521
    %v537 = vadd.f32 %v533, -1.4531521
    %v538 = vmul.f32 %v534, %v523
    %v539 = vmul.f32 %v535, %v525
    %v540 = vmul.f32 %v536, %v527
    %v541 = vmul.f32 %v537, %v529
    %v542 = vadd.f32 %v538, 1.4214138
    %v543 = vadd.f32 %v539, 1.4214138
    %v544 = vadd.f32 %v540, 1.4214138
    %v545 = vadd.f32 %v541, 1.4214138
    %v546 = vmul.f32 %v542, %v523
    %v547 = vmul.f32 %v543, %v525
    %v548 = vmul.f32 %v544, %v527
    %v549 = vmul.f32 %v545, %v529
    %v550 = vadd.f32 %v546, -0.28449672
    %v551 = vadd.f32 %v547, -0.28449672
    %v552 = vadd.f32 %v548, -0.28449672
    %v553 = vadd.f32 %v549, -0.28449672
    %v554 = vmul.f32 %v550, %v523
    %v555 = vmul.f32 %v551, %v525
    %v556 = vmul.f32 %v552, %v527
    %v557 = vmul.f32 %v553, %v529
    %v558 = vadd.f32 %v554, 0.2548296
    %v559 = vadd.f32 %v555, 0.2548296
    %v560 = vadd.f32 %v556, 0.2548296
    %v561 = vadd.f32 %v557, 0.2548296
    %v562 = vmul.f32 %v558, %v523
    %v563 = vmul.f32 %v559, %v525
    %v564 = vmul.f32 %v560, %v527
    %v565 = vmul.f32 %v561, %v529
    %v566 = vmul.f32 %v510, %v510
    %v567 = vmul.f32 %v511, %v511
    %v568 = vmul.f32 %v512, %v512
    %v569 = vmul.f32 %v513, %v513
    %v570 = vsub.f32 0.0, %v566
    %v571 = vsub.f32 0.0, %v567
    %v572 = vsub.f32 0.0, %v568
    %v573 = vsub.f32 0.0, %v569
    %v574 = vmul.f32 %v570, 1.442695
    %v575 = vpow.pop %v574
    %v576 = vmul.f32 %v571, 1.442695
    %v577 = vpow.pop %v576
    %v578 = vmul.f32 %v572, 1.442695
    %v579 = vpow.pop %v578
    %v580 = vmul.f32 %v573, 1.442695
    %v581 = vpow.pop %v580
    %v582 = vmul.f32 %v562, %v575
    %v583 = vmul.f32 %v563, %v577
    %v584 = vmul.f32 %v564, %v579
    %v585 = vmul.f32 %v565, %v581
    %v586 = vsub.f32 1.0, %v582
    %v587 = vsub.f32 1.0, %v583
    %v588 = vsub.f32 1.0, %v584
    %v589 = vsub.f32 1.0, %v585
    %vm590 = vcmp.ge.f32.partialorder %v506, 0.0
    %vm591 = vcmp.ge.f32.partialorder %v507, 0.0
    %vm592 = vcmp.ge.f32.partialorder %v508, 0.0
    %vm593 = vcmp.ge.f32.partialorder %v509, 0.0
    %v594 = vsub.f32 0.0, %v586
    %v595 = vsub.f32 0.0, %v587
    %v596 = vsub.f32 0.0, %v588
    %v597 = vsub.f32 0.0, %v589
    %v598 = vsel %vm590, %v586, %v594
    %v599 = vsel %vm591, %v587, %v595
    %v600 = vsel %vm592, %v588, %v596
    %v601 = vsel %vm593, %v589, %v597
    %v602 = vadd.f32 %v598, 1.0
    %v603 = vadd.f32 %v599, 1.0
    %v604 = vadd.f32 %v600, 1.0
    %v605 = vadd.f32 %v601, 1.0
    %v606 = vmul.f32 %v502, %v602
    %v607 = vmul.f32 %v503, %v603
    %v608 = vmul.f32 %v504, %v604
    %v609 = vmul.f32 %v505, %v605
    %s610 = sld [smem:[#allocation8 + $0x33]]
    %v611 = vstv %s610
    %v612 = vmul.f32 %v606, %v611
    %v613 = vmul.f32 %v607, %v611
    %v614 = vmul.f32 %v608, %v611
    %v615 = vmul.f32 %v609, %v611
    %v616 = vadd.f32 %v476, %v612
    %v617 = vadd.f32 %v477, %v613
    %v618 = vadd.f32 %v478, %v614
    %v619 = vadd.f32 %v479, %v615
    %s620 = sld [smem:[#allocation8 + $0x4]]
    %v621 = vstv %s620
    %v622 = vmul.f32 %v52, %v621
    %v623 = vmul.f32 %v53, %v621
    %v624 = vmul.f32 %v54, %v621
    %v625 = vmul.f32 %v55, %v621
    %s626 = sld [smem:[#allocation8 + $0x14]]
    %v627 = vstv %s626
    %v628 = vmul.f32 %v56, %v627
    %v629 = vmul.f32 %v57, %v627
    %v630 = vmul.f32 %v58, %v627
    %v631 = vmul.f32 %v59, %v627
    %v632 = vadd.f32 %v622, %v628
    %v633 = vadd.f32 %v623, %v629
    %v634 = vadd.f32 %v624, %v630
    %v635 = vadd.f32 %v625, %v631
    %s636 = sld [smem:[#allocation8 + $0x24]]
    %v637 = vstv %s636
    %v638 = vadd.f32 %v632, %v637
    %v639 = vadd.f32 %v633, %v637
    %v640 = vadd.f32 %v634, %v637
    %v641 = vadd.f32 %v635, %v637
    %v642 = vmul.f32 %v638, 0.5
    %v643 = vmul.f32 %v639, 0.5
    %v644 = vmul.f32 %v640, 0.5
    %v645 = vmul.f32 %v641, 0.5
    %v646 = vmul.f32 %v638, 0.70710677
    %v647 = vmul.f32 %v639, 0.70710677
    %v648 = vmul.f32 %v640, 0.70710677
    %v649 = vmul.f32 %v641, 0.70710677
    %v650 = vand.u32 2147483647, %v646
    %v651 = vand.u32 2147483647, %v647
    %v652 = vand.u32 2147483647, %v648
    %v653 = vand.u32 2147483647, %v649
    %v654 = vmul.f32 %v650, 0.3275911
    %v655 = vmul.f32 %v651, 0.3275911
    %v656 = vmul.f32 %v652, 0.3275911
    %v657 = vmul.f32 %v653, 0.3275911
    %v658 = vadd.f32 %v654, 1.0
    %v659 = vadd.f32 %v655, 1.0
    %v660 = vadd.f32 %v656, 1.0
    %v661 = vadd.f32 %v657, 1.0
    %v662 = vrcp.pop %v658
    %v663 = vmul.f32 1.0, %v662
    %v664 = vrcp.pop %v659
    %v665 = vmul.f32 1.0, %v664
    %v666 = vrcp.pop %v660
    %v667 = vmul.f32 1.0, %v666
    %v668 = vrcp.pop %v661
    %v669 = vmul.f32 1.0, %v668
    %v670 = vmul.f32 %v663, 1.0614054
    %v671 = vmul.f32 %v665, 1.0614054
    %v672 = vmul.f32 %v667, 1.0614054
    %v673 = vmul.f32 %v669, 1.0614054
    %v674 = vadd.f32 %v670, -1.4531521
    %v675 = vadd.f32 %v671, -1.4531521
    %v676 = vadd.f32 %v672, -1.4531521
    %v677 = vadd.f32 %v673, -1.4531521
    %v678 = vmul.f32 %v674, %v663
    %v679 = vmul.f32 %v675, %v665
    %v680 = vmul.f32 %v676, %v667
    %v681 = vmul.f32 %v677, %v669
    %v682 = vadd.f32 %v678, 1.4214138
    %v683 = vadd.f32 %v679, 1.4214138
    %v684 = vadd.f32 %v680, 1.4214138
    %v685 = vadd.f32 %v681, 1.4214138
    %v686 = vmul.f32 %v682, %v663
    %v687 = vmul.f32 %v683, %v665
    %v688 = vmul.f32 %v684, %v667
    %v689 = vmul.f32 %v685, %v669
    %v690 = vadd.f32 %v686, -0.28449672
    %v691 = vadd.f32 %v687, -0.28449672
    %v692 = vadd.f32 %v688, -0.28449672
    %v693 = vadd.f32 %v689, -0.28449672
    %v694 = vmul.f32 %v690, %v663
    %v695 = vmul.f32 %v691, %v665
    %v696 = vmul.f32 %v692, %v667
    %v697 = vmul.f32 %v693, %v669
    %v698 = vadd.f32 %v694, 0.2548296
    %v699 = vadd.f32 %v695, 0.2548296
    %v700 = vadd.f32 %v696, 0.2548296
    %v701 = vadd.f32 %v697, 0.2548296
    %v702 = vmul.f32 %v698, %v663
    %v703 = vmul.f32 %v699, %v665
    %v704 = vmul.f32 %v700, %v667
    %v705 = vmul.f32 %v701, %v669
    %v706 = vmul.f32 %v650, %v650
    %v707 = vmul.f32 %v651, %v651
    %v708 = vmul.f32 %v652, %v652
    %v709 = vmul.f32 %v653, %v653
    %v710 = vsub.f32 0.0, %v706
    %v711 = vsub.f32 0.0, %v707
    %v712 = vsub.f32 0.0, %v708
    %v713 = vsub.f32 0.0, %v709
    %v714 = vmul.f32 %v710, 1.442695
    %v715 = vpow.pop %v714
    %v716 = vmul.f32 %v711, 1.442695
    %v717 = vpow.pop %v716
    %v718 = vmul.f32 %v712, 1.442695
    %v719 = vpow.pop %v718
    %v720 = vmul.f32 %v713, 1.442695
    %v721 = vpow.pop %v720
    %v722 = vmul.f32 %v702, %v715
    %v723 = vmul.f32 %v703, %v717
    %v724 = vmul.f32 %v704, %v719
    %v725 = vmul.f32 %v705, %v721
    %v726 = vsub.f32 1.0, %v722
    %v727 = vsub.f32 1.0, %v723
    %v728 = vsub.f32 1.0, %v724
    %v729 = vsub.f32 1.0, %v725
    %vm730 = vcmp.ge.f32.partialorder %v646, 0.0
    %vm731 = vcmp.ge.f32.partialorder %v647, 0.0
    %vm732 = vcmp.ge.f32.partialorder %v648, 0.0
    %vm733 = vcmp.ge.f32.partialorder %v649, 0.0
    %v734 = vsub.f32 0.0, %v726
    %v735 = vsub.f32 0.0, %v727
    %v736 = vsub.f32 0.0, %v728
    %v737 = vsub.f32 0.0, %v729
    %v738 = vsel %vm730, %v726, %v734
    %v739 = vsel %vm731, %v727, %v735
    %v740 = vsel %vm732, %v728, %v736
    %v741 = vsel %vm733, %v729, %v737
    %v742 = vadd.f32 %v738, 1.0
    %v743 = vadd.f32 %v739, 1.0
    %v744 = vadd.f32 %v740, 1.0
    %v745 = vadd.f32 %v741, 1.0
    %v746 = vmul.f32 %v642, %v742
    %v747 = vmul.f32 %v643, %v743
    %v748 = vmul.f32 %v644, %v744
    %v749 = vmul.f32 %v645, %v745
    %s750 = sld [smem:[#allocation8 + $0x34]]
    %v751 = vstv %s750
    %v752 = vmul.f32 %v746, %v751
    %v753 = vmul.f32 %v747, %v751
    %v754 = vmul.f32 %v748, %v751
    %v755 = vmul.f32 %v749, %v751
    %v756 = vadd.f32 %v616, %v752
    %v757 = vadd.f32 %v617, %v753
    %v758 = vadd.f32 %v618, %v754
    %v759 = vadd.f32 %v619, %v755
    %s760 = sld [smem:[#allocation8 + $0x5]]
    %v761 = vstv %s760
    %v762 = vmul.f32 %v52, %v761
    %v763 = vmul.f32 %v53, %v761
    %v764 = vmul.f32 %v54, %v761
    %v765 = vmul.f32 %v55, %v761
    %s766 = sld [smem:[#allocation8 + $0x15]]
    %v767 = vstv %s766
    %v768 = vmul.f32 %v56, %v767
    %v769 = vmul.f32 %v57, %v767
    %v770 = vmul.f32 %v58, %v767
    %v771 = vmul.f32 %v59, %v767
    %v772 = vadd.f32 %v762, %v768
    %v773 = vadd.f32 %v763, %v769
    %v774 = vadd.f32 %v764, %v770
    %v775 = vadd.f32 %v765, %v771
    %s776 = sld [smem:[#allocation8 + $0x25]]
    %v777 = vstv %s776
    %v778 = vadd.f32 %v772, %v777
    %v779 = vadd.f32 %v773, %v777
    %v780 = vadd.f32 %v774, %v777
    %v781 = vadd.f32 %v775, %v777
    %v782 = vmul.f32 %v778, 0.5
    %v783 = vmul.f32 %v779, 0.5
    %v784 = vmul.f32 %v780, 0.5
    %v785 = vmul.f32 %v781, 0.5
    %v786 = vmul.f32 %v778, 0.70710677
    %v787 = vmul.f32 %v779, 0.70710677
    %v788 = vmul.f32 %v780, 0.70710677
    %v789 = vmul.f32 %v781, 0.70710677
    %v790 = vand.u32 2147483647, %v786
    %v791 = vand.u32 2147483647, %v787
    %v792 = vand.u32 2147483647, %v788
    %v793 = vand.u32 2147483647, %v789
    %v794 = vmul.f32 %v790, 0.3275911
    %v795 = vmul.f32 %v791, 0.3275911
    %v796 = vmul.f32 %v792, 0.3275911
    %v797 = vmul.f32 %v793, 0.3275911
    %v798 = vadd.f32 %v794, 1.0
    %v799 = vadd.f32 %v795, 1.0
    %v800 = vadd.f32 %v796, 1.0
    %v801 = vadd.f32 %v797, 1.0
    %v802 = vrcp.pop %v798
    %v803 = vmul.f32 1.0, %v802
    %v804 = vrcp.pop %v799
    %v805 = vmul.f32 1.0, %v804
    %v806 = vrcp.pop %v800
    %v807 = vmul.f32 1.0, %v806
    %v808 = vrcp.pop %v801
    %v809 = vmul.f32 1.0, %v808
    %v810 = vmul.f32 %v803, 1.0614054
    %v811 = vmul.f32 %v805, 1.0614054
    %v812 = vmul.f32 %v807, 1.0614054
    %v813 = vmul.f32 %v809, 1.0614054
    %v814 = vadd.f32 %v810, -1.4531521
    %v815 = vadd.f32 %v811, -1.4531521
    %v816 = vadd.f32 %v812, -1.4531521
    %v817 = vadd.f32 %v813, -1.4531521
    %v818 = vmul.f32 %v814, %v803
    %v819 = vmul.f32 %v815, %v805
    %v820 = vmul.f32 %v816, %v807
    %v821 = vmul.f32 %v817, %v809
    %v822 = vadd.f32 %v818, 1.4214138
    %v823 = vadd.f32 %v819, 1.4214138
    %v824 = vadd.f32 %v820, 1.4214138
    %v825 = vadd.f32 %v821, 1.4214138
    %v826 = vmul.f32 %v822, %v803
    %v827 = vmul.f32 %v823, %v805
    %v828 = vmul.f32 %v824, %v807
    %v829 = vmul.f32 %v825, %v809
    %v830 = vadd.f32 %v826, -0.28449672
    %v831 = vadd.f32 %v827, -0.28449672
    %v832 = vadd.f32 %v828, -0.28449672
    %v833 = vadd.f32 %v829, -0.28449672
    %v834 = vmul.f32 %v830, %v803
    %v835 = vmul.f32 %v831, %v805
    %v836 = vmul.f32 %v832, %v807
    %v837 = vmul.f32 %v833, %v809
    %v838 = vadd.f32 %v834, 0.2548296
    %v839 = vadd.f32 %v835, 0.2548296
    %v840 = vadd.f32 %v836, 0.2548296
    %v841 = vadd.f32 %v837, 0.2548296
    %v842 = vmul.f32 %v838, %v803
    %v843 = vmul.f32 %v839, %v805
    %v844 = vmul.f32 %v840, %v807
    %v845 = vmul.f32 %v841, %v809
    %v846 = vmul.f32 %v790, %v790
    %v847 = vmul.f32 %v791, %v791
    %v848 = vmul.f32 %v792, %v792
    %v849 = vmul.f32 %v793, %v793
    %v850 = vsub.f32 0.0, %v846
    %v851 = vsub.f32 0.0, %v847
    %v852 = vsub.f32 0.0, %v848
    %v853 = vsub.f32 0.0, %v849
    %v854 = vmul.f32 %v850, 1.442695
    %v855 = vpow.pop %v854
    %v856 = vmul.f32 %v851, 1.442695
    %v857 = vpow.pop %v856
    %v858 = vmul.f32 %v852, 1.442695
    %v859 = vpow.pop %v858
    %v860 = vmul.f32 %v853, 1.442695
    %v861 = vpow.pop %v860
    %v862 = vmul.f32 %v842, %v855
    %v863 = vmul.f32 %v843, %v857
    %v864 = vmul.f32 %v844, %v859
    %v865 = vmul.f32 %v845, %v861
    %v866 = vsub.f32 1.0, %v862
    %v867 = vsub.f32 1.0, %v863
    %v868 = vsub.f32 1.0, %v864
    %v869 = vsub.f32 1.0, %v865
    %vm870 = vcmp.ge.f32.partialorder %v786, 0.0
    %vm871 = vcmp.ge.f32.partialorder %v787, 0.0
    %vm872 = vcmp.ge.f32.partialorder %v788, 0.0
    %vm873 = vcmp.ge.f32.partialorder %v789, 0.0
    %v874 = vsub.f32 0.0, %v866
    %v875 = vsub.f32 0.0, %v867
    %v876 = vsub.f32 0.0, %v868
    %v877 = vsub.f32 0.0, %v869
    %v878 = vsel %vm870, %v866, %v874
    %v879 = vsel %vm871, %v867, %v875
    %v880 = vsel %vm872, %v868, %v876
    %v881 = vsel %vm873, %v869, %v877
    %v882 = vadd.f32 %v878, 1.0
    %v883 = vadd.f32 %v879, 1.0
    %v884 = vadd.f32 %v880, 1.0
    %v885 = vadd.f32 %v881, 1.0
    %v886 = vmul.f32 %v782, %v882
    %v887 = vmul.f32 %v783, %v883
    %v888 = vmul.f32 %v784, %v884
    %v889 = vmul.f32 %v785, %v885
    %s890 = sld [smem:[#allocation8 + $0x35]]
    %v891 = vstv %s890
    %v892 = vmul.f32 %v886, %v891
    %v893 = vmul.f32 %v887, %v891
    %v894 = vmul.f32 %v888, %v891
    %v895 = vmul.f32 %v889, %v891
    %v896 = vadd.f32 %v756, %v892
    %v897 = vadd.f32 %v757, %v893
    %v898 = vadd.f32 %v758, %v894
    %v899 = vadd.f32 %v759, %v895
    %s900 = sld [smem:[#allocation8 + $0x6]]
    %v901 = vstv %s900
    %v902 = vmul.f32 %v52, %v901
    %v903 = vmul.f32 %v53, %v901
    %v904 = vmul.f32 %v54, %v901
    %v905 = vmul.f32 %v55, %v901
    %s906 = sld [smem:[#allocation8 + $0x16]]
    %v907 = vstv %s906
    %v908 = vmul.f32 %v56, %v907
    %v909 = vmul.f32 %v57, %v907
    %v910 = vmul.f32 %v58, %v907
    %v911 = vmul.f32 %v59, %v907
    %v912 = vadd.f32 %v902, %v908
    %v913 = vadd.f32 %v903, %v909
    %v914 = vadd.f32 %v904, %v910
    %v915 = vadd.f32 %v905, %v911
    %s916 = sld [smem:[#allocation8 + $0x26]]
    %v917 = vstv %s916
    %v918 = vadd.f32 %v912, %v917
    %v919 = vadd.f32 %v913, %v917
    %v920 = vadd.f32 %v914, %v917
    %v921 = vadd.f32 %v915, %v917
    %v922 = vmul.f32 %v918, 0.5
    %v923 = vmul.f32 %v919, 0.5
    %v924 = vmul.f32 %v920, 0.5
    %v925 = vmul.f32 %v921, 0.5
    %v926 = vmul.f32 %v918, 0.70710677
    %v927 = vmul.f32 %v919, 0.70710677
    %v928 = vmul.f32 %v920, 0.70710677
    %v929 = vmul.f32 %v921, 0.70710677
    %v930 = vand.u32 2147483647, %v926
    %v931 = vand.u32 2147483647, %v927
    %v932 = vand.u32 2147483647, %v928
    %v933 = vand.u32 2147483647, %v929
    %v934 = vmul.f32 %v930, 0.3275911
    %v935 = vmul.f32 %v931, 0.3275911
    %v936 = vmul.f32 %v932, 0.3275911
    %v937 = vmul.f32 %v933, 0.3275911
    %v938 = vadd.f32 %v934, 1.0
    %v939 = vadd.f32 %v935, 1.0
    %v940 = vadd.f32 %v936, 1.0
    %v941 = vadd.f32 %v937, 1.0
    %v942 = vrcp.pop %v938
    %v943 = vmul.f32 1.0, %v942
    %v944 = vrcp.pop %v939
    %v945 = vmul.f32 1.0, %v944
    %v946 = vrcp.pop %v940
    %v947 = vmul.f32 1.0, %v946
    %v948 = vrcp.pop %v941
    %v949 = vmul.f32 1.0, %v948
    %v950 = vmul.f32 %v943, 1.0614054
    %v951 = vmul.f32 %v945, 1.0614054
    %v952 = vmul.f32 %v947, 1.0614054
    %v953 = vmul.f32 %v949, 1.0614054
    %v954 = vadd.f32 %v950, -1.4531521
    %v955 = vadd.f32 %v951, -1.4531521
    %v956 = vadd.f32 %v952, -1.4531521
    %v957 = vadd.f32 %v953, -1.4531521
    %v958 = vmul.f32 %v954, %v943
    %v959 = vmul.f32 %v955, %v945
    %v960 = vmul.f32 %v956, %v947
    %v961 = vmul.f32 %v957, %v949
    %v962 = vadd.f32 %v958, 1.4214138
    %v963 = vadd.f32 %v959, 1.4214138
    %v964 = vadd.f32 %v960, 1.4214138
    %v965 = vadd.f32 %v961, 1.4214138
    %v966 = vmul.f32 %v962, %v943
    %v967 = vmul.f32 %v963, %v945
    %v968 = vmul.f32 %v964, %v947
    %v969 = vmul.f32 %v965, %v949
    %v970 = vadd.f32 %v966, -0.28449672
    %v971 = vadd.f32 %v967, -0.28449672
    %v972 = vadd.f32 %v968, -0.28449672
    %v973 = vadd.f32 %v969, -0.28449672
    %v974 = vmul.f32 %v970, %v943
    %v975 = vmul.f32 %v971, %v945
    %v976 = vmul.f32 %v972, %v947
    %v977 = vmul.f32 %v973, %v949
    %v978 = vadd.f32 %v974, 0.2548296
    %v979 = vadd.f32 %v975, 0.2548296
    %v980 = vadd.f32 %v976, 0.2548296
    %v981 = vadd.f32 %v977, 0.2548296
    %v982 = vmul.f32 %v978, %v943
    %v983 = vmul.f32 %v979, %v945
    %v984 = vmul.f32 %v980, %v947
    %v985 = vmul.f32 %v981, %v949
    %v986 = vmul.f32 %v930, %v930
    %v987 = vmul.f32 %v931, %v931
    %v988 = vmul.f32 %v932, %v932
    %v989 = vmul.f32 %v933, %v933
    %v990 = vsub.f32 0.0, %v986
    %v991 = vsub.f32 0.0, %v987
    %v992 = vsub.f32 0.0, %v988
    %v993 = vsub.f32 0.0, %v989
    %v994 = vmul.f32 %v990, 1.442695
    %v995 = vpow.pop %v994
    %v996 = vmul.f32 %v991, 1.442695
    %v997 = vpow.pop %v996
    %v998 = vmul.f32 %v992, 1.442695
    %v999 = vpow.pop %v998
    %v1000 = vmul.f32 %v993, 1.442695
    %v1001 = vpow.pop %v1000
    %v1002 = vmul.f32 %v982, %v995
    %v1003 = vmul.f32 %v983, %v997
    %v1004 = vmul.f32 %v984, %v999
    %v1005 = vmul.f32 %v985, %v1001
    %v1006 = vsub.f32 1.0, %v1002
    %v1007 = vsub.f32 1.0, %v1003
    %v1008 = vsub.f32 1.0, %v1004
    %v1009 = vsub.f32 1.0, %v1005
    %vm1010 = vcmp.ge.f32.partialorder %v926, 0.0
    %vm1011 = vcmp.ge.f32.partialorder %v927, 0.0
    %vm1012 = vcmp.ge.f32.partialorder %v928, 0.0
    %vm1013 = vcmp.ge.f32.partialorder %v929, 0.0
    %v1014 = vsub.f32 0.0, %v1006
    %v1015 = vsub.f32 0.0, %v1007
    %v1016 = vsub.f32 0.0, %v1008
    %v1017 = vsub.f32 0.0, %v1009
    %v1018 = vsel %vm1010, %v1006, %v1014
    %v1019 = vsel %vm1011, %v1007, %v1015
    %v1020 = vsel %vm1012, %v1008, %v1016
    %v1021 = vsel %vm1013, %v1009, %v1017
    %v1022 = vadd.f32 %v1018, 1.0
    %v1023 = vadd.f32 %v1019, 1.0
    %v1024 = vadd.f32 %v1020, 1.0
    %v1025 = vadd.f32 %v1021, 1.0
    %v1026 = vmul.f32 %v922, %v1022
    %v1027 = vmul.f32 %v923, %v1023
    %v1028 = vmul.f32 %v924, %v1024
    %v1029 = vmul.f32 %v925, %v1025
    %s1030 = sld [smem:[#allocation8 + $0x36]]
    %v1031 = vstv %s1030
    %v1032 = vmul.f32 %v1026, %v1031
    %v1033 = vmul.f32 %v1027, %v1031
    %v1034 = vmul.f32 %v1028, %v1031
    %v1035 = vmul.f32 %v1029, %v1031
    %v1036 = vadd.f32 %v896, %v1032
    %v1037 = vadd.f32 %v897, %v1033
    %v1038 = vadd.f32 %v898, %v1034
    %v1039 = vadd.f32 %v899, %v1035
    %s1040 = sld [smem:[#allocation8 + $0x7]]
    %v1041 = vstv %s1040
    %v1042 = vmul.f32 %v52, %v1041
    %v1043 = vmul.f32 %v53, %v1041
    %v1044 = vmul.f32 %v54, %v1041
    %v1045 = vmul.f32 %v55, %v1041
    %s1046 = sld [smem:[#allocation8 + $0x17]]
    %v1047 = vstv %s1046
    %v1048 = vmul.f32 %v56, %v1047
    %v1049 = vmul.f32 %v57, %v1047
    %v1050 = vmul.f32 %v58, %v1047
    %v1051 = vmul.f32 %v59, %v1047
    %v1052 = vadd.f32 %v1042, %v1048
    %v1053 = vadd.f32 %v1043, %v1049
    %v1054 = vadd.f32 %v1044, %v1050
    %v1055 = vadd.f32 %v1045, %v1051
    %s1056 = sld [smem:[#allocation8 + $0x27]]
    %v1057 = vstv %s1056
    %v1058 = vadd.f32 %v1052, %v1057
    %v1059 = vadd.f32 %v1053, %v1057
    %v1060 = vadd.f32 %v1054, %v1057
    %v1061 = vadd.f32 %v1055, %v1057
    %v1062 = vmul.f32 %v1058, 0.5
    %v1063 = vmul.f32 %v1059, 0.5
    %v1064 = vmul.f32 %v1060, 0.5
    %v1065 = vmul.f32 %v1061, 0.5
    %v1066 = vmul.f32 %v1058, 0.70710677
    %v1067 = vmul.f32 %v1059, 0.70710677
    %v1068 = vmul.f32 %v1060, 0.70710677
    %v1069 = vmul.f32 %v1061, 0.70710677
    %v1070 = vand.u32 2147483647, %v1066
    %v1071 = vand.u32 2147483647, %v1067
    %v1072 = vand.u32 2147483647, %v1068
    %v1073 = vand.u32 2147483647, %v1069
    %v1074 = vmul.f32 %v1070, 0.3275911
    %v1075 = vmul.f32 %v1071, 0.3275911
    %v1076 = vmul.f32 %v1072, 0.3275911
    %v1077 = vmul.f32 %v1073, 0.3275911
    %v1078 = vadd.f32 %v1074, 1.0
    %v1079 = vadd.f32 %v1075, 1.0
    %v1080 = vadd.f32 %v1076, 1.0
    %v1081 = vadd.f32 %v1077, 1.0
    %v1082 = vrcp.pop %v1078
    %v1083 = vmul.f32 1.0, %v1082
    %v1084 = vrcp.pop %v1079
    %v1085 = vmul.f32 1.0, %v1084
    %v1086 = vrcp.pop %v1080
    %v1087 = vmul.f32 1.0, %v1086
    %v1088 = vrcp.pop %v1081
    %v1089 = vmul.f32 1.0, %v1088
    %v1090 = vmul.f32 %v1083, 1.0614054
    %v1091 = vmul.f32 %v1085, 1.0614054
    %v1092 = vmul.f32 %v1087, 1.0614054
    %v1093 = vmul.f32 %v1089, 1.0614054
    %v1094 = vadd.f32 %v1090, -1.4531521
    %v1095 = vadd.f32 %v1091, -1.4531521
    %v1096 = vadd.f32 %v1092, -1.4531521
    %v1097 = vadd.f32 %v1093, -1.4531521
    %v1098 = vmul.f32 %v1094, %v1083
    %v1099 = vmul.f32 %v1095, %v1085
    %v1100 = vmul.f32 %v1096, %v1087
    %v1101 = vmul.f32 %v1097, %v1089
    %v1102 = vadd.f32 %v1098, 1.4214138
    %v1103 = vadd.f32 %v1099, 1.4214138
    %v1104 = vadd.f32 %v1100, 1.4214138
    %v1105 = vadd.f32 %v1101, 1.4214138
    %v1106 = vmul.f32 %v1102, %v1083
    %v1107 = vmul.f32 %v1103, %v1085
    %v1108 = vmul.f32 %v1104, %v1087
    %v1109 = vmul.f32 %v1105, %v1089
    %v1110 = vadd.f32 %v1106, -0.28449672
    %v1111 = vadd.f32 %v1107, -0.28449672
    %v1112 = vadd.f32 %v1108, -0.28449672
    %v1113 = vadd.f32 %v1109, -0.28449672
    %v1114 = vmul.f32 %v1110, %v1083
    %v1115 = vmul.f32 %v1111, %v1085
    %v1116 = vmul.f32 %v1112, %v1087
    %v1117 = vmul.f32 %v1113, %v1089
    %v1118 = vadd.f32 %v1114, 0.2548296
    %v1119 = vadd.f32 %v1115, 0.2548296
    %v1120 = vadd.f32 %v1116, 0.2548296
    %v1121 = vadd.f32 %v1117, 0.2548296
    %v1122 = vmul.f32 %v1118, %v1083
    %v1123 = vmul.f32 %v1119, %v1085
    %v1124 = vmul.f32 %v1120, %v1087
    %v1125 = vmul.f32 %v1121, %v1089
    %v1126 = vmul.f32 %v1070, %v1070
    %v1127 = vmul.f32 %v1071, %v1071
    %v1128 = vmul.f32 %v1072, %v1072
    %v1129 = vmul.f32 %v1073, %v1073
    %v1130 = vsub.f32 0.0, %v1126
    %v1131 = vsub.f32 0.0, %v1127
    %v1132 = vsub.f32 0.0, %v1128
    %v1133 = vsub.f32 0.0, %v1129
    %v1134 = vmul.f32 %v1130, 1.442695
    %v1135 = vpow.pop %v1134
    %v1136 = vmul.f32 %v1131, 1.442695
    %v1137 = vpow.pop %v1136
    %v1138 = vmul.f32 %v1132, 1.442695
    %v1139 = vpow.pop %v1138
    %v1140 = vmul.f32 %v1133, 1.442695
    %v1141 = vpow.pop %v1140
    %v1142 = vmul.f32 %v1122, %v1135
    %v1143 = vmul.f32 %v1123, %v1137
    %v1144 = vmul.f32 %v1124, %v1139
    %v1145 = vmul.f32 %v1125, %v1141
    %v1146 = vsub.f32 1.0, %v1142
    %v1147 = vsub.f32 1.0, %v1143
    %v1148 = vsub.f32 1.0, %v1144
    %v1149 = vsub.f32 1.0, %v1145
    %vm1150 = vcmp.ge.f32.partialorder %v1066, 0.0
    %vm1151 = vcmp.ge.f32.partialorder %v1067, 0.0
    %vm1152 = vcmp.ge.f32.partialorder %v1068, 0.0
    %vm1153 = vcmp.ge.f32.partialorder %v1069, 0.0
    %v1154 = vsub.f32 0.0, %v1146
    %v1155 = vsub.f32 0.0, %v1147
    %v1156 = vsub.f32 0.0, %v1148
    %v1157 = vsub.f32 0.0, %v1149
    %v1158 = vsel %vm1150, %v1146, %v1154
    %v1159 = vsel %vm1151, %v1147, %v1155
    %v1160 = vsel %vm1152, %v1148, %v1156
    %v1161 = vsel %vm1153, %v1149, %v1157
    %v1162 = vadd.f32 %v1158, 1.0
    %v1163 = vadd.f32 %v1159, 1.0
    %v1164 = vadd.f32 %v1160, 1.0
    %v1165 = vadd.f32 %v1161, 1.0
    %v1166 = vmul.f32 %v1062, %v1162
    %v1167 = vmul.f32 %v1063, %v1163
    %v1168 = vmul.f32 %v1064, %v1164
    %v1169 = vmul.f32 %v1065, %v1165
    %s1170 = sld [smem:[#allocation8 + $0x37]]
    %v1171 = vstv %s1170
    %v1172 = vmul.f32 %v1166, %v1171
    %v1173 = vmul.f32 %v1167, %v1171
    %v1174 = vmul.f32 %v1168, %v1171
    %v1175 = vmul.f32 %v1169, %v1171
    %v1176 = vadd.f32 %v1036, %v1172
    %v1177 = vadd.f32 %v1037, %v1173
    %v1178 = vadd.f32 %v1038, %v1174
    %v1179 = vadd.f32 %v1039, %v1175
    %s1180 = sld [smem:[#allocation8 + $0x8]]
    %v1181 = vstv %s1180
    %v1182 = vmul.f32 %v52, %v1181
    %v1183 = vmul.f32 %v53, %v1181
    %v1184 = vmul.f32 %v54, %v1181
    %v1185 = vmul.f32 %v55, %v1181
    %s1186 = sld [smem:[#allocation8 + $0x18]]
    %v1187 = vstv %s1186
    %v1188 = vmul.f32 %v56, %v1187
    %v1189 = vmul.f32 %v57, %v1187
    %v1190 = vmul.f32 %v58, %v1187
    %v1191 = vmul.f32 %v59, %v1187
    %v1192 = vadd.f32 %v1182, %v1188
    %v1193 = vadd.f32 %v1183, %v1189
    %v1194 = vadd.f32 %v1184, %v1190
    %v1195 = vadd.f32 %v1185, %v1191
    %s1196 = sld [smem:[#allocation8 + $0x28]]
    %v1197 = vstv %s1196
    %v1198 = vadd.f32 %v1192, %v1197
    %v1199 = vadd.f32 %v1193, %v1197
    %v1200 = vadd.f32 %v1194, %v1197
    %v1201 = vadd.f32 %v1195, %v1197
    %v1202 = vmul.f32 %v1198, 0.5
    %v1203 = vmul.f32 %v1199, 0.5
    %v1204 = vmul.f32 %v1200, 0.5
    %v1205 = vmul.f32 %v1201, 0.5
    %v1206 = vmul.f32 %v1198, 0.70710677
    %v1207 = vmul.f32 %v1199, 0.70710677
    %v1208 = vmul.f32 %v1200, 0.70710677
    %v1209 = vmul.f32 %v1201, 0.70710677
    %v1210 = vand.u32 2147483647, %v1206
    %v1211 = vand.u32 2147483647, %v1207
    %v1212 = vand.u32 2147483647, %v1208
    %v1213 = vand.u32 2147483647, %v1209
    %v1214 = vmul.f32 %v1210, 0.3275911
    %v1215 = vmul.f32 %v1211, 0.3275911
    %v1216 = vmul.f32 %v1212, 0.3275911
    %v1217 = vmul.f32 %v1213, 0.3275911
    %v1218 = vadd.f32 %v1214, 1.0
    %v1219 = vadd.f32 %v1215, 1.0
    %v1220 = vadd.f32 %v1216, 1.0
    %v1221 = vadd.f32 %v1217, 1.0
    %v1222 = vrcp.pop %v1218
    %v1223 = vmul.f32 1.0, %v1222
    %v1224 = vrcp.pop %v1219
    %v1225 = vmul.f32 1.0, %v1224
    %v1226 = vrcp.pop %v1220
    %v1227 = vmul.f32 1.0, %v1226
    %v1228 = vrcp.pop %v1221
    %v1229 = vmul.f32 1.0, %v1228
    %v1230 = vmul.f32 %v1223, 1.0614054
    %v1231 = vmul.f32 %v1225, 1.0614054
    %v1232 = vmul.f32 %v1227, 1.0614054
    %v1233 = vmul.f32 %v1229, 1.0614054
    %v1234 = vadd.f32 %v1230, -1.4531521
    %v1235 = vadd.f32 %v1231, -1.4531521
    %v1236 = vadd.f32 %v1232, -1.4531521
    %v1237 = vadd.f32 %v1233, -1.4531521
    %v1238 = vmul.f32 %v1234, %v1223
    %v1239 = vmul.f32 %v1235, %v1225
    %v1240 = vmul.f32 %v1236, %v1227
    %v1241 = vmul.f32 %v1237, %v1229
    %v1242 = vadd.f32 %v1238, 1.4214138
    %v1243 = vadd.f32 %v1239, 1.4214138
    %v1244 = vadd.f32 %v1240, 1.4214138
    %v1245 = vadd.f32 %v1241, 1.4214138
    %v1246 = vmul.f32 %v1242, %v1223
    %v1247 = vmul.f32 %v1243, %v1225
    %v1248 = vmul.f32 %v1244, %v1227
    %v1249 = vmul.f32 %v1245, %v1229
    %v1250 = vadd.f32 %v1246, -0.28449672
    %v1251 = vadd.f32 %v1247, -0.28449672
    %v1252 = vadd.f32 %v1248, -0.28449672
    %v1253 = vadd.f32 %v1249, -0.28449672
    %v1254 = vmul.f32 %v1250, %v1223
    %v1255 = vmul.f32 %v1251, %v1225
    %v1256 = vmul.f32 %v1252, %v1227
    %v1257 = vmul.f32 %v1253, %v1229
    %v1258 = vadd.f32 %v1254, 0.2548296
    %v1259 = vadd.f32 %v1255, 0.2548296
    %v1260 = vadd.f32 %v1256, 0.2548296
    %v1261 = vadd.f32 %v1257, 0.2548296
    %v1262 = vmul.f32 %v1258, %v1223
    %v1263 = vmul.f32 %v1259, %v1225
    %v1264 = vmul.f32 %v1260, %v1227
    %v1265 = vmul.f32 %v1261, %v1229
    %v1266 = vmul.f32 %v1210, %v1210
    %v1267 = vmul.f32 %v1211, %v1211
    %v1268 = vmul.f32 %v1212, %v1212
    %v1269 = vmul.f32 %v1213, %v1213
    %v1270 = vsub.f32 0.0, %v1266
    %v1271 = vsub.f32 0.0, %v1267
    %v1272 = vsub.f32 0.0, %v1268
    %v1273 = vsub.f32 0.0, %v1269
    %v1274 = vmul.f32 %v1270, 1.442695
    %v1275 = vpow.pop %v1274
    %v1276 = vmul.f32 %v1271, 1.442695
    %v1277 = vpow.pop %v1276
    %v1278 = vmul.f32 %v1272, 1.442695
    %v1279 = vpow.pop %v1278
    %v1280 = vmul.f32 %v1273, 1.442695
    %v1281 = vpow.pop %v1280
    %v1282 = vmul.f32 %v1262, %v1275
    %v1283 = vmul.f32 %v1263, %v1277
    %v1284 = vmul.f32 %v1264, %v1279
    %v1285 = vmul.f32 %v1265, %v1281
    %v1286 = vsub.f32 1.0, %v1282
    %v1287 = vsub.f32 1.0, %v1283
    %v1288 = vsub.f32 1.0, %v1284
    %v1289 = vsub.f32 1.0, %v1285
    %vm1290 = vcmp.ge.f32.partialorder %v1206, 0.0
    %vm1291 = vcmp.ge.f32.partialorder %v1207, 0.0
    %vm1292 = vcmp.ge.f32.partialorder %v1208, 0.0
    %vm1293 = vcmp.ge.f32.partialorder %v1209, 0.0
    %v1294 = vsub.f32 0.0, %v1286
    %v1295 = vsub.f32 0.0, %v1287
    %v1296 = vsub.f32 0.0, %v1288
    %v1297 = vsub.f32 0.0, %v1289
    %v1298 = vsel %vm1290, %v1286, %v1294
    %v1299 = vsel %vm1291, %v1287, %v1295
    %v1300 = vsel %vm1292, %v1288, %v1296
    %v1301 = vsel %vm1293, %v1289, %v1297
    %v1302 = vadd.f32 %v1298, 1.0
    %v1303 = vadd.f32 %v1299, 1.0
    %v1304 = vadd.f32 %v1300, 1.0
    %v1305 = vadd.f32 %v1301, 1.0
    %v1306 = vmul.f32 %v1202, %v1302
    %v1307 = vmul.f32 %v1203, %v1303
    %v1308 = vmul.f32 %v1204, %v1304
    %v1309 = vmul.f32 %v1205, %v1305
    %s1310 = sld [smem:[#allocation8 + $0x38]]
    %v1311 = vstv %s1310
    %v1312 = vmul.f32 %v1306, %v1311
    %v1313 = vmul.f32 %v1307, %v1311
    %v1314 = vmul.f32 %v1308, %v1311
    %v1315 = vmul.f32 %v1309, %v1311
    %v1316 = vadd.f32 %v1176, %v1312
    %v1317 = vadd.f32 %v1177, %v1313
    %v1318 = vadd.f32 %v1178, %v1314
    %v1319 = vadd.f32 %v1179, %v1315
    %s1320 = sld [smem:[#allocation8 + $0x9]]
    %v1321 = vstv %s1320
    %v1322 = vmul.f32 %v52, %v1321
    %v1323 = vmul.f32 %v53, %v1321
    %v1324 = vmul.f32 %v54, %v1321
    %v1325 = vmul.f32 %v55, %v1321
    %s1326 = sld [smem:[#allocation8 + $0x19]]
    %v1327 = vstv %s1326
    %v1328 = vmul.f32 %v56, %v1327
    %v1329 = vmul.f32 %v57, %v1327
    %v1330 = vmul.f32 %v58, %v1327
    %v1331 = vmul.f32 %v59, %v1327
    %v1332 = vadd.f32 %v1322, %v1328
    %v1333 = vadd.f32 %v1323, %v1329
    %v1334 = vadd.f32 %v1324, %v1330
    %v1335 = vadd.f32 %v1325, %v1331
    %s1336 = sld [smem:[#allocation8 + $0x29]]
    %v1337 = vstv %s1336
    %v1338 = vadd.f32 %v1332, %v1337
    %v1339 = vadd.f32 %v1333, %v1337
    %v1340 = vadd.f32 %v1334, %v1337
    %v1341 = vadd.f32 %v1335, %v1337
    %v1342 = vmul.f32 %v1338, 0.5
    %v1343 = vmul.f32 %v1339, 0.5
    %v1344 = vmul.f32 %v1340, 0.5
    %v1345 = vmul.f32 %v1341, 0.5
    %v1346 = vmul.f32 %v1338, 0.70710677
    %v1347 = vmul.f32 %v1339, 0.70710677
    %v1348 = vmul.f32 %v1340, 0.70710677
    %v1349 = vmul.f32 %v1341, 0.70710677
    %v1350 = vand.u32 2147483647, %v1346
    %v1351 = vand.u32 2147483647, %v1347
    %v1352 = vand.u32 2147483647, %v1348
    %v1353 = vand.u32 2147483647, %v1349
    %v1354 = vmul.f32 %v1350, 0.3275911
    %v1355 = vmul.f32 %v1351, 0.3275911
    %v1356 = vmul.f32 %v1352, 0.3275911
    %v1357 = vmul.f32 %v1353, 0.3275911
    %v1358 = vadd.f32 %v1354, 1.0
    %v1359 = vadd.f32 %v1355, 1.0
    %v1360 = vadd.f32 %v1356, 1.0
    %v1361 = vadd.f32 %v1357, 1.0
    %v1362 = vrcp.pop %v1358
    %v1363 = vmul.f32 1.0, %v1362
    %v1364 = vrcp.pop %v1359
    %v1365 = vmul.f32 1.0, %v1364
    %v1366 = vrcp.pop %v1360
    %v1367 = vmul.f32 1.0, %v1366
    %v1368 = vrcp.pop %v1361
    %v1369 = vmul.f32 1.0, %v1368
    %v1370 = vmul.f32 %v1363, 1.0614054
    %v1371 = vmul.f32 %v1365, 1.0614054
    %v1372 = vmul.f32 %v1367, 1.0614054
    %v1373 = vmul.f32 %v1369, 1.0614054
    %v1374 = vadd.f32 %v1370, -1.4531521
    %v1375 = vadd.f32 %v1371, -1.4531521
    %v1376 = vadd.f32 %v1372, -1.4531521
    %v1377 = vadd.f32 %v1373, -1.4531521
    %v1378 = vmul.f32 %v1374, %v1363
    %v1379 = vmul.f32 %v1375, %v1365
    %v1380 = vmul.f32 %v1376, %v1367
    %v1381 = vmul.f32 %v1377, %v1369
    %v1382 = vadd.f32 %v1378, 1.4214138
    %v1383 = vadd.f32 %v1379, 1.4214138
    %v1384 = vadd.f32 %v1380, 1.4214138
    %v1385 = vadd.f32 %v1381, 1.4214138
    %v1386 = vmul.f32 %v1382, %v1363
    %v1387 = vmul.f32 %v1383, %v1365
    %v1388 = vmul.f32 %v1384, %v1367
    %v1389 = vmul.f32 %v1385, %v1369
    %v1390 = vadd.f32 %v1386, -0.28449672
    %v1391 = vadd.f32 %v1387, -0.28449672
    %v1392 = vadd.f32 %v1388, -0.28449672
    %v1393 = vadd.f32 %v1389, -0.28449672
    %v1394 = vmul.f32 %v1390, %v1363
    %v1395 = vmul.f32 %v1391, %v1365
    %v1396 = vmul.f32 %v1392, %v1367
    %v1397 = vmul.f32 %v1393, %v1369
    %v1398 = vadd.f32 %v1394, 0.2548296
    %v1399 = vadd.f32 %v1395, 0.2548296
    %v1400 = vadd.f32 %v1396, 0.2548296
    %v1401 = vadd.f32 %v1397, 0.2548296
    %v1402 = vmul.f32 %v1398, %v1363
    %v1403 = vmul.f32 %v1399, %v1365
    %v1404 = vmul.f32 %v1400, %v1367
    %v1405 = vmul.f32 %v1401, %v1369
    %v1406 = vmul.f32 %v1350, %v1350
    %v1407 = vmul.f32 %v1351, %v1351
    %v1408 = vmul.f32 %v1352, %v1352
    %v1409 = vmul.f32 %v1353, %v1353
    %v1410 = vsub.f32 0.0, %v1406
    %v1411 = vsub.f32 0.0, %v1407
    %v1412 = vsub.f32 0.0, %v1408
    %v1413 = vsub.f32 0.0, %v1409
    %v1414 = vmul.f32 %v1410, 1.442695
    %v1415 = vpow.pop %v1414
    %v1416 = vmul.f32 %v1411, 1.442695
    %v1417 = vpow.pop %v1416
    %v1418 = vmul.f32 %v1412, 1.442695
    %v1419 = vpow.pop %v1418
    %v1420 = vmul.f32 %v1413, 1.442695
    %v1421 = vpow.pop %v1420
    %v1422 = vmul.f32 %v1402, %v1415
    %v1423 = vmul.f32 %v1403, %v1417
    %v1424 = vmul.f32 %v1404, %v1419
    %v1425 = vmul.f32 %v1405, %v1421
    %v1426 = vsub.f32 1.0, %v1422
    %v1427 = vsub.f32 1.0, %v1423
    %v1428 = vsub.f32 1.0, %v1424
    %v1429 = vsub.f32 1.0, %v1425
    %vm1430 = vcmp.ge.f32.partialorder %v1346, 0.0
    %vm1431 = vcmp.ge.f32.partialorder %v1347, 0.0
    %vm1432 = vcmp.ge.f32.partialorder %v1348, 0.0
    %vm1433 = vcmp.ge.f32.partialorder %v1349, 0.0
    %v1434 = vsub.f32 0.0, %v1426
    %v1435 = vsub.f32 0.0, %v1427
    %v1436 = vsub.f32 0.0, %v1428
    %v1437 = vsub.f32 0.0, %v1429
    %v1438 = vsel %vm1430, %v1426, %v1434
    %v1439 = vsel %vm1431, %v1427, %v1435
    %v1440 = vsel %vm1432, %v1428, %v1436
    %v1441 = vsel %vm1433, %v1429, %v1437
    %v1442 = vadd.f32 %v1438, 1.0
    %v1443 = vadd.f32 %v1439, 1.0
    %v1444 = vadd.f32 %v1440, 1.0
    %v1445 = vadd.f32 %v1441, 1.0
    %v1446 = vmul.f32 %v1342, %v1442
    %v1447 = vmul.f32 %v1343, %v1443
    %v1448 = vmul.f32 %v1344, %v1444
    %v1449 = vmul.f32 %v1345, %v1445
    %s1450 = sld [smem:[#allocation8 + $0x39]]
    %v1451 = vstv %s1450
    %v1452 = vmul.f32 %v1446, %v1451
    %v1453 = vmul.f32 %v1447, %v1451
    %v1454 = vmul.f32 %v1448, %v1451
    %v1455 = vmul.f32 %v1449, %v1451
    %v1456 = vadd.f32 %v1316, %v1452
    %v1457 = vadd.f32 %v1317, %v1453
    %v1458 = vadd.f32 %v1318, %v1454
    %v1459 = vadd.f32 %v1319, %v1455
    %s1460 = sld [smem:[#allocation8 + $0xa]]
    %v1461 = vstv %s1460
    %v1462 = vmul.f32 %v52, %v1461
    %v1463 = vmul.f32 %v53, %v1461
    %v1464 = vmul.f32 %v54, %v1461
    %v1465 = vmul.f32 %v55, %v1461
    %s1466 = sld [smem:[#allocation8 + $0x1a]]
    %v1467 = vstv %s1466
    %v1468 = vmul.f32 %v56, %v1467
    %v1469 = vmul.f32 %v57, %v1467
    %v1470 = vmul.f32 %v58, %v1467
    %v1471 = vmul.f32 %v59, %v1467
    %v1472 = vadd.f32 %v1462, %v1468
    %v1473 = vadd.f32 %v1463, %v1469
    %v1474 = vadd.f32 %v1464, %v1470
    %v1475 = vadd.f32 %v1465, %v1471
    %s1476 = sld [smem:[#allocation8 + $0x2a]]
    %v1477 = vstv %s1476
    %v1478 = vadd.f32 %v1472, %v1477
    %v1479 = vadd.f32 %v1473, %v1477
    %v1480 = vadd.f32 %v1474, %v1477
    %v1481 = vadd.f32 %v1475, %v1477
    %v1482 = vmul.f32 %v1478, 0.5
    %v1483 = vmul.f32 %v1479, 0.5
    %v1484 = vmul.f32 %v1480, 0.5
    %v1485 = vmul.f32 %v1481, 0.5
    %v1486 = vmul.f32 %v1478, 0.70710677
    %v1487 = vmul.f32 %v1479, 0.70710677
    %v1488 = vmul.f32 %v1480, 0.70710677
    %v1489 = vmul.f32 %v1481, 0.70710677
    %v1490 = vand.u32 2147483647, %v1486
    %v1491 = vand.u32 2147483647, %v1487
    %v1492 = vand.u32 2147483647, %v1488
    %v1493 = vand.u32 2147483647, %v1489
    %v1494 = vmul.f32 %v1490, 0.3275911
    %v1495 = vmul.f32 %v1491, 0.3275911
    %v1496 = vmul.f32 %v1492, 0.3275911
    %v1497 = vmul.f32 %v1493, 0.3275911
    %v1498 = vadd.f32 %v1494, 1.0
    %v1499 = vadd.f32 %v1495, 1.0
    %v1500 = vadd.f32 %v1496, 1.0
    %v1501 = vadd.f32 %v1497, 1.0
    %v1502 = vrcp.pop %v1498
    %v1503 = vmul.f32 1.0, %v1502
    %v1504 = vrcp.pop %v1499
    %v1505 = vmul.f32 1.0, %v1504
    %v1506 = vrcp.pop %v1500
    %v1507 = vmul.f32 1.0, %v1506
    %v1508 = vrcp.pop %v1501
    %v1509 = vmul.f32 1.0, %v1508
    %v1510 = vmul.f32 %v1503, 1.0614054
    %v1511 = vmul.f32 %v1505, 1.0614054
    %v1512 = vmul.f32 %v1507, 1.0614054
    %v1513 = vmul.f32 %v1509, 1.0614054
    %v1514 = vadd.f32 %v1510, -1.4531521
    %v1515 = vadd.f32 %v1511, -1.4531521
    %v1516 = vadd.f32 %v1512, -1.4531521
    %v1517 = vadd.f32 %v1513, -1.4531521
    %v1518 = vmul.f32 %v1514, %v1503
    %v1519 = vmul.f32 %v1515, %v1505
    %v1520 = vmul.f32 %v1516, %v1507
    %v1521 = vmul.f32 %v1517, %v1509
    %v1522 = vadd.f32 %v1518, 1.4214138
    %v1523 = vadd.f32 %v1519, 1.4214138
    %v1524 = vadd.f32 %v1520, 1.4214138
    %v1525 = vadd.f32 %v1521, 1.4214138
    %v1526 = vmul.f32 %v1522, %v1503
    %v1527 = vmul.f32 %v1523, %v1505
    %v1528 = vmul.f32 %v1524, %v1507
    %v1529 = vmul.f32 %v1525, %v1509
    %v1530 = vadd.f32 %v1526, -0.28449672
    %v1531 = vadd.f32 %v1527, -0.28449672
    %v1532 = vadd.f32 %v1528, -0.28449672
    %v1533 = vadd.f32 %v1529, -0.28449672
    %v1534 = vmul.f32 %v1530, %v1503
    %v1535 = vmul.f32 %v1531, %v1505
    %v1536 = vmul.f32 %v1532, %v1507
    %v1537 = vmul.f32 %v1533, %v1509
    %v1538 = vadd.f32 %v1534, 0.2548296
    %v1539 = vadd.f32 %v1535, 0.2548296
    %v1540 = vadd.f32 %v1536, 0.2548296
    %v1541 = vadd.f32 %v1537, 0.2548296
    %v1542 = vmul.f32 %v1538, %v1503
    %v1543 = vmul.f32 %v1539, %v1505
    %v1544 = vmul.f32 %v1540, %v1507
    %v1545 = vmul.f32 %v1541, %v1509
    %v1546 = vmul.f32 %v1490, %v1490
    %v1547 = vmul.f32 %v1491, %v1491
    %v1548 = vmul.f32 %v1492, %v1492
    %v1549 = vmul.f32 %v1493, %v1493
    %v1550 = vsub.f32 0.0, %v1546
    %v1551 = vsub.f32 0.0, %v1547
    %v1552 = vsub.f32 0.0, %v1548
    %v1553 = vsub.f32 0.0, %v1549
    %v1554 = vmul.f32 %v1550, 1.442695
    %v1555 = vpow.pop %v1554
    %v1556 = vmul.f32 %v1551, 1.442695
    %v1557 = vpow.pop %v1556
    %v1558 = vmul.f32 %v1552, 1.442695
    %v1559 = vpow.pop %v1558
    %v1560 = vmul.f32 %v1553, 1.442695
    %v1561 = vpow.pop %v1560
    %v1562 = vmul.f32 %v1542, %v1555
    %v1563 = vmul.f32 %v1543, %v1557
    %v1564 = vmul.f32 %v1544, %v1559
    %v1565 = vmul.f32 %v1545, %v1561
    %v1566 = vsub.f32 1.0, %v1562
    %v1567 = vsub.f32 1.0, %v1563
    %v1568 = vsub.f32 1.0, %v1564
    %v1569 = vsub.f32 1.0, %v1565
    %vm1570 = vcmp.ge.f32.partialorder %v1486, 0.0
    %vm1571 = vcmp.ge.f32.partialorder %v1487, 0.0
    %vm1572 = vcmp.ge.f32.partialorder %v1488, 0.0
    %vm1573 = vcmp.ge.f32.partialorder %v1489, 0.0
    %v1574 = vsub.f32 0.0, %v1566
    %v1575 = vsub.f32 0.0, %v1567
    %v1576 = vsub.f32 0.0, %v1568
    %v1577 = vsub.f32 0.0, %v1569
    %v1578 = vsel %vm1570, %v1566, %v1574
    %v1579 = vsel %vm1571, %v1567, %v1575
    %v1580 = vsel %vm1572, %v1568, %v1576
    %v1581 = vsel %vm1573, %v1569, %v1577
    %v1582 = vadd.f32 %v1578, 1.0
    %v1583 = vadd.f32 %v1579, 1.0
    %v1584 = vadd.f32 %v1580, 1.0
    %v1585 = vadd.f32 %v1581, 1.0
    %v1586 = vmul.f32 %v1482, %v1582
    %v1587 = vmul.f32 %v1483, %v1583
    %v1588 = vmul.f32 %v1484, %v1584
    %v1589 = vmul.f32 %v1485, %v1585
    %s1590 = sld [smem:[#allocation8 + $0x3a]]
    %v1591 = vstv %s1590
    %v1592 = vmul.f32 %v1586, %v1591
    %v1593 = vmul.f32 %v1587, %v1591
    %v1594 = vmul.f32 %v1588, %v1591
    %v1595 = vmul.f32 %v1589, %v1591
    %v1596 = vadd.f32 %v1456, %v1592
    %v1597 = vadd.f32 %v1457, %v1593
    %v1598 = vadd.f32 %v1458, %v1594
    %v1599 = vadd.f32 %v1459, %v1595
    %s1600 = sld [smem:[#allocation8 + $0xb]]
    %v1601 = vstv %s1600
    %v1602 = vmul.f32 %v52, %v1601
    %v1603 = vmul.f32 %v53, %v1601
    %v1604 = vmul.f32 %v54, %v1601
    %v1605 = vmul.f32 %v55, %v1601
    %s1606 = sld [smem:[#allocation8 + $0x1b]]
    %v1607 = vstv %s1606
    %v1608 = vmul.f32 %v56, %v1607
    %v1609 = vmul.f32 %v57, %v1607
    %v1610 = vmul.f32 %v58, %v1607
    %v1611 = vmul.f32 %v59, %v1607
    %v1612 = vadd.f32 %v1602, %v1608
    %v1613 = vadd.f32 %v1603, %v1609
    %v1614 = vadd.f32 %v1604, %v1610
    %v1615 = vadd.f32 %v1605, %v1611
    %s1616 = sld [smem:[#allocation8 + $0x2b]]
    %v1617 = vstv %s1616
    %v1618 = vadd.f32 %v1612, %v1617
    %v1619 = vadd.f32 %v1613, %v1617
    %v1620 = vadd.f32 %v1614, %v1617
    %v1621 = vadd.f32 %v1615, %v1617
    %v1622 = vmul.f32 %v1618, 0.5
    %v1623 = vmul.f32 %v1619, 0.5
    %v1624 = vmul.f32 %v1620, 0.5
    %v1625 = vmul.f32 %v1621, 0.5
    %v1626 = vmul.f32 %v1618, 0.70710677
    %v1627 = vmul.f32 %v1619, 0.70710677
    %v1628 = vmul.f32 %v1620, 0.70710677
    %v1629 = vmul.f32 %v1621, 0.70710677
    %v1630 = vand.u32 2147483647, %v1626
    %v1631 = vand.u32 2147483647, %v1627
    %v1632 = vand.u32 2147483647, %v1628
    %v1633 = vand.u32 2147483647, %v1629
    %v1634 = vmul.f32 %v1630, 0.3275911
    %v1635 = vmul.f32 %v1631, 0.3275911
    %v1636 = vmul.f32 %v1632, 0.3275911
    %v1637 = vmul.f32 %v1633, 0.3275911
    %v1638 = vadd.f32 %v1634, 1.0
    %v1639 = vadd.f32 %v1635, 1.0
    %v1640 = vadd.f32 %v1636, 1.0
    %v1641 = vadd.f32 %v1637, 1.0
    %v1642 = vrcp.pop %v1638
    %v1643 = vmul.f32 1.0, %v1642
    %v1644 = vrcp.pop %v1639
    %v1645 = vmul.f32 1.0, %v1644
    %v1646 = vrcp.pop %v1640
    %v1647 = vmul.f32 1.0, %v1646
    %v1648 = vrcp.pop %v1641
    %v1649 = vmul.f32 1.0, %v1648
    %v1650 = vmul.f32 %v1643, 1.0614054
    %v1651 = vmul.f32 %v1645, 1.0614054
    %v1652 = vmul.f32 %v1647, 1.0614054
    %v1653 = vmul.f32 %v1649, 1.0614054
    %v1654 = vadd.f32 %v1650, -1.4531521
    %v1655 = vadd.f32 %v1651, -1.4531521
    %v1656 = vadd.f32 %v1652, -1.4531521
    %v1657 = vadd.f32 %v1653, -1.4531521
    %v1658 = vmul.f32 %v1654, %v1643
    %v1659 = vmul.f32 %v1655, %v1645
    %v1660 = vmul.f32 %v1656, %v1647
    %v1661 = vmul.f32 %v1657, %v1649
    %v1662 = vadd.f32 %v1658, 1.4214138
    %v1663 = vadd.f32 %v1659, 1.4214138
    %v1664 = vadd.f32 %v1660, 1.4214138
    %v1665 = vadd.f32 %v1661, 1.4214138
    %v1666 = vmul.f32 %v1662, %v1643
    %v1667 = vmul.f32 %v1663, %v1645
    %v1668 = vmul.f32 %v1664, %v1647
    %v1669 = vmul.f32 %v1665, %v1649
    %v1670 = vadd.f32 %v1666, -0.28449672
    %v1671 = vadd.f32 %v1667, -0.28449672
    %v1672 = vadd.f32 %v1668, -0.28449672
    %v1673 = vadd.f32 %v1669, -0.28449672
    %v1674 = vmul.f32 %v1670, %v1643
    %v1675 = vmul.f32 %v1671, %v1645
    %v1676 = vmul.f32 %v1672, %v1647
    %v1677 = vmul.f32 %v1673, %v1649
    %v1678 = vadd.f32 %v1674, 0.2548296
    %v1679 = vadd.f32 %v1675, 0.2548296
    %v1680 = vadd.f32 %v1676, 0.2548296
    %v1681 = vadd.f32 %v1677, 0.2548296
    %v1682 = vmul.f32 %v1678, %v1643
    %v1683 = vmul.f32 %v1679, %v1645
    %v1684 = vmul.f32 %v1680, %v1647
    %v1685 = vmul.f32 %v1681, %v1649
    %v1686 = vmul.f32 %v1630, %v1630
    %v1687 = vmul.f32 %v1631, %v1631
    %v1688 = vmul.f32 %v1632, %v1632
    %v1689 = vmul.f32 %v1633, %v1633
    %v1690 = vsub.f32 0.0, %v1686
    %v1691 = vsub.f32 0.0, %v1687
    %v1692 = vsub.f32 0.0, %v1688
    %v1693 = vsub.f32 0.0, %v1689
    %v1694 = vmul.f32 %v1690, 1.442695
    %v1695 = vpow.pop %v1694
    %v1696 = vmul.f32 %v1691, 1.442695
    %v1697 = vpow.pop %v1696
    %v1698 = vmul.f32 %v1692, 1.442695
    %v1699 = vpow.pop %v1698
    %v1700 = vmul.f32 %v1693, 1.442695
    %v1701 = vpow.pop %v1700
    %v1702 = vmul.f32 %v1682, %v1695
    %v1703 = vmul.f32 %v1683, %v1697
    %v1704 = vmul.f32 %v1684, %v1699
    %v1705 = vmul.f32 %v1685, %v1701
    %v1706 = vsub.f32 1.0, %v1702
    %v1707 = vsub.f32 1.0, %v1703
    %v1708 = vsub.f32 1.0, %v1704
    %v1709 = vsub.f32 1.0, %v1705
    %vm1710 = vcmp.ge.f32.partialorder %v1626, 0.0
    %vm1711 = vcmp.ge.f32.partialorder %v1627, 0.0
    %vm1712 = vcmp.ge.f32.partialorder %v1628, 0.0
    %vm1713 = vcmp.ge.f32.partialorder %v1629, 0.0
    %v1714 = vsub.f32 0.0, %v1706
    %v1715 = vsub.f32 0.0, %v1707
    %v1716 = vsub.f32 0.0, %v1708
    %v1717 = vsub.f32 0.0, %v1709
    %v1718 = vsel %vm1710, %v1706, %v1714
    %v1719 = vsel %vm1711, %v1707, %v1715
    %v1720 = vsel %vm1712, %v1708, %v1716
    %v1721 = vsel %vm1713, %v1709, %v1717
    %v1722 = vadd.f32 %v1718, 1.0
    %v1723 = vadd.f32 %v1719, 1.0
    %v1724 = vadd.f32 %v1720, 1.0
    %v1725 = vadd.f32 %v1721, 1.0
    %v1726 = vmul.f32 %v1622, %v1722
    %v1727 = vmul.f32 %v1623, %v1723
    %v1728 = vmul.f32 %v1624, %v1724
    %v1729 = vmul.f32 %v1625, %v1725
    %s1730 = sld [smem:[#allocation8 + $0x3b]]
    %v1731 = vstv %s1730
    %v1732 = vmul.f32 %v1726, %v1731
    %v1733 = vmul.f32 %v1727, %v1731
    %v1734 = vmul.f32 %v1728, %v1731
    %v1735 = vmul.f32 %v1729, %v1731
    %v1736 = vadd.f32 %v1596, %v1732
    %v1737 = vadd.f32 %v1597, %v1733
    %v1738 = vadd.f32 %v1598, %v1734
    %v1739 = vadd.f32 %v1599, %v1735
    %s1740 = sld [smem:[#allocation8 + $0xc]]
    %v1741 = vstv %s1740
    %v1742 = vmul.f32 %v52, %v1741
    %v1743 = vmul.f32 %v53, %v1741
    %v1744 = vmul.f32 %v54, %v1741
    %v1745 = vmul.f32 %v55, %v1741
    %s1746 = sld [smem:[#allocation8 + $0x1c]]
    %v1747 = vstv %s1746
    %v1748 = vmul.f32 %v56, %v1747
    %v1749 = vmul.f32 %v57, %v1747
    %v1750 = vmul.f32 %v58, %v1747
    %v1751 = vmul.f32 %v59, %v1747
    %v1752 = vadd.f32 %v1742, %v1748
    %v1753 = vadd.f32 %v1743, %v1749
    %v1754 = vadd.f32 %v1744, %v1750
    %v1755 = vadd.f32 %v1745, %v1751
    %s1756 = sld [smem:[#allocation8 + $0x2c]]
    %v1757 = vstv %s1756
    %v1758 = vadd.f32 %v1752, %v1757
    %v1759 = vadd.f32 %v1753, %v1757
    %v1760 = vadd.f32 %v1754, %v1757
    %v1761 = vadd.f32 %v1755, %v1757
    %v1762 = vmul.f32 %v1758, 0.5
    %v1763 = vmul.f32 %v1759, 0.5
    %v1764 = vmul.f32 %v1760, 0.5
    %v1765 = vmul.f32 %v1761, 0.5
    %v1766 = vmul.f32 %v1758, 0.70710677
    %v1767 = vmul.f32 %v1759, 0.70710677
    %v1768 = vmul.f32 %v1760, 0.70710677
    %v1769 = vmul.f32 %v1761, 0.70710677
    %v1770 = vand.u32 2147483647, %v1766
    %v1771 = vand.u32 2147483647, %v1767
    %v1772 = vand.u32 2147483647, %v1768
    %v1773 = vand.u32 2147483647, %v1769
    %v1774 = vmul.f32 %v1770, 0.3275911
    %v1775 = vmul.f32 %v1771, 0.3275911
    %v1776 = vmul.f32 %v1772, 0.3275911
    %v1777 = vmul.f32 %v1773, 0.3275911
    %v1778 = vadd.f32 %v1774, 1.0
    %v1779 = vadd.f32 %v1775, 1.0
    %v1780 = vadd.f32 %v1776, 1.0
    %v1781 = vadd.f32 %v1777, 1.0
    %v1782 = vrcp.pop %v1778
    %v1783 = vmul.f32 1.0, %v1782
    %v1784 = vrcp.pop %v1779
    %v1785 = vmul.f32 1.0, %v1784
    %v1786 = vrcp.pop %v1780
    %v1787 = vmul.f32 1.0, %v1786
    %v1788 = vrcp.pop %v1781
    %v1789 = vmul.f32 1.0, %v1788
    %v1790 = vmul.f32 %v1783, 1.0614054
    %v1791 = vmul.f32 %v1785, 1.0614054
    %v1792 = vmul.f32 %v1787, 1.0614054
    %v1793 = vmul.f32 %v1789, 1.0614054
    %v1794 = vadd.f32 %v1790, -1.4531521
    %v1795 = vadd.f32 %v1791, -1.4531521
    %v1796 = vadd.f32 %v1792, -1.4531521
    %v1797 = vadd.f32 %v1793, -1.4531521
    %v1798 = vmul.f32 %v1794, %v1783
    %v1799 = vmul.f32 %v1795, %v1785
    %v1800 = vmul.f32 %v1796, %v1787
    %v1801 = vmul.f32 %v1797, %v1789
    %v1802 = vadd.f32 %v1798, 1.4214138
    %v1803 = vadd.f32 %v1799, 1.4214138
    %v1804 = vadd.f32 %v1800, 1.4214138
    %v1805 = vadd.f32 %v1801, 1.4214138
    %v1806 = vmul.f32 %v1802, %v1783
    %v1807 = vmul.f32 %v1803, %v1785
    %v1808 = vmul.f32 %v1804, %v1787
    %v1809 = vmul.f32 %v1805, %v1789
    %v1810 = vadd.f32 %v1806, -0.28449672
    %v1811 = vadd.f32 %v1807, -0.28449672
    %v1812 = vadd.f32 %v1808, -0.28449672
    %v1813 = vadd.f32 %v1809, -0.28449672
    %v1814 = vmul.f32 %v1810, %v1783
    %v1815 = vmul.f32 %v1811, %v1785
    %v1816 = vmul.f32 %v1812, %v1787
    %v1817 = vmul.f32 %v1813, %v1789
    %v1818 = vadd.f32 %v1814, 0.2548296
    %v1819 = vadd.f32 %v1815, 0.2548296
    %v1820 = vadd.f32 %v1816, 0.2548296
    %v1821 = vadd.f32 %v1817, 0.2548296
    %v1822 = vmul.f32 %v1818, %v1783
    %v1823 = vmul.f32 %v1819, %v1785
    %v1824 = vmul.f32 %v1820, %v1787
    %v1825 = vmul.f32 %v1821, %v1789
    %v1826 = vmul.f32 %v1770, %v1770
    %v1827 = vmul.f32 %v1771, %v1771
    %v1828 = vmul.f32 %v1772, %v1772
    %v1829 = vmul.f32 %v1773, %v1773
    %v1830 = vsub.f32 0.0, %v1826
    %v1831 = vsub.f32 0.0, %v1827
    %v1832 = vsub.f32 0.0, %v1828
    %v1833 = vsub.f32 0.0, %v1829
    %v1834 = vmul.f32 %v1830, 1.442695
    %v1835 = vpow.pop %v1834
    %v1836 = vmul.f32 %v1831, 1.442695
    %v1837 = vpow.pop %v1836
    %v1838 = vmul.f32 %v1832, 1.442695
    %v1839 = vpow.pop %v1838
    %v1840 = vmul.f32 %v1833, 1.442695
    %v1841 = vpow.pop %v1840
    %v1842 = vmul.f32 %v1822, %v1835
    %v1843 = vmul.f32 %v1823, %v1837
    %v1844 = vmul.f32 %v1824, %v1839
    %v1845 = vmul.f32 %v1825, %v1841
    %v1846 = vsub.f32 1.0, %v1842
    %v1847 = vsub.f32 1.0, %v1843
    %v1848 = vsub.f32 1.0, %v1844
    %v1849 = vsub.f32 1.0, %v1845
    %vm1850 = vcmp.ge.f32.partialorder %v1766, 0.0
    %vm1851 = vcmp.ge.f32.partialorder %v1767, 0.0
    %vm1852 = vcmp.ge.f32.partialorder %v1768, 0.0
    %vm1853 = vcmp.ge.f32.partialorder %v1769, 0.0
    %v1854 = vsub.f32 0.0, %v1846
    %v1855 = vsub.f32 0.0, %v1847
    %v1856 = vsub.f32 0.0, %v1848
    %v1857 = vsub.f32 0.0, %v1849
    %v1858 = vsel %vm1850, %v1846, %v1854
    %v1859 = vsel %vm1851, %v1847, %v1855
    %v1860 = vsel %vm1852, %v1848, %v1856
    %v1861 = vsel %vm1853, %v1849, %v1857
    %v1862 = vadd.f32 %v1858, 1.0
    %v1863 = vadd.f32 %v1859, 1.0
    %v1864 = vadd.f32 %v1860, 1.0
    %v1865 = vadd.f32 %v1861, 1.0
    %v1866 = vmul.f32 %v1762, %v1862
    %v1867 = vmul.f32 %v1763, %v1863
    %v1868 = vmul.f32 %v1764, %v1864
    %v1869 = vmul.f32 %v1765, %v1865
    %s1870 = sld [smem:[#allocation8 + $0x3c]]
    %v1871 = vstv %s1870
    %v1872 = vmul.f32 %v1866, %v1871
    %v1873 = vmul.f32 %v1867, %v1871
    %v1874 = vmul.f32 %v1868, %v1871
    %v1875 = vmul.f32 %v1869, %v1871
    %v1876 = vadd.f32 %v1736, %v1872
    %v1877 = vadd.f32 %v1737, %v1873
    %v1878 = vadd.f32 %v1738, %v1874
    %v1879 = vadd.f32 %v1739, %v1875
    %s1880 = sld [smem:[#allocation8 + $0xd]]
    %v1881 = vstv %s1880
    %v1882 = vmul.f32 %v52, %v1881
    %v1883 = vmul.f32 %v53, %v1881
    %v1884 = vmul.f32 %v54, %v1881
    %v1885 = vmul.f32 %v55, %v1881
    %s1886 = sld [smem:[#allocation8 + $0x1d]]
    %v1887 = vstv %s1886
    %v1888 = vmul.f32 %v56, %v1887
    %v1889 = vmul.f32 %v57, %v1887
    %v1890 = vmul.f32 %v58, %v1887
    %v1891 = vmul.f32 %v59, %v1887
    %v1892 = vadd.f32 %v1882, %v1888
    %v1893 = vadd.f32 %v1883, %v1889
    %v1894 = vadd.f32 %v1884, %v1890
    %v1895 = vadd.f32 %v1885, %v1891
    %s1896 = sld [smem:[#allocation8 + $0x2d]]
    %v1897 = vstv %s1896
    %v1898 = vadd.f32 %v1892, %v1897
    %v1899 = vadd.f32 %v1893, %v1897
    %v1900 = vadd.f32 %v1894, %v1897
    %v1901 = vadd.f32 %v1895, %v1897
    %v1902 = vmul.f32 %v1898, 0.5
    %v1903 = vmul.f32 %v1899, 0.5
    %v1904 = vmul.f32 %v1900, 0.5
    %v1905 = vmul.f32 %v1901, 0.5
    %v1906 = vmul.f32 %v1898, 0.70710677
    %v1907 = vmul.f32 %v1899, 0.70710677
    %v1908 = vmul.f32 %v1900, 0.70710677
    %v1909 = vmul.f32 %v1901, 0.70710677
    %v1910 = vand.u32 2147483647, %v1906
    %v1911 = vand.u32 2147483647, %v1907
    %v1912 = vand.u32 2147483647, %v1908
    %v1913 = vand.u32 2147483647, %v1909
    %v1914 = vmul.f32 %v1910, 0.3275911
    %v1915 = vmul.f32 %v1911, 0.3275911
    %v1916 = vmul.f32 %v1912, 0.3275911
    %v1917 = vmul.f32 %v1913, 0.3275911
    %v1918 = vadd.f32 %v1914, 1.0
    %v1919 = vadd.f32 %v1915, 1.0
    %v1920 = vadd.f32 %v1916, 1.0
    %v1921 = vadd.f32 %v1917, 1.0
    %v1922 = vrcp.pop %v1918
    %v1923 = vmul.f32 1.0, %v1922
    %v1924 = vrcp.pop %v1919
    %v1925 = vmul.f32 1.0, %v1924
    %v1926 = vrcp.pop %v1920
    %v1927 = vmul.f32 1.0, %v1926
    %v1928 = vrcp.pop %v1921
    %v1929 = vmul.f32 1.0, %v1928
    %v1930 = vmul.f32 %v1923, 1.0614054
    %v1931 = vmul.f32 %v1925, 1.0614054
    %v1932 = vmul.f32 %v1927, 1.0614054
    %v1933 = vmul.f32 %v1929, 1.0614054
    %v1934 = vadd.f32 %v1930, -1.4531521
    %v1935 = vadd.f32 %v1931, -1.4531521
    %v1936 = vadd.f32 %v1932, -1.4531521
    %v1937 = vadd.f32 %v1933, -1.4531521
    %v1938 = vmul.f32 %v1934, %v1923
    %v1939 = vmul.f32 %v1935, %v1925
    %v1940 = vmul.f32 %v1936, %v1927
    %v1941 = vmul.f32 %v1937, %v1929
    %v1942 = vadd.f32 %v1938, 1.4214138
    %v1943 = vadd.f32 %v1939, 1.4214138
    %v1944 = vadd.f32 %v1940, 1.4214138
    %v1945 = vadd.f32 %v1941, 1.4214138
    %v1946 = vmul.f32 %v1942, %v1923
    %v1947 = vmul.f32 %v1943, %v1925
    %v1948 = vmul.f32 %v1944, %v1927
    %v1949 = vmul.f32 %v1945, %v1929
    %v1950 = vadd.f32 %v1946, -0.28449672
    %v1951 = vadd.f32 %v1947, -0.28449672
    %v1952 = vadd.f32 %v1948, -0.28449672
    %v1953 = vadd.f32 %v1949, -0.28449672
    %v1954 = vmul.f32 %v1950, %v1923
    %v1955 = vmul.f32 %v1951, %v1925
    %v1956 = vmul.f32 %v1952, %v1927
    %v1957 = vmul.f32 %v1953, %v1929
    %v1958 = vadd.f32 %v1954, 0.2548296
    %v1959 = vadd.f32 %v1955, 0.2548296
    %v1960 = vadd.f32 %v1956, 0.2548296
    %v1961 = vadd.f32 %v1957, 0.2548296
    %v1962 = vmul.f32 %v1958, %v1923
    %v1963 = vmul.f32 %v1959, %v1925
    %v1964 = vmul.f32 %v1960, %v1927
    %v1965 = vmul.f32 %v1961, %v1929
    %v1966 = vmul.f32 %v1910, %v1910
    %v1967 = vmul.f32 %v1911, %v1911
    %v1968 = vmul.f32 %v1912, %v1912
    %v1969 = vmul.f32 %v1913, %v1913
    %v1970 = vsub.f32 0.0, %v1966
    %v1971 = vsub.f32 0.0, %v1967
    %v1972 = vsub.f32 0.0, %v1968
    %v1973 = vsub.f32 0.0, %v1969
    %v1974 = vmul.f32 %v1970, 1.442695
    %v1975 = vpow.pop %v1974
    %v1976 = vmul.f32 %v1971, 1.442695
    %v1977 = vpow.pop %v1976
    %v1978 = vmul.f32 %v1972, 1.442695
    %v1979 = vpow.pop %v1978
    %v1980 = vmul.f32 %v1973, 1.442695
    %v1981 = vpow.pop %v1980
    %v1982 = vmul.f32 %v1962, %v1975
    %v1983 = vmul.f32 %v1963, %v1977
    %v1984 = vmul.f32 %v1964, %v1979
    %v1985 = vmul.f32 %v1965, %v1981
    %v1986 = vsub.f32 1.0, %v1982
    %v1987 = vsub.f32 1.0, %v1983
    %v1988 = vsub.f32 1.0, %v1984
    %v1989 = vsub.f32 1.0, %v1985
    %vm1990 = vcmp.ge.f32.partialorder %v1906, 0.0
    %vm1991 = vcmp.ge.f32.partialorder %v1907, 0.0
    %vm1992 = vcmp.ge.f32.partialorder %v1908, 0.0
    %vm1993 = vcmp.ge.f32.partialorder %v1909, 0.0
    %v1994 = vsub.f32 0.0, %v1986
    %v1995 = vsub.f32 0.0, %v1987
    %v1996 = vsub.f32 0.0, %v1988
    %v1997 = vsub.f32 0.0, %v1989
    %v1998 = vsel %vm1990, %v1986, %v1994
    %v1999 = vsel %vm1991, %v1987, %v1995
    %v2000 = vsel %vm1992, %v1988, %v1996
    %v2001 = vsel %vm1993, %v1989, %v1997
    %v2002 = vadd.f32 %v1998, 1.0
    %v2003 = vadd.f32 %v1999, 1.0
    %v2004 = vadd.f32 %v2000, 1.0
    %v2005 = vadd.f32 %v2001, 1.0
    %v2006 = vmul.f32 %v1902, %v2002
    %v2007 = vmul.f32 %v1903, %v2003
    %v2008 = vmul.f32 %v1904, %v2004
    %v2009 = vmul.f32 %v1905, %v2005
    %s2010 = sld [smem:[#allocation8 + $0x3d]]
    %v2011 = vstv %s2010
    %v2012 = vmul.f32 %v2006, %v2011
    %v2013 = vmul.f32 %v2007, %v2011
    %v2014 = vmul.f32 %v2008, %v2011
    %v2015 = vmul.f32 %v2009, %v2011
    %v2016 = vadd.f32 %v1876, %v2012
    %v2017 = vadd.f32 %v1877, %v2013
    %v2018 = vadd.f32 %v1878, %v2014
    %v2019 = vadd.f32 %v1879, %v2015
    %s2020 = sld [smem:[#allocation8 + $0xe]]
    %v2021 = vstv %s2020
    %v2022 = vmul.f32 %v52, %v2021
    %v2023 = vmul.f32 %v53, %v2021
    %v2024 = vmul.f32 %v54, %v2021
    %v2025 = vmul.f32 %v55, %v2021
    %s2026 = sld [smem:[#allocation8 + $0x1e]]
    %v2027 = vstv %s2026
    %v2028 = vmul.f32 %v56, %v2027
    %v2029 = vmul.f32 %v57, %v2027
    %v2030 = vmul.f32 %v58, %v2027
    %v2031 = vmul.f32 %v59, %v2027
    %v2032 = vadd.f32 %v2022, %v2028
    %v2033 = vadd.f32 %v2023, %v2029
    %v2034 = vadd.f32 %v2024, %v2030
    %v2035 = vadd.f32 %v2025, %v2031
    %s2036 = sld [smem:[#allocation8 + $0x2e]]
    %v2037 = vstv %s2036
    %v2038 = vadd.f32 %v2032, %v2037
    %v2039 = vadd.f32 %v2033, %v2037
    %v2040 = vadd.f32 %v2034, %v2037
    %v2041 = vadd.f32 %v2035, %v2037
    %v2042 = vmul.f32 %v2038, 0.5
    %v2043 = vmul.f32 %v2039, 0.5
    %v2044 = vmul.f32 %v2040, 0.5
    %v2045 = vmul.f32 %v2041, 0.5
    %v2046 = vmul.f32 %v2038, 0.70710677
    %v2047 = vmul.f32 %v2039, 0.70710677
    %v2048 = vmul.f32 %v2040, 0.70710677
    %v2049 = vmul.f32 %v2041, 0.70710677
    %v2050 = vand.u32 2147483647, %v2046
    %v2051 = vand.u32 2147483647, %v2047
    %v2052 = vand.u32 2147483647, %v2048
    %v2053 = vand.u32 2147483647, %v2049
    %v2054 = vmul.f32 %v2050, 0.3275911
    %v2055 = vmul.f32 %v2051, 0.3275911
    %v2056 = vmul.f32 %v2052, 0.3275911
    %v2057 = vmul.f32 %v2053, 0.3275911
    %v2058 = vadd.f32 %v2054, 1.0
    %v2059 = vadd.f32 %v2055, 1.0
    %v2060 = vadd.f32 %v2056, 1.0
    %v2061 = vadd.f32 %v2057, 1.0
    %v2062 = vrcp.pop %v2058
    %v2063 = vmul.f32 1.0, %v2062
    %v2064 = vrcp.pop %v2059
    %v2065 = vmul.f32 1.0, %v2064
    %v2066 = vrcp.pop %v2060
    %v2067 = vmul.f32 1.0, %v2066
    %v2068 = vrcp.pop %v2061
    %v2069 = vmul.f32 1.0, %v2068
    %v2070 = vmul.f32 %v2063, 1.0614054
    %v2071 = vmul.f32 %v2065, 1.0614054
    %v2072 = vmul.f32 %v2067, 1.0614054
    %v2073 = vmul.f32 %v2069, 1.0614054
    %v2074 = vadd.f32 %v2070, -1.4531521
    %v2075 = vadd.f32 %v2071, -1.4531521
    %v2076 = vadd.f32 %v2072, -1.4531521
    %v2077 = vadd.f32 %v2073, -1.4531521
    %v2078 = vmul.f32 %v2074, %v2063
    %v2079 = vmul.f32 %v2075, %v2065
    %v2080 = vmul.f32 %v2076, %v2067
    %v2081 = vmul.f32 %v2077, %v2069
    %v2082 = vadd.f32 %v2078, 1.4214138
    %v2083 = vadd.f32 %v2079, 1.4214138
    %v2084 = vadd.f32 %v2080, 1.4214138
    %v2085 = vadd.f32 %v2081, 1.4214138
    %v2086 = vmul.f32 %v2082, %v2063
    %v2087 = vmul.f32 %v2083, %v2065
    %v2088 = vmul.f32 %v2084, %v2067
    %v2089 = vmul.f32 %v2085, %v2069
    %v2090 = vadd.f32 %v2086, -0.28449672
    %v2091 = vadd.f32 %v2087, -0.28449672
    %v2092 = vadd.f32 %v2088, -0.28449672
    %v2093 = vadd.f32 %v2089, -0.28449672
    %v2094 = vmul.f32 %v2090, %v2063
    %v2095 = vmul.f32 %v2091, %v2065
    %v2096 = vmul.f32 %v2092, %v2067
    %v2097 = vmul.f32 %v2093, %v2069
    %v2098 = vadd.f32 %v2094, 0.2548296
    %v2099 = vadd.f32 %v2095, 0.2548296
    %v2100 = vadd.f32 %v2096, 0.2548296
    %v2101 = vadd.f32 %v2097, 0.2548296
    %v2102 = vmul.f32 %v2098, %v2063
    %v2103 = vmul.f32 %v2099, %v2065
    %v2104 = vmul.f32 %v2100, %v2067
    %v2105 = vmul.f32 %v2101, %v2069
    %v2106 = vmul.f32 %v2050, %v2050
    %v2107 = vmul.f32 %v2051, %v2051
    %v2108 = vmul.f32 %v2052, %v2052
    %v2109 = vmul.f32 %v2053, %v2053
    %v2110 = vsub.f32 0.0, %v2106
    %v2111 = vsub.f32 0.0, %v2107
    %v2112 = vsub.f32 0.0, %v2108
    %v2113 = vsub.f32 0.0, %v2109
    %v2114 = vmul.f32 %v2110, 1.442695
    %v2115 = vpow.pop %v2114
    %v2116 = vmul.f32 %v2111, 1.442695
    %v2117 = vpow.pop %v2116
    %v2118 = vmul.f32 %v2112, 1.442695
    %v2119 = vpow.pop %v2118
    %v2120 = vmul.f32 %v2113, 1.442695
    %v2121 = vpow.pop %v2120
    %v2122 = vmul.f32 %v2102, %v2115
    %v2123 = vmul.f32 %v2103, %v2117
    %v2124 = vmul.f32 %v2104, %v2119
    %v2125 = vmul.f32 %v2105, %v2121
    %v2126 = vsub.f32 1.0, %v2122
    %v2127 = vsub.f32 1.0, %v2123
    %v2128 = vsub.f32 1.0, %v2124
    %v2129 = vsub.f32 1.0, %v2125
    %vm2130 = vcmp.ge.f32.partialorder %v2046, 0.0
    %vm2131 = vcmp.ge.f32.partialorder %v2047, 0.0
    %vm2132 = vcmp.ge.f32.partialorder %v2048, 0.0
    %vm2133 = vcmp.ge.f32.partialorder %v2049, 0.0
    %v2134 = vsub.f32 0.0, %v2126
    %v2135 = vsub.f32 0.0, %v2127
    %v2136 = vsub.f32 0.0, %v2128
    %v2137 = vsub.f32 0.0, %v2129
    %v2138 = vsel %vm2130, %v2126, %v2134
    %v2139 = vsel %vm2131, %v2127, %v2135
    %v2140 = vsel %vm2132, %v2128, %v2136
    %v2141 = vsel %vm2133, %v2129, %v2137
    %v2142 = vadd.f32 %v2138, 1.0
    %v2143 = vadd.f32 %v2139, 1.0
    %v2144 = vadd.f32 %v2140, 1.0
    %v2145 = vadd.f32 %v2141, 1.0
    %v2146 = vmul.f32 %v2042, %v2142
    %v2147 = vmul.f32 %v2043, %v2143
    %v2148 = vmul.f32 %v2044, %v2144
    %v2149 = vmul.f32 %v2045, %v2145
    %s2150 = sld [smem:[#allocation8 + $0x3e]]
    %v2151 = vstv %s2150
    %v2152 = vmul.f32 %v2146, %v2151
    %v2153 = vmul.f32 %v2147, %v2151
    %v2154 = vmul.f32 %v2148, %v2151
    %v2155 = vmul.f32 %v2149, %v2151
    %v2156 = vadd.f32 %v2016, %v2152
    %v2157 = vadd.f32 %v2017, %v2153
    %v2158 = vadd.f32 %v2018, %v2154
    %v2159 = vadd.f32 %v2019, %v2155
    %s2160 = sld [smem:[#allocation8 + $0xf]]
    %v2161 = vstv %s2160
    %v2162 = vmul.f32 %v52, %v2161
    %v2163 = vmul.f32 %v53, %v2161
    %v2164 = vmul.f32 %v54, %v2161
    %v2165 = vmul.f32 %v55, %v2161
    %s2166 = sld [smem:[#allocation8 + $0x1f]]
    %v2167 = vstv %s2166
    %v2168 = vmul.f32 %v56, %v2167
    %v2169 = vmul.f32 %v57, %v2167
    %v2170 = vmul.f32 %v58, %v2167
    %v2171 = vmul.f32 %v59, %v2167
    %v2172 = vadd.f32 %v2162, %v2168
    %v2173 = vadd.f32 %v2163, %v2169
    %v2174 = vadd.f32 %v2164, %v2170
    %v2175 = vadd.f32 %v2165, %v2171
    %s2176 = sld [smem:[#allocation8 + $0x2f]]
    %v2177 = vstv %s2176
    %v2178 = vadd.f32 %v2172, %v2177
    %v2179 = vadd.f32 %v2173, %v2177
    %v2180 = vadd.f32 %v2174, %v2177
    %v2181 = vadd.f32 %v2175, %v2177
    %v2182 = vmul.f32 %v2178, 0.5
    %v2183 = vmul.f32 %v2179, 0.5
    %v2184 = vmul.f32 %v2180, 0.5
    %v2185 = vmul.f32 %v2181, 0.5
    %v2186 = vmul.f32 %v2178, 0.70710677
    %v2187 = vmul.f32 %v2179, 0.70710677
    %v2188 = vmul.f32 %v2180, 0.70710677
    %v2189 = vmul.f32 %v2181, 0.70710677
    %v2190 = vand.u32 2147483647, %v2186
    %v2191 = vand.u32 2147483647, %v2187
    %v2192 = vand.u32 2147483647, %v2188
    %v2193 = vand.u32 2147483647, %v2189
    %v2194 = vmul.f32 %v2190, 0.3275911
    %v2195 = vmul.f32 %v2191, 0.3275911
    %v2196 = vmul.f32 %v2192, 0.3275911
    %v2197 = vmul.f32 %v2193, 0.3275911
    %v2198 = vadd.f32 %v2194, 1.0
    %v2199 = vadd.f32 %v2195, 1.0
    %v2200 = vadd.f32 %v2196, 1.0
    %v2201 = vadd.f32 %v2197, 1.0
    %v2202 = vrcp.pop %v2198
    %v2203 = vmul.f32 1.0, %v2202
    %v2204 = vrcp.pop %v2199
    %v2205 = vmul.f32 1.0, %v2204
    %v2206 = vrcp.pop %v2200
    %v2207 = vmul.f32 1.0, %v2206
    %v2208 = vrcp.pop %v2201
    %v2209 = vmul.f32 1.0, %v2208
    %v2210 = vmul.f32 %v2203, 1.0614054
    %v2211 = vmul.f32 %v2205, 1.0614054
    %v2212 = vmul.f32 %v2207, 1.0614054
    %v2213 = vmul.f32 %v2209, 1.0614054
    %v2214 = vadd.f32 %v2210, -1.4531521
    %v2215 = vadd.f32 %v2211, -1.4531521
    %v2216 = vadd.f32 %v2212, -1.4531521
    %v2217 = vadd.f32 %v2213, -1.4531521
    %v2218 = vmul.f32 %v2214, %v2203
    %v2219 = vmul.f32 %v2215, %v2205
    %v2220 = vmul.f32 %v2216, %v2207
    %v2221 = vmul.f32 %v2217, %v2209
    %v2222 = vadd.f32 %v2218, 1.4214138
    %v2223 = vadd.f32 %v2219, 1.4214138
    %v2224 = vadd.f32 %v2220, 1.4214138
    %v2225 = vadd.f32 %v2221, 1.4214138
    %v2226 = vmul.f32 %v2222, %v2203
    %v2227 = vmul.f32 %v2223, %v2205
    %v2228 = vmul.f32 %v2224, %v2207
    %v2229 = vmul.f32 %v2225, %v2209
    %v2230 = vadd.f32 %v2226, -0.28449672
    %v2231 = vadd.f32 %v2227, -0.28449672
    %v2232 = vadd.f32 %v2228, -0.28449672
    %v2233 = vadd.f32 %v2229, -0.28449672
    %v2234 = vmul.f32 %v2230, %v2203
    %v2235 = vmul.f32 %v2231, %v2205
    %v2236 = vmul.f32 %v2232, %v2207
    %v2237 = vmul.f32 %v2233, %v2209
    %v2238 = vadd.f32 %v2234, 0.2548296
    %v2239 = vadd.f32 %v2235, 0.2548296
    %v2240 = vadd.f32 %v2236, 0.2548296
    %v2241 = vadd.f32 %v2237, 0.2548296
    %v2242 = vmul.f32 %v2238, %v2203
    %v2243 = vmul.f32 %v2239, %v2205
    %v2244 = vmul.f32 %v2240, %v2207
    %v2245 = vmul.f32 %v2241, %v2209
    %v2246 = vmul.f32 %v2190, %v2190
    %v2247 = vmul.f32 %v2191, %v2191
    %v2248 = vmul.f32 %v2192, %v2192
    %v2249 = vmul.f32 %v2193, %v2193
    %v2250 = vsub.f32 0.0, %v2246
    %v2251 = vsub.f32 0.0, %v2247
    %v2252 = vsub.f32 0.0, %v2248
    %v2253 = vsub.f32 0.0, %v2249
    %v2254 = vmul.f32 %v2250, 1.442695
    %v2255 = vpow.pop %v2254
    %v2256 = vmul.f32 %v2251, 1.442695
    %v2257 = vpow.pop %v2256
    %v2258 = vmul.f32 %v2252, 1.442695
    %v2259 = vpow.pop %v2258
    %v2260 = vmul.f32 %v2253, 1.442695
    %v2261 = vpow.pop %v2260
    %v2262 = vmul.f32 %v2242, %v2255
    %v2263 = vmul.f32 %v2243, %v2257
    %v2264 = vmul.f32 %v2244, %v2259
    %v2265 = vmul.f32 %v2245, %v2261
    %v2266 = vsub.f32 1.0, %v2262
    %v2267 = vsub.f32 1.0, %v2263
    %v2268 = vsub.f32 1.0, %v2264
    %v2269 = vsub.f32 1.0, %v2265
    %vm2270 = vcmp.ge.f32.partialorder %v2186, 0.0
    %vm2271 = vcmp.ge.f32.partialorder %v2187, 0.0
    %vm2272 = vcmp.ge.f32.partialorder %v2188, 0.0
    %vm2273 = vcmp.ge.f32.partialorder %v2189, 0.0
    %v2274 = vsub.f32 0.0, %v2266
    %v2275 = vsub.f32 0.0, %v2267
    %v2276 = vsub.f32 0.0, %v2268
    %v2277 = vsub.f32 0.0, %v2269
    %v2278 = vsel %vm2270, %v2266, %v2274
    %v2279 = vsel %vm2271, %v2267, %v2275
    %v2280 = vsel %vm2272, %v2268, %v2276
    %v2281 = vsel %vm2273, %v2269, %v2277
    %v2282 = vadd.f32 %v2278, 1.0
    %v2283 = vadd.f32 %v2279, 1.0
    %v2284 = vadd.f32 %v2280, 1.0
    %v2285 = vadd.f32 %v2281, 1.0
    %v2286 = vmul.f32 %v2182, %v2282
    %v2287 = vmul.f32 %v2183, %v2283
    %v2288 = vmul.f32 %v2184, %v2284
    %v2289 = vmul.f32 %v2185, %v2285
    %s2290 = sld [smem:[#allocation8 + $0x3f]]
    %v2291 = vstv %s2290
    %v2292 = vmul.f32 %v2286, %v2291
    %v2293 = vmul.f32 %v2287, %v2291
    %v2294 = vmul.f32 %v2288, %v2291
    %v2295 = vmul.f32 %v2289, %v2291
    %v2296 = vadd.f32 %v2156, %v2292
    %v2297 = vadd.f32 %v2157, %v2293
    %v2298 = vadd.f32 %v2158, %v2294
    %v2299 = vadd.f32 %v2159, %v2295
    %s2300 = sld [smem:[#allocation8 + $0x40]]
    %v2301 = vstv %s2300
    %v2302 = vadd.f32 %v2296, %v2301
    %v2303 = vadd.f32 %v2297, %v2301
    %v2304 = vadd.f32 %v2298, %v2301
    %v2305 = vadd.f32 %v2299, %v2301
    %2306 = vst [vmem:[#allocation9] sm:$0xff] %v2302
    %2307 = vst [vmem:[#allocation9 + $0x8] sm:$0xff] %v2303
    %2308 = vst [vmem:[#allocation9 + $0x10] sm:$0xff] %v2304
    %2309 = vst [vmem:[#allocation9 + $0x18] sm:$0xff] %v2305
    // Predicated region
    $region26: #{tpu_custom_call.1} parent=1 // pred_check
      _
    $region27: #{tpu_custom_call.1} parent=1 // pred_check_branch
      %2311 = sbr.rel (0) target = $region29
    $region28: #{tpu_custom_call.1} parent=1 // pred_region
      %s2313 = ssub.s32 512, 512
      %2314 = vsyncadd [#allocation4], %s2313
      %s2316 = sshll.u32 [#allocation9], 4
      %s2317 = int_to_ptr.vmem [resolvable:$true] %s2316
      %2319 = dma.vmem_to_hbm [thread:$0]  %s2317, 512, %s3, [#allocation4]
    $region29: #{tpu_custom_call.1} parent=1 // pred_fallthru
      _
    // Predicated region
    $region30: #{tpu_custom_call.1} parent=1 // pred_check
      _
    $region31: #{tpu_custom_call.1} parent=1 // pred_check_branch
      %2321 = sbr.rel (0) target = $region33
    $region32: #{tpu_custom_call.1} parent=1 // pred_region
      %2322 = dma.done [#allocation4], 512
    $region33: #{tpu_custom_call.1} parent=1 // pred_fallthru
      _
    %2323 = vsyncpa [#allocation3], 1
    %2324 = vsyncpa [#allocation7], 1
    %2325 = vsyncpa [#allocation4], 1
    %2326 = vsyncpa [#allocation5], 1

</llo_original>
